<compile_context>
chip_gen: v7x
topology: tpu7x:2x2x1
jax: 0.10.0
libtpu: 0.0.40
codegen_flags: <defaults>
</compile_context>

<pallas_src>
import functools

import jax
import jax.numpy as jnp
from jax.experimental import pallas as pl
from jax.experimental.pallas import tpu as pltpu


EMB = 128
NUM_REL = 2
_LEAKY_SLOPE = 0.01
_VMEM_LIMIT = 32 * 1024 * 1024   # safe on v5e/v6e/v7x; tiles used here are small


def _leaky(x):
    return jnp.where(x > 0, x, _LEAKY_SLOPE * x)


def _round_up(x, m):
    return (x + m - 1) // m * m


def _pick_tiles(n_pad):
    # Row tile: prefer 512 but keep >= 2 row tiles so both v7x TensorCores get
    # work via the "parallel" axis; otherwise 256.
    if n_pad % 512 == 0 and n_pad // 512 >= 2:
        tm = 512
    else:
        tm = 256
    # Contraction tile (columns of A / rows of H); both relations are reduced
    # inside one grid step, so effective K per step is 2*tk.
    tk = 512 if n_pad % 512 == 0 else 256
    return tm, tk


# --------------------- Kernel A: fused input projections ---------------------

def _fused_input_kernel(des_ref, tw_ref, nc_ref,
                        wd_ref, bd_ref, wt_ref, bt_ref,
                        wnc_ref, bnc_ref, win_ref, bin_ref, wrel_ref,
                        x_out_ref, h_out_ref):
    q = EMB // 4
    d = _leaky(jnp.dot(des_ref[...], wd_ref[...],
                       preferred_element_type=jnp.float32) + bd_ref[...])
    t = _leaky(jnp.dot(tw_ref[...], wt_ref[...],
                       preferred_element_type=jnp.float32) + bt_ref[...])
    # num_prop / cat_prop projections merged via a block-diagonal (8, 64) weight.
    nc = _leaky(jnp.dot(nc_ref[...], wnc_ref[...],
                        preferred_element_type=jnp.float32) + bnc_ref[...])
    # x = concat([d, t, n, c]) @ W_in  ==  sum of row-block dots of W_in
    # (avoids narrow-lane concatenation; bf16 MXU operands, f32 accumulation).
    win = win_ref[...]
    x = _leaky(
        jnp.dot(d.astype(jnp.bfloat16), win[0 * q:1 * q, :],
                preferred_element_type=jnp.float32)
        + jnp.dot(t.astype(jnp.bfloat16), win[1 * q:2 * q, :],
                  preferred_element_type=jnp.float32)
        + jnp.dot(nc.astype(jnp.bfloat16), win[2 * q:4 * q, :],
                  preferred_element_type=jnp.float32)
        + bin_ref[...])
    xb = x.astype(jnp.bfloat16)
    x_out_ref[...] = xb
    # H for RGCN conv #1: H[r] = x @ W_rel_r   (bf16 MXU, lane-dense stores).
    for r in range(NUM_REL):
        h_out_ref[r] = jnp.dot(
            xb, wrel_ref[r], preferred_element_type=jnp.float32
        ).astype(h_out_ref.dtype)


def fused_input(des, tweet, nc_in, p, *, tm):
    n = des.shape[0]

    def row_spec(cols):
        return pl.BlockSpec((tm, cols), lambda i: (i, 0))

    def full_spec(arr):
        nd = arr.ndim
        return pl.BlockSpec(arr.shape, lambda i, nd=nd: (0,) * nd)

    inputs = [des, tweet, nc_in,
              p["w_des"], p["b_des"], p["w_tweet"], p["b_tweet"],
              p["w_nc"], p["b_nc"], p["w_in"], p["b_in"], p["w_rel"]]
    in_specs = [row_spec(des.shape[1]), row_spec(tweet.shape[1]),
                row_spec(nc_in.shape[1])] + [full_spec(a) for a in inputs[3:]]

    return pl.pallas_call(
        _fused_input_kernel,
        out_shape=(jax.ShapeDtypeStruct((n, EMB), jnp.bfloat16),
                   jax.ShapeDtypeStruct((NUM_REL, n, EMB), jnp.bfloat16)),
        grid=(n // tm,),
        in_specs=in_specs,
        out_specs=(pl.BlockSpec((tm, EMB), lambda i: (i, 0)),
                   pl.BlockSpec((NUM_REL, tm, EMB), lambda i: (0, i, 0))),
        compiler_params=pltpu.CompilerParams(
            dimension_semantics=("parallel",),
            vmem_limit_bytes=_VMEM_LIMIT),
    )(*inputs)


# ----------------------- Kernel B: tiled RGCN conv ----------------------------

def _rgcn_conv_kernel(a_ref, h_ref, x_ref, wroot_ref, b_ref, *rest,
                      num_rel, mode):
    if mode == "hidden":
        wrel_ref, x_out_ref, h_out_ref, acc_ref = rest
    else:  # "head"
        w1_ref, b1_ref, w2_ref, b2_ref, o_ref, acc_ref = rest

    k = pl.program_id(1)

    @pl.when(k == 0)
    def _init():
        # root/self term + bias, computed once per row tile (bf16 x f32-acc)
        acc_ref[...] = (jnp.dot(x_ref[...], wroot_ref[...],
                                preferred_element_type=jnp.float32)
                        + b_ref[...])

    # sum_r  A_r[i-tile, k-tile] @ H_r[k-tile]   (bf16 operands, f32 acc)
    acc = acc_ref[...]
    for r in range(num_rel):
        acc += jnp.dot(a_ref[r], h_ref[r], preferred_element_type=jnp.float32)
    acc_ref[...] = acc

    @pl.when(k == pl.num_programs(1) - 1)
    def _finalize():
        acc_bf = acc_ref[...].astype(jnp.bfloat16)
        if mode == "hidden":
            # bf16 activation for the next conv + its H, from the resident acc.
            x_out_ref[...] = acc_bf
            for r in range(num_rel):
                h_out_ref[r] = jnp.dot(
                    acc_bf, wrel_ref[r], preferred_element_type=jnp.float32
                ).astype(h_out_ref.dtype)
        else:
            # fused head: 128->128 + LeakyReLU, then 128->2 zero-padded to 128
            # lanes so the store stays dense (sliced to [:, :2] in JAX glue).
            hh = _leaky(jnp.dot(acc_bf, w1_ref[...],
                                preferred_element_type=jnp.float32)
                        + b1_ref[...])
            o_ref[...] = (jnp.dot(hh.astype(jnp.bfloat16), w2_ref[...],
                                  preferred_element_type=jnp.float32)
                          + b2_ref[...])


def rgcn_conv(adj, h, x, w_root, b2, *, tm, tk, mode, extras):
    num_rel, n, _ = adj.shape
    emb = x.shape[1]
    grid = (n // tm, n // tk)

    in_specs = [
        pl.BlockSpec((num_rel, tm, tk), lambda i, k: (0, i, k)),    # A tiles
        pl.BlockSpec((num_rel, tk, emb), lambda i, k: (0, k, 0)),   # H tiles
        pl.BlockSpec((tm, emb), lambda i, k: (i, 0)),               # x (root)
        pl.BlockSpec(w_root.shape, lambda i, k: (0, 0)),            # W_root
        pl.BlockSpec(b2.shape, lambda i, k: (0, 0)),                # bias
    ]
    inputs = [adj, h, x, w_root, b2]
    for e in extras:
        in_specs.append(pl.BlockSpec(e.shape, lambda i, k, nd=e.ndim: (0,) * nd))
        inputs.append(e)

    if mode == "hidden":
        out_shape = (jax.ShapeDtypeStruct((n, emb), jnp.bfloat16),
                     jax.ShapeDtypeStruct((num_rel, n, emb), jnp.bfloat16))
        out_specs = (pl.BlockSpec((tm, emb), lambda i, k: (i, 0)),
                     pl.BlockSpec((num_rel, tm, emb), lambda i, k: (0, i, 0)))
    else:
        out_shape = jax.ShapeDtypeStruct((n, emb), jnp.float32)
        out_specs = pl.BlockSpec((tm, emb), lambda i, k: (i, 0))

    kernel = functools.partial(_rgcn_conv_kernel, num_rel=num_rel, mode=mode)
    return pl.pallas_call(
        kernel,
        out_shape=out_shape,
        grid=grid,
        in_specs=in_specs,
        out_specs=out_specs,
        scratch_shapes=[pltpu.VMEM((tm, emb), jnp.float32)],
        compiler_params=pltpu.CompilerParams(
            dimension_semantics=("parallel", "arbitrary"),
            vmem_limit_bytes=_VMEM_LIMIT),
    )(*inputs)


# ------------------------------ model glue ------------------------------------

def build_normalized_adjacency(edge_index, edge_type, num_nodes, num_relations):
    """Dense, per-relation, mean-normalized adjacency (PyG RGCNConv aggr='mean').

    edge_index[0] = source, edge_index[1] = target; messages flow src -> dst.
    Rows with zero in-degree for a relation contribute 0 (matches scatter-mean).
    Stored in bf16 (MXU operand) — accumulation stays f32 inside the kernel.
    """
    src, dst = edge_index[0], edge_index[1]
    adjs = []
    for r in range(num_relations):
        w = (edge_type == r).astype(jnp.float32)
        a = jnp.zeros((num_nodes, num_nodes), jnp.float32).at[dst, src].add(w)
        deg = a.sum(axis=1, keepdims=True)
        a = a / jnp.maximum(deg, 1.0)
        adjs.append(a)
    return jnp.stack(adjs, axis=0).astype(jnp.bfloat16)


def init_params(key, des_size=768, tweet_size=768, num_prop_size=5,
                cat_prop_size=3, emb=EMB, num_relations=NUM_REL):
    q = emb // 4
    keys = jax.random.split(key, 16)

    def lin(k, fan_in, fan_out):
        scale = 1.0 / jnp.sqrt(jnp.float32(fan_in))
        kw, kb = jax.random.split(k)
        w = jax.random.uniform(kw, (fan_in, fan_out), jnp.float32, -scale, scale)
        b = jax.random.uniform(kb, (fan_out,), jnp.float32, -scale, scale)
        return w, b

    p = {}
    p["w_des"], p["b_des"] = lin(keys[0], des_size, q)
    p["w_tweet"], p["b_tweet"] = lin(keys[1], tweet_size, q)
    p["w_num"], p["b_num"] = lin(keys[2], num_prop_size, q)
    p["w_cat"], p["b_cat"] = lin(keys[3], cat_prop_size, q)
    p["w_in"], p["b_in"] = lin(keys[4], emb, emb)
    # RGCNConv params: per-relation weight, root weight, bias (shared between
    # the two conv applications, exactly like applying self.rgcn twice).
    p["w_rel"] = jax.random.normal(keys[5], (num_relations, emb, emb),
                                   jnp.float32) * 0.05
    p["w_root"] = jax.random.normal(keys[6], (emb, emb), jnp.float32) * 0.05
    p["b_rgcn"] = jnp.zeros((emb,), jnp.float32)
    p["w_o1"], p["b_o1"] = lin(keys[7], emb, emb)
    p["w_o2"], p["b_o2"] = lin(keys[8], emb, 2)
    return p


def rgcn_forward(params, des, tweet, num_prop, cat_prop, edge_index, edge_type,
                 num_relations=NUM_REL):
    n = des.shape[0]
    emb = EMB
    q = emb // 4
    n_pad = _round_up(n, 256)
    tm, tk = _pick_tiles(n_pad)
    bf = jnp.bfloat16

    def pad_rows(a):
        return a if n_pad == n else jnp.pad(a, ((0, n_pad - n), (0, 0)))

    # bf16 inputs halve the dominant des/tweet HBM streams and give native MXU.
    des_p = pad_rows(des).astype(bf)
    tw_p = pad_rows(tweet).astype(bf)
    # Merge the two tiny property projections into one (N, 8) input against a
    # block-diagonal (8, 64) weight (one dot instead of two fill-bound dots).
    nc_in = pad_rows(jnp.concatenate([num_prop, cat_prop], axis=1))
    ns, cs = num_prop.shape[1], cat_prop.shape[1]
    w_nc = jnp.zeros((ns + cs, 2 * q), jnp.float32)
    w_nc = w_nc.at[:ns, :q].set(params["w_num"]).at[ns:, q:].set(params["w_cat"])
    b_nc = jnp.concatenate([params["b_num"], params["b_cat"]]).reshape(1, -1)

    w_rel = params["w_rel"].astype(bf)
    prepped = {
        "w_des": params["w_des"].astype(bf),
        "b_des": params["b_des"].reshape(1, -1),
        "w_tweet": params["w_tweet"].astype(bf),
        "b_tweet": params["b_tweet"].reshape(1, -1),
        "w_nc": w_nc, "b_nc": b_nc,
        "w_in": params["w_in"].astype(bf),
        "b_in": params["b_in"].reshape(1, -1),
        "w_rel": w_rel,
    }

    # Padded nodes have no edges: their adjacency rows/cols are zero, so they
    # cannot contaminate real rows; their outputs are sliced off below.
    adj = build_normalized_adjacency(edge_index, edge_type, n_pad, num_relations)

    w_root = params["w_root"].astype(bf)
    b_rgcn = params["b_rgcn"].reshape(1, emb)

    # Kernel A: input projections + LeakyReLU + input layer + H for conv #1.
    x0, h1 = fused_input(des_p, tw_p, nc_in, prepped, tm=tm)

    # Conv #1 (finalize emits bf16 x1 and H for conv #2 from the resident acc).
    # TODO(synk): F.dropout between the two convs is stochastic; inference
    # (identity) is implemented here, which is what allows fusing H2 into conv #1.
    x1, h2 = rgcn_conv(adj, h1, x0, w_root, b_rgcn, tm=tm, tk=tk,
                       mode="hidden", extras=(w_rel,))

    # Conv #2 with the fused head; x2 never round-trips HBM.
    w_o1 = params["w_o1"].astype(bf)
    b_o1 = params["b_o1"].reshape(1, emb)
    w_o2_pad = jnp.zeros((emb, emb), jnp.float32).at[:, :2].set(
        params["w_o2"]).astype(bf)
    b_o2_pad = jnp.zeros((1, emb), jnp.float32).at[0, :2].set(params["b_o2"])
    logits_pad = rgcn_conv(adj, h2, x1, w_root, b_rgcn, tm=tm, tk=tk,
                           mode="head",
                           extras=(w_o1, b_o1, w_o2_pad, b_o2_pad))
    return logits_pad[:n, :2]


# --------------------------------- main ----------------------------------------

if __name__ == "__main__":
    N = 384           # graph nodes (padded internally to 512 -> two row tiles)
    E = 1024          # edges

    root = jax.random.PRNGKey(0)
    k_des, k_tw, k_np, k_cp, k_src, k_dst, k_et, k_param = jax.random.split(root, 8)

    des = jax.random.normal(k_des, (N, 768), jnp.float32)
    tweet = jax.random.normal(k_tw, (N, 768), jnp.float32)
    num_prop = jax.random.normal(k_np, (N, 5), jnp.float32)
    cat_prop = jax.random.normal(k_cp, (N, 3), jnp.float32)
    src = jax.random.randint(k_src, (E,), 0, N, jnp.int32)
    dst = jax.random.randint(k_dst, (E,), 0, N, jnp.int32)
    edge_index = jnp.stack([src, dst], axis=0)               # (2, E)
    edge_type = jax.random.randint(k_et, (E,), 0, NUM_REL, jnp.int32)

    params = init_params(k_param)

    out = rgcn_forward(params, des, tweet, num_prop, cat_prop,
                       edge_index, edge_type)
    out = jax.block_until_ready(out)
    assert out.shape == (N, 2) and out.dtype == jnp.float32
    assert bool(jnp.all(jnp.isfinite(out)))
    print("KERNEL_OK")
</pallas_src>

<mosaic_0001>
module attributes {stable_mosaic.version = 11 : i64} {
  func.func @_fused_input_kernel(%arg0: i32, %arg1: memref<256x768xbf16, #tpu.memory_space<vmem>>, %arg2: memref<256x768xbf16, #tpu.memory_space<vmem>>, %arg3: memref<256x8xf32, #tpu.memory_space<vmem>>, %arg4: memref<768x32xbf16, #tpu.memory_space<vmem>>, %arg5: memref<1x32xf32, #tpu.memory_space<vmem>>, %arg6: memref<768x32xbf16, #tpu.memory_space<vmem>>, %arg7: memref<1x32xf32, #tpu.memory_space<vmem>>, %arg8: memref<8x64xf32, #tpu.memory_space<vmem>>, %arg9: memref<1x64xf32, #tpu.memory_space<vmem>>, %arg10: memref<128x128xbf16, #tpu.memory_space<vmem>>, %arg11: memref<1x128xf32, #tpu.memory_space<vmem>>, %arg12: memref<2x128x128xbf16, #tpu.memory_space<vmem>>, %arg13: memref<256x128xbf16, #tpu.memory_space<vmem>>, %arg14: memref<2x256x128xbf16, #tpu.memory_space<vmem>>) attributes {dimension_semantics = [#tpu.dimension_semantics<parallel>], iteration_bounds = array<i64: 2>, scalar_prefetch = 0 : i64, scratch_operands = 0 : i64, tpu.core_type = #tpu.core_type<tc>, window_params = [{transform_indices = @transform_0, window_bounds = array<i64: 256, 768>}, {transform_indices = @transform_1, window_bounds = array<i64: 256, 768>}, {transform_indices = @transform_2, window_bounds = array<i64: 256, 8>}, {pipeline_mode = #tpu.pipeline_mode<synchronous>, transform_indices = @transform_3, window_bounds = array<i64: 768, 32>}, {pipeline_mode = #tpu.pipeline_mode<synchronous>, transform_indices = @transform_4, window_bounds = array<i64: 1, 32>}, {pipeline_mode = #tpu.pipeline_mode<synchronous>, transform_indices = @transform_5, window_bounds = array<i64: 768, 32>}, {pipeline_mode = #tpu.pipeline_mode<synchronous>, transform_indices = @transform_6, window_bounds = array<i64: 1, 32>}, {pipeline_mode = #tpu.pipeline_mode<synchronous>, transform_indices = @transform_7, window_bounds = array<i64: 8, 64>}, {pipeline_mode = #tpu.pipeline_mode<synchronous>, transform_indices = @transform_8, window_bounds = array<i64: 1, 64>}, {pipeline_mode = #tpu.pipeline_mode<synchronous>, transform_indices = @transform_9, window_bounds = array<i64: 128, 128>}, {pipeline_mode = #tpu.pipeline_mode<synchronous>, transform_indices = @transform_10, window_bounds = array<i64: 1, 128>}, {pipeline_mode = #tpu.pipeline_mode<synchronous>, transform_indices = @transform_11, window_bounds = array<i64: 2, 128, 128>}, {transform_indices = @transform_12, window_bounds = array<i64: 256, 128>}, {transform_indices = @transform_13, window_bounds = array<i64: 2, 256, 128>}]} {
    %c0 = arith.constant 0 : index
    %c0_0 = arith.constant 0 : index
    %0 = vector.load %arg1[%c0, %c0_0] : memref<256x768xbf16, #tpu.memory_space<vmem>>, vector<256x768xbf16>
    %c0_1 = arith.constant 0 : index
    %c0_2 = arith.constant 0 : index
    %1 = vector.load %arg4[%c0_1, %c0_2] : memref<768x32xbf16, #tpu.memory_space<vmem>>, vector<768x32xbf16>
    %cst = arith.constant dense<0.000000e+00> : vector<256x32xf32>
    %2 = tpu.matmul %0, %1, %cst {dimension_numbers = #tpu.dot_dimension_numbers<[1], [0], [0], [1], [0, 0, 1, 1], [], []>} : vector<256x768xbf16>, vector<768x32xbf16>, vector<256x32xf32> -> vector<256x32xf32>
    %c0_3 = arith.constant 0 : index
    %c0_4 = arith.constant 0 : index
    %3 = vector.load %arg5[%c0_3, %c0_4] : memref<1x32xf32, #tpu.memory_space<vmem>>, vector<1x32xf32>
    %4 = vector.broadcast %3 : vector<1x32xf32> to vector<256x32xf32>
    %5 = arith.addf %2, %4 : vector<256x32xf32>
    %cst_5 = arith.constant 0.000000e+00 : f32
    %6 = vector.broadcast %cst_5 : f32 to vector<256x32xf32>
    %7 = arith.cmpf ogt, %5, %6 : vector<256x32xf32>
    %cst_6 = arith.constant 0.00999999977 : f32
    %8 = vector.broadcast %cst_6 : f32 to vector<256x32xf32>
    %9 = arith.mulf %8, %5 : vector<256x32xf32>
    %10 = arith.select %7, %5, %9 : vector<256x32xi1>, vector<256x32xf32>
    %c0_7 = arith.constant 0 : index
    %c0_8 = arith.constant 0 : index
    %11 = vector.load %arg2[%c0_7, %c0_8] : memref<256x768xbf16, #tpu.memory_space<vmem>>, vector<256x768xbf16>
    %c0_9 = arith.constant 0 : index
    %c0_10 = arith.constant 0 : index
    %12 = vector.load %arg6[%c0_9, %c0_10] : memref<768x32xbf16, #tpu.memory_space<vmem>>, vector<768x32xbf16>
    %cst_11 = arith.constant dense<0.000000e+00> : vector<256x32xf32>
    %13 = tpu.matmul %11, %12, %cst_11 {dimension_numbers = #tpu.dot_dimension_numbers<[1], [0], [0], [1], [0, 0, 1, 1], [], []>} : vector<256x768xbf16>, vector<768x32xbf16>, vector<256x32xf32> -> vector<256x32xf32>
    %c0_12 = arith.constant 0 : index
    %c0_13 = arith.constant 0 : index
    %14 = vector.load %arg7[%c0_12, %c0_13] : memref<1x32xf32, #tpu.memory_space<vmem>>, vector<1x32xf32>
    %15 = vector.broadcast %14 : vector<1x32xf32> to vector<256x32xf32>
    %16 = arith.addf %13, %15 : vector<256x32xf32>
    %cst_14 = arith.constant 0.000000e+00 : f32
    %17 = vector.broadcast %cst_14 : f32 to vector<256x32xf32>
    %18 = arith.cmpf ogt, %16, %17 : vector<256x32xf32>
    %cst_15 = arith.constant 0.00999999977 : f32
    %19 = vector.broadcast %cst_15 : f32 to vector<256x32xf32>
    %20 = arith.mulf %19, %16 : vector<256x32xf32>
    %21 = arith.select %18, %16, %20 : vector<256x32xi1>, vector<256x32xf32>
    %c0_16 = arith.constant 0 : index
    %c0_17 = arith.constant 0 : index
    %22 = vector.load %arg3[%c0_16, %c0_17] : memref<256x8xf32, #tpu.memory_space<vmem>>, vector<256x8xf32>
    %c0_18 = arith.constant 0 : index
    %c0_19 = arith.constant 0 : index
    %23 = vector.load %arg8[%c0_18, %c0_19] : memref<8x64xf32, #tpu.memory_space<vmem>>, vector<8x64xf32>
    %cst_20 = arith.constant dense<0.000000e+00> : vector<256x64xf32>
    %24 = tpu.matmul %22, %23, %cst_20 {dimension_numbers = #tpu.dot_dimension_numbers<[1], [0], [0], [1], [0, 0, 1, 1], [], []>} : vector<256x8xf32>, vector<8x64xf32>, vector<256x64xf32> -> vector<256x64xf32>
    %c0_21 = arith.constant 0 : index
    %c0_22 = arith.constant 0 : index
    %25 = vector.load %arg9[%c0_21, %c0_22] : memref<1x64xf32, #tpu.memory_space<vmem>>, vector<1x64xf32>
    %26 = vector.broadcast %25 : vector<1x64xf32> to vector<256x64xf32>
    %27 = arith.addf %24, %26 : vector<256x64xf32>
    %cst_23 = arith.constant 0.000000e+00 : f32
    %28 = vector.broadcast %cst_23 : f32 to vector<256x64xf32>
    %29 = arith.cmpf ogt, %27, %28 : vector<256x64xf32>
    %cst_24 = arith.constant 0.00999999977 : f32
    %30 = vector.broadcast %cst_24 : f32 to vector<256x64xf32>
    %31 = arith.mulf %30, %27 : vector<256x64xf32>
    %32 = arith.select %29, %27, %31 : vector<256x64xi1>, vector<256x64xf32>
    %c0_25 = arith.constant 0 : index
    %c0_26 = arith.constant 0 : index
    %33 = vector.load %arg10[%c0_25, %c0_26] : memref<128x128xbf16, #tpu.memory_space<vmem>>, vector<128x128xbf16>
    %34 = arith.truncf %10 : vector<256x32xf32> to vector<256x32xbf16>
    %35 = vector.extract_strided_slice %33 {offsets = [0, 0], sizes = [32, 128], strides = [1, 1]} : vector<128x128xbf16> to vector<32x128xbf16>
    %cst_27 = arith.constant dense<0.000000e+00> : vector<256x128xf32>
    %36 = tpu.matmul %34, %35, %cst_27 {dimension_numbers = #tpu.dot_dimension_numbers<[1], [0], [0], [1], [0, 0, 1, 1], [], []>} : vector<256x32xbf16>, vector<32x128xbf16>, vector<256x128xf32> -> vector<256x128xf32>
    %37 = arith.truncf %21 : vector<256x32xf32> to vector<256x32xbf16>
    %38 = vector.extract_strided_slice %33 {offsets = [32, 0], sizes = [32, 128], strides = [1, 1]} : vector<128x128xbf16> to vector<32x128xbf16>
    %cst_28 = arith.constant dense<0.000000e+00> : vector<256x128xf32>
    %39 = tpu.matmul %37, %38, %cst_28 {dimension_numbers = #tpu.dot_dimension_numbers<[1], [0], [0], [1], [0, 0, 1, 1], [], []>} : vector<256x32xbf16>, vector<32x128xbf16>, vector<256x128xf32> -> vector<256x128xf32>
    %40 = arith.addf %36, %39 : vector<256x128xf32>
    %41 = arith.truncf %32 : vector<256x64xf32> to vector<256x64xbf16>
    %42 = vector.extract_strided_slice %33 {offsets = [64, 0], sizes = [64, 128], strides = [1, 1]} : vector<128x128xbf16> to vector<64x128xbf16>
    %cst_29 = arith.constant dense<0.000000e+00> : vector<256x128xf32>
    %43 = tpu.matmul %41, %42, %cst_29 {dimension_numbers = #tpu.dot_dimension_numbers<[1], [0], [0], [1], [0, 0, 1, 1], [], []>} : vector<256x64xbf16>, vector<64x128xbf16>, vector<256x128xf32> -> vector<256x128xf32>
    %44 = arith.addf %40, %43 : vector<256x128xf32>
    %c0_30 = arith.constant 0 : index
    %c0_31 = arith.constant 0 : index
    %45 = vector.load %arg11[%c0_30, %c0_31] : memref<1x128xf32, #tpu.memory_space<vmem>>, vector<1x128xf32>
    %46 = vector.broadcast %45 : vector<1x128xf32> to vector<256x128xf32>
    %47 = arith.addf %44, %46 : vector<256x128xf32>
    %cst_32 = arith.constant 0.000000e+00 : f32
    %48 = vector.broadcast %cst_32 : f32 to vector<256x128xf32>
    %49 = arith.cmpf ogt, %47, %48 : vector<256x128xf32>
    %cst_33 = arith.constant 0.00999999977 : f32
    %50 = vector.broadcast %cst_33 : f32 to vector<256x128xf32>
    %51 = arith.mulf %50, %47 : vector<256x128xf32>
    %52 = arith.select %49, %47, %51 : vector<256x128xi1>, vector<256x128xf32>
    %53 = arith.truncf %52 : vector<256x128xf32> to vector<256x128xbf16>
    %c0_34 = arith.constant 0 : index
    %c0_35 = arith.constant 0 : index
    %54 = vector.load %arg13[%c0_34, %c0_35] : memref<256x128xbf16, #tpu.memory_space<vmem>>, vector<256x128xbf16>
    tpu.vector_store %arg13[%c0_34, %c0_35], %53 {strides = array<i32>} : memref<256x128xbf16, #tpu.memory_space<vmem>>, vector<256x128xbf16>,
    %c0_36 = arith.constant 0 : index
    %c0_37 = arith.constant 0 : index
    %c0_38 = arith.constant 0 : index
    %55 = vector.load %arg12[%c0_36, %c0_37, %c0_38] : memref<2x128x128xbf16, #tpu.memory_space<vmem>>, vector<1x128x128xbf16>
    %56 = vector.shape_cast %55 : vector<1x128x128xbf16> to vector<128x128xbf16>
    %cst_39 = arith.constant dense<0.000000e+00> : vector<256x128xf32>
    %57 = tpu.matmul %53, %56, %cst_39 {dimension_numbers = #tpu.dot_dimension_numbers<[1], [0], [0], [1], [0, 0, 1, 1], [], []>} : vector<256x128xbf16>, vector<128x128xbf16>, vector<256x128xf32> -> vector<256x128xf32>
    %58 = arith.truncf %57 : vector<256x128xf32> to vector<256x128xbf16>
    %c0_40 = arith.constant 0 : index
    %c0_41 = arith.constant 0 : index
    %c0_42 = arith.constant 0 : index
    %59 = vector.load %arg14[%c0_40, %c0_41, %c0_42] : memref<2x256x128xbf16, #tpu.memory_space<vmem>>, vector<1x256x128xbf16>
    %60 = vector.shape_cast %59 : vector<1x256x128xbf16> to vector<256x128xbf16>
    %61 = vector.shape_cast %58 : vector<256x128xbf16> to vector<1x256x128xbf16>
    tpu.vector_store %arg14[%c0_40, %c0_41, %c0_42], %61 {strides = array<i32>} : memref<2x256x128xbf16, #tpu.memory_space<vmem>>, vector<1x256x128xbf16>,
    %c1 = arith.constant 1 : index
    %c0_43 = arith.constant 0 : index
    %c0_44 = arith.constant 0 : index
    %62 = vector.load %arg12[%c1, %c0_43, %c0_44] : memref<2x128x128xbf16, #tpu.memory_space<vmem>>, vector<1x128x128xbf16>
    %63 = vector.shape_cast %62 : vector<1x128x128xbf16> to vector<128x128xbf16>
    %cst_45 = arith.constant dense<0.000000e+00> : vector<256x128xf32>
    %64 = tpu.matmul %53, %63, %cst_45 {dimension_numbers = #tpu.dot_dimension_numbers<[1], [0], [0], [1], [0, 0, 1, 1], [], []>} : vector<256x128xbf16>, vector<128x128xbf16>, vector<256x128xf32> -> vector<256x128xf32>
    %65 = arith.truncf %64 : vector<256x128xf32> to vector<256x128xbf16>
    %c1_46 = arith.constant 1 : index
    %c0_47 = arith.constant 0 : index
    %c0_48 = arith.constant 0 : index
    %66 = vector.load %arg14[%c1_46, %c0_47, %c0_48] : memref<2x256x128xbf16, #tpu.memory_space<vmem>>, vector<1x256x128xbf16>
    %67 = vector.shape_cast %66 : vector<1x256x128xbf16> to vector<256x128xbf16>
    %68 = vector.shape_cast %65 : vector<256x128xbf16> to vector<1x256x128xbf16>
    tpu.vector_store %arg14[%c1_46, %c0_47, %c0_48], %68 {strides = array<i32>} : memref<2x256x128xbf16, #tpu.memory_space<vmem>>, vector<1x256x128xbf16>,
    return
  }
  func.func @transform_0(%arg0: i32) -> (i32, i32) {
    %c0_i32 = arith.constant 0 : i32
    %c0_i32_0 = arith.constant 0 : i32
    return %arg0, %c0_i32 : i32, i32
  }
  func.func @transform_1(%arg0: i32) -> (i32, i32) {
    %c0_i32 = arith.constant 0 : i32
    %c0_i32_0 = arith.constant 0 : i32
    return %arg0, %c0_i32 : i32, i32
  }
  func.func @transform_2(%arg0: i32) -> (i32, i32) {
    %c0_i32 = arith.constant 0 : i32
    %c0_i32_0 = arith.constant 0 : i32
    return %arg0, %c0_i32 : i32, i32
  }
  func.func @transform_3(%arg0: i32) -> (i32, i32) {
    %c0_i32 = arith.constant 0 : i32
    %c0_i32_0 = arith.constant 0 : i32
    %c0_i32_1 = arith.constant 0 : i32
    return %c0_i32, %c0_i32_0 : i32, i32
  }
  func.func @transform_4(%arg0: i32) -> (i32, i32) {
    %c0_i32 = arith.constant 0 : i32
    %c0_i32_0 = arith.constant 0 : i32
    %c0_i32_1 = arith.constant 0 : i32
    return %c0_i32, %c0_i32_0 : i32, i32
  }
  func.func @transform_5(%arg0: i32) -> (i32, i32) {
    %c0_i32 = arith.constant 0 : i32
    %c0_i32_0 = arith.constant 0 : i32
    %c0_i32_1 = arith.constant 0 : i32
    return %c0_i32, %c0_i32_0 : i32, i32
  }
  func.func @transform_6(%arg0: i32) -> (i32, i32) {
    %c0_i32 = arith.constant 0 : i32
    %c0_i32_0 = arith.constant 0 : i32
    %c0_i32_1 = arith.constant 0 : i32
    return %c0_i32, %c0_i32_0 : i32, i32
  }
  func.func @transform_7(%arg0: i32) -> (i32, i32) {
    %c0_i32 = arith.constant 0 : i32
    %c0_i32_0 = arith.constant 0 : i32
    %c0_i32_1 = arith.constant 0 : i32
    return %c0_i32, %c0_i32_0 : i32, i32
  }
  func.func @transform_8(%arg0: i32) -> (i32, i32) {
    %c0_i32 = arith.constant 0 : i32
    %c0_i32_0 = arith.constant 0 : i32
    %c0_i32_1 = arith.constant 0 : i32
    return %c0_i32, %c0_i32_0 : i32, i32
  }
  func.func @transform_9(%arg0: i32) -> (i32, i32) {
    %c0_i32 = arith.constant 0 : i32
    %c0_i32_0 = arith.constant 0 : i32
    %c0_i32_1 = arith.constant 0 : i32
    return %c0_i32, %c0_i32_0 : i32, i32
  }
  func.func @transform_10(%arg0: i32) -> (i32, i32) {
    %c0_i32 = arith.constant 0 : i32
    %c0_i32_0 = arith.constant 0 : i32
    %c0_i32_1 = arith.constant 0 : i32
    return %c0_i32, %c0_i32_0 : i32, i32
  }
  func.func @transform_11(%arg0: i32) -> (i32, i32, i32) {
    %c0_i32 = arith.constant 0 : i32
    %c0_i32_0 = arith.constant 0 : i32
    %c0_i32_1 = arith.constant 0 : i32
    %c0_i32_2 = arith.constant 0 : i32
    return %c0_i32, %c0_i32_0, %c0_i32_1 : i32, i32, i32
  }
  func.func @transform_12(%arg0: i32) -> (i32, i32) {
    %c0_i32 = arith.constant 0 : i32
    %c0_i32_0 = arith.constant 0 : i32
    return %arg0, %c0_i32 : i32, i32
  }
  func.func @transform_13(%arg0: i32) -> (i32, i32, i32) {
    %c0_i32 = arith.constant 0 : i32
    %c0_i32_0 = arith.constant 0 : i32
    %c0_i32_1 = arith.constant 0 : i32
    return %c0_i32, %arg0, %c0_i32_0 : i32, i32, i32
  }
}

</mosaic_0001>

<llo_original>
// kernel: tpu_custom_call.1
$region0: #{tpu_custom_call.1}
  #allocation0 [shape = 'u32[]', space=smem, size = 0x4, offset = 0x4, fixed_abs, tag = 'smem constant byte address 0x4 - core index']
  #allocation1 [shape = 'u32[144,128]{1,0:T(1,128)}', space=vmem, size = 0x12000, scoped, tag = 'internal scratch']
  #allocation10 [shape = 's32[]', space=sflag, size = 0x4, offset = 0, fixed_abs, tag = 'sflag constant byte address 0x0 - dummy sync flag']
  %s0 = inlined_call_operand.hbm [shape: bf16[512,768], index: 0, kind: input, shape index: {}]
  %s1 = inlined_call_operand.hbm [shape: bf16[512,768], index: 1, kind: input, shape index: {}]
  %s2 = inlined_call_operand.vmem [shape: f32[512,8], index: 2, kind: input, shape index: {}]
  %s3 = inlined_call_operand.vmem [shape: bf16[768,32], index: 3, kind: input, shape index: {}]
  %s4 = inlined_call_operand.vmem [shape: f32[1,32], index: 4, kind: input, shape index: {}]
  %s5 = inlined_call_operand.vmem [shape: bf16[768,32], index: 5, kind: input, shape index: {}]
  %s6 = inlined_call_operand.vmem [shape: f32[1,32], index: 6, kind: input, shape index: {}]
  %s7 = inlined_call_operand.vmem [shape: f32[8,64], index: 7, kind: input, shape index: {}]
  %s8 = inlined_call_operand.vmem [shape: f32[1,64], index: 8, kind: input, shape index: {}]
  %s9 = inlined_call_operand.vmem [shape: bf16[128,128], index: 9, kind: input, shape index: {}]
  %s10 = inlined_call_operand.vmem [shape: f32[1,128], index: 10, kind: input, shape index: {}]
  %s11 = inlined_call_operand.vmem [shape: bf16[2,128,128], index: 11, kind: input, shape index: {}]
  %s12 = inlined_call_operand.hbm [shape: bf16[512,128], index: 12, kind: output, shape index: {0}]
  %s13 = inlined_call_operand.hbm [shape: bf16[2,512,128], index: 13, kind: output, shape index: {1}]
  %14 = xla_tuple %s12, %s13
  %s15 = sld [smem:[#allocation0]]
  $region97: #{tpu_custom_call.1} parent=0
    _
  %s17 = ssub.s32 1, %s15
  %s18 = scalar_select 0, %s17, %s15
  $region1: #{tpu_custom_call.1} parent=0
    #allocation2 [shape = 'u8[786432]{0}', space=vmem, size = 0xc0000, scoped, tag = 'input window, operand 0']
    #allocation3 [shape = 's32[2]{0}', space=sflag, size = 0x8, scoped, tag = 'scoped memory for tpu_custom_call.1']
    #allocation4 [shape = 's32[2]{0}', space=sflag, size = 0x8, scoped, tag = 'scoped memory for tpu_custom_call.1']
    #allocation5 [shape = 'u8[786432]{0}', space=vmem, size = 0xc0000, scoped, tag = 'input window, operand 1']
    #allocation6 [shape = 's32[2]{0}', space=sflag, size = 0x8, scoped, tag = 'scoped memory for tpu_custom_call.1']
    #allocation7 [shape = 'u8[131072]{0}', space=vmem, size = 0x20000, scoped, tag = 'output window, operand 0']
    #allocation8 [shape = 'u8[262144]{0}', space=vmem, size = 0x40000, scoped, tag = 'output window, operand 1']
    #allocation9 [shape = 's32[2]{0}', space=sflag, size = 0x8, scoped, tag = 'scoped memory for tpu_custom_call.1']
    %19 = vsyncpa [#allocation3], 0
    %s20 = scalar_lea.sflag [#allocation3], 1
    %21 = vsyncpa %s20, 0
    %22 = vsyncpa [#allocation6], 0
    %s23 = scalar_lea.sflag [#allocation6], 1
    %24 = vsyncpa %s23, 0
    %25 = vsyncpa [#allocation4], 0
    %s26 = scalar_lea.sflag [#allocation4], 1
    %27 = vsyncpa %s26, 0
    %28 = vsyncpa [#allocation9], 0
    %s29 = scalar_lea.sflag [#allocation9], 1
    %30 = vsyncpa %s29, 0
    loop: start=0, step=1, limit=4
    $region2: #{tpu_custom_call.1} parent=1 // loop_pre_header
      _
    $region3: #{tpu_custom_call.1} parent=1 // loop_header
      %s32 = sphi 0, %s36
      %p33 = scmp.ge.s32.totalorder %s32, 4
      %s42 = sphi 0, %s44
      %s45 = sphi 0, %s42
      %s46 = sphi 0, %s45
      %s62 = sphi 0, %s46
      %s68 = sphi 0, %s70
      %s71 = sphi 0, %s68
      %s72 = sphi 0, %s71
      %s88 = sphi 0, %s72
      %s94 = sphi 0, %s96
      %s97 = sphi 0, %s94
      %s98 = sphi 0, %s97
      %s114 = sphi 0, %s98
      %s118 = sphi 0, %s118
      %s120 = sphi 0, %s118
      %s121 = sphi 0, %s120
      %s135 = sphi 0, %s121
      %s139 = sphi 0, %s139
      %s141 = sphi 0, %s139
      %s142 = sphi 0, %s141
      %s156 = sphi 0, %s142
      %s160 = sphi 0, %s160
      %s162 = sphi 0, %s160
      %s163 = sphi 0, %s162
      %s177 = sphi 0, %s163
      %s181 = sphi 0, %s181
      %s183 = sphi 0, %s181
      %s184 = sphi 0, %s183
      %s198 = sphi 0, %s184
      %s202 = sphi 0, %s202
      %s204 = sphi 0, %s202
      %s205 = sphi 0, %s204
      %s219 = sphi 0, %s205
      %s223 = sphi 0, %s223
      %s225 = sphi 0, %s223
      %s226 = sphi 0, %s225
      %s240 = sphi 0, %s226
      %s244 = sphi 0, %s244
      %s246 = sphi 0, %s244
      %s247 = sphi 0, %s246
      %s261 = sphi 0, %s247
      %s265 = sphi 0, %s265
      %s267 = sphi 0, %s265
      %s268 = sphi 0, %s267
      %s282 = sphi 0, %s268
      %s286 = sphi 0, %s286
      %s288 = sphi 0, %s286
      %s289 = sphi 0, %s288
      %s303 = sphi 0, %s289
      %s309 = sphi 0, %s311
      %s312 = sphi 0, %s309
      %s313 = sphi 0, %s312
      %s329 = sphi 0, %s313
      %s335 = sphi 0, %s337
      %s338 = sphi 0, %s335
      %s339 = sphi 0, %s338
      %s355 = sphi 0, %s339
    $region4: #{tpu_custom_call.1} parent=1 // loop_header_branch
      %35 = sbr.rel (%p33) target = $region8
    $region5: #{tpu_custom_call.1} parent=1 // loop_body
      %s37 = ssub.s32 %s32, 1
      %s38 = ssub.s32 %s32, 2
      %s39 = sadd.s32 %s32, 1
      %s40 = ssub.s32 %s32, %s39
      %p41 = scmp.eq.s32.totalorder %s40, 0
      %s43 = sadd.s32 %s42, 1
      %s44 = scalar_select %p41, %s42, %s43
      %p47 = pneg %p41
      %p48 = scmp.eq.s32.totalorder %s32, 1
      %p49 = por %p47, %p48
      %p50 = scmp.ne.s32.totalorder %s42, %s45
      %p51 = scmp.eq.s32.totalorder %s32, 0
      %p52 = por %p50, %p51
      %p53 = scmp.ne.s32.totalorder %s42, %s45
      %p54 = scmp.eq.s32.totalorder %s37, 1
      %p55 = por %p53, %p54
      %p56 = scmp.ne.s32.totalorder %s45, %s46
      %p57 = scmp.eq.s32.totalorder %s37, 0
      %p58 = por %p56, %p57
      %p59 = scmp.ne.s32.totalorder %s45, %s46
      %p60 = scmp.eq.s32.totalorder %s38, 1
      %p61 = por %p59, %p60
      %p63 = scmp.ne.s32.totalorder %s46, %s62
      %p64 = scmp.eq.s32.totalorder %s38, 0
      %p65 = por %p63, %p64
      %s66 = ssub.s32 %s32, %s39
      %p67 = scmp.eq.s32.totalorder %s66, 0
      %s69 = sadd.s32 %s68, 1
      %s70 = scalar_select %p67, %s68, %s69
      %p73 = pneg %p67
      %p74 = scmp.eq.s32.totalorder %s32, 1
      %p75 = por %p73, %p74
      %p76 = scmp.ne.s32.totalorder %s68, %s71
      %p77 = scmp.eq.s32.totalorder %s32, 0
      %p78 = por %p76, %p77
      %p79 = scmp.ne.s32.totalorder %s68, %s71
      %p80 = scmp.eq.s32.totalorder %s37, 1
      %p81 = por %p79, %p80
      %p82 = scmp.ne.s32.totalorder %s71, %s72
      %p83 = scmp.eq.s32.totalorder %s37, 0
      %p84 = por %p82, %p83
      %p85 = scmp.ne.s32.totalorder %s71, %s72
      %p86 = scmp.eq.s32.totalorder %s38, 1
      %p87 = por %p85, %p86
      %p89 = scmp.ne.s32.totalorder %s72, %s88
      %p90 = scmp.eq.s32.totalorder %s38, 0
      %p91 = por %p89, %p90
      %s92 = ssub.s32 %s32, %s39
      %p93 = scmp.eq.s32.totalorder %s92, 0
      %s95 = sadd.s32 %s94, 1
      %s96 = scalar_select %p93, %s94, %s95
      %p99 = pneg %p93
      %p100 = scmp.eq.s32.totalorder %s32, 1
      %p101 = por %p99, %p100
      %p102 = scmp.ne.s32.totalorder %s94, %s97
      %p103 = scmp.eq.s32.totalorder %s32, 0
      %p104 = por %p102, %p103
      %p105 = scmp.ne.s32.totalorder %s94, %s97
      %p106 = scmp.eq.s32.totalorder %s37, 1
      %p107 = por %p105, %p106
      %p108 = scmp.ne.s32.totalorder %s97, %s98
      %p109 = scmp.eq.s32.totalorder %s37, 0
      %p110 = por %p108, %p109
      %p111 = scmp.ne.s32.totalorder %s97, %s98
      %p112 = scmp.eq.s32.totalorder %s38, 1
      %p113 = por %p111, %p112
      %p115 = scmp.ne.s32.totalorder %s98, %s114
      %p116 = scmp.eq.s32.totalorder %s38, 0
      %p117 = por %p115, %p116
      %s119 = sadd.s32 %s118, 1
      %p122 = scmp.eq.s32.totalorder %s32, 1
      %p123 = scmp.ne.s32.totalorder %s118, %s120
      %p124 = scmp.eq.s32.totalorder %s32, 0
      %p125 = por %p123, %p124
      %p126 = scmp.ne.s32.totalorder %s118, %s120
      %p127 = scmp.eq.s32.totalorder %s37, 1
      %p128 = por %p126, %p127
      %p129 = scmp.ne.s32.totalorder %s120, %s121
      %p130 = scmp.eq.s32.totalorder %s37, 0
      %p131 = por %p129, %p130
      %p132 = scmp.ne.s32.totalorder %s120, %s121
      %p133 = scmp.eq.s32.totalorder %s38, 1
      %p134 = por %p132, %p133
      %p136 = scmp.ne.s32.totalorder %s121, %s135
      %p137 = scmp.eq.s32.totalorder %s38, 0
      %p138 = por %p136, %p137
      %s140 = sadd.s32 %s139, 1
      %p143 = scmp.eq.s32.totalorder %s32, 1
      %p144 = scmp.ne.s32.totalorder %s139, %s141
      %p145 = scmp.eq.s32.totalorder %s32, 0
      %p146 = por %p144, %p145
      %p147 = scmp.ne.s32.totalorder %s139, %s141
      %p148 = scmp.eq.s32.totalorder %s37, 1
      %p149 = por %p147, %p148
      %p150 = scmp.ne.s32.totalorder %s141, %s142
      %p151 = scmp.eq.s32.totalorder %s37, 0
      %p152 = por %p150, %p151
      %p153 = scmp.ne.s32.totalorder %s141, %s142
      %p154 = scmp.eq.s32.totalorder %s38, 1
      %p155 = por %p153, %p154
      %p157 = scmp.ne.s32.totalorder %s142, %s156
      %p158 = scmp.eq.s32.totalorder %s38, 0
      %p159 = por %p157, %p158
      %s161 = sadd.s32 %s160, 1
      %p164 = scmp.eq.s32.totalorder %s32, 1
      %p165 = scmp.ne.s32.totalorder %s160, %s162
      %p166 = scmp.eq.s32.totalorder %s32, 0
      %p167 = por %p165, %p166
      %p168 = scmp.ne.s32.totalorder %s160, %s162
      %p169 = scmp.eq.s32.totalorder %s37, 1
      %p170 = por %p168, %p169
      %p171 = scmp.ne.s32.totalorder %s162, %s163
      %p172 = scmp.eq.s32.totalorder %s37, 0
      %p173 = por %p171, %p172
      %p174 = scmp.ne.s32.totalorder %s162, %s163
      %p175 = scmp.eq.s32.totalorder %s38, 1
      %p176 = por %p174, %p175
      %p178 = scmp.ne.s32.totalorder %s163, %s177
      %p179 = scmp.eq.s32.totalorder %s38, 0
      %p180 = por %p178, %p179
      %s182 = sadd.s32 %s181, 1
      %p185 = scmp.eq.s32.totalorder %s32, 1
      %p186 = scmp.ne.s32.totalorder %s181, %s183
      %p187 = scmp.eq.s32.totalorder %s32, 0
      %p188 = por %p186, %p187
      %p189 = scmp.ne.s32.totalorder %s181, %s183
      %p190 = scmp.eq.s32.totalorder %s37, 1
      %p191 = por %p189, %p190
      %p192 = scmp.ne.s32.totalorder %s183, %s184
      %p193 = scmp.eq.s32.totalorder %s37, 0
      %p194 = por %p192, %p193
      %p195 = scmp.ne.s32.totalorder %s183, %s184
      %p196 = scmp.eq.s32.totalorder %s38, 1
      %p197 = por %p195, %p196
      %p199 = scmp.ne.s32.totalorder %s184, %s198
      %p200 = scmp.eq.s32.totalorder %s38, 0
      %p201 = por %p199, %p200
      %s203 = sadd.s32 %s202, 1
      %p206 = scmp.eq.s32.totalorder %s32, 1
      %p207 = scmp.ne.s32.totalorder %s202, %s204
      %p208 = scmp.eq.s32.totalorder %s32, 0
      %p209 = por %p207, %p208
      %p210 = scmp.ne.s32.totalorder %s202, %s204
      %p211 = scmp.eq.s32.totalorder %s37, 1
      %p212 = por %p210, %p211
      %p213 = scmp.ne.s32.totalorder %s204, %s205
      %p214 = scmp.eq.s32.totalorder %s37, 0
      %p215 = por %p213, %p214
      %p216 = scmp.ne.s32.totalorder %s204, %s205
      %p217 = scmp.eq.s32.totalorder %s38, 1
      %p218 = por %p216, %p217
      %p220 = scmp.ne.s32.totalorder %s205, %s219
      %p221 = scmp.eq.s32.totalorder %s38, 0
      %p222 = por %p220, %p221
      %s224 = sadd.s32 %s223, 1
      %p227 = scmp.eq.s32.totalorder %s32, 1
      %p228 = scmp.ne.s32.totalorder %s223, %s225
      %p229 = scmp.eq.s32.totalorder %s32, 0
      %p230 = por %p228, %p229
      %p231 = scmp.ne.s32.totalorder %s223, %s225
      %p232 = scmp.eq.s32.totalorder %s37, 1
      %p233 = por %p231, %p232
      %p234 = scmp.ne.s32.totalorder %s225, %s226
      %p235 = scmp.eq.s32.totalorder %s37, 0
      %p236 = por %p234, %p235
      %p237 = scmp.ne.s32.totalorder %s225, %s226
      %p238 = scmp.eq.s32.totalorder %s38, 1
      %p239 = por %p237, %p238
      %p241 = scmp.ne.s32.totalorder %s226, %s240
      %p242 = scmp.eq.s32.totalorder %s38, 0
      %p243 = por %p241, %p242
      %s245 = sadd.s32 %s244, 1
      %p248 = scmp.eq.s32.totalorder %s32, 1
      %p249 = scmp.ne.s32.totalorder %s244, %s246
      %p250 = scmp.eq.s32.totalorder %s32, 0
      %p251 = por %p249, %p250
      %p252 = scmp.ne.s32.totalorder %s244, %s246
      %p253 = scmp.eq.s32.totalorder %s37, 1
      %p254 = por %p252, %p253
      %p255 = scmp.ne.s32.totalorder %s246, %s247
      %p256 = scmp.eq.s32.totalorder %s37, 0
      %p257 = por %p255, %p256
      %p258 = scmp.ne.s32.totalorder %s246, %s247
      %p259 = scmp.eq.s32.totalorder %s38, 1
      %p260 = por %p258, %p259
      %p262 = scmp.ne.s32.totalorder %s247, %s261
      %p263 = scmp.eq.s32.totalorder %s38, 0
      %p264 = por %p262, %p263
      %s266 = sadd.s32 %s265, 1
      %p269 = scmp.eq.s32.totalorder %s32, 1
      %p270 = scmp.ne.s32.totalorder %s265, %s267
      %p271 = scmp.eq.s32.totalorder %s32, 0
      %p272 = por %p270, %p271
      %p273 = scmp.ne.s32.totalorder %s265, %s267
      %p274 = scmp.eq.s32.totalorder %s37, 1
      %p275 = por %p273, %p274
      %p276 = scmp.ne.s32.totalorder %s267, %s268
      %p277 = scmp.eq.s32.totalorder %s37, 0
      %p278 = por %p276, %p277
      %p279 = scmp.ne.s32.totalorder %s267, %s268
      %p280 = scmp.eq.s32.totalorder %s38, 1
      %p281 = por %p279, %p280
      %p283 = scmp.ne.s32.totalorder %s268, %s282
      %p284 = scmp.eq.s32.totalorder %s38, 0
      %p285 = por %p283, %p284
      %s287 = sadd.s32 %s286, 1
      %p290 = scmp.eq.s32.totalorder %s32, 1
      %p291 = scmp.ne.s32.totalorder %s286, %s288
      %p292 = scmp.eq.s32.totalorder %s32, 0
      %p293 = por %p291, %p292
      %p294 = scmp.ne.s32.totalorder %s286, %s288
      %p295 = scmp.eq.s32.totalorder %s37, 1
      %p296 = por %p294, %p295
      %p297 = scmp.ne.s32.totalorder %s288, %s289
      %p298 = scmp.eq.s32.totalorder %s37, 0
      %p299 = por %p297, %p298
      %p300 = scmp.ne.s32.totalorder %s288, %s289
      %p301 = scmp.eq.s32.totalorder %s38, 1
      %p302 = por %p300, %p301
      %p304 = scmp.ne.s32.totalorder %s289, %s303
      %p305 = scmp.eq.s32.totalorder %s38, 0
      %p306 = por %p304, %p305
      %s307 = ssub.s32 %s32, %s39
      %p308 = scmp.eq.s32.totalorder %s307, 0
      %s310 = sadd.s32 %s309, 1
      %s311 = scalar_select %p308, %s309, %s310
      %p314 = pneg %p308
      %p315 = scmp.eq.s32.totalorder %s32, 1
      %p316 = por %p314, %p315
      %p317 = scmp.ne.s32.totalorder %s309, %s312
      %p318 = scmp.eq.s32.totalorder %s32, 0
      %p319 = por %p317, %p318
      %p320 = scmp.ne.s32.totalorder %s309, %s312
      %p321 = scmp.eq.s32.totalorder %s37, 1
      %p322 = por %p320, %p321
      %p323 = scmp.ne.s32.totalorder %s312, %s313
      %p324 = scmp.eq.s32.totalorder %s37, 0
      %p325 = por %p323, %p324
      %p326 = scmp.ne.s32.totalorder %s312, %s313
      %p327 = scmp.eq.s32.totalorder %s38, 1
      %p328 = por %p326, %p327
      %p330 = scmp.ne.s32.totalorder %s313, %s329
      %p331 = scmp.eq.s32.totalorder %s38, 0
      %p332 = por %p330, %p331
      %s333 = ssub.s32 %s32, %s39
      %p334 = scmp.eq.s32.totalorder %s333, 0
      %s336 = sadd.s32 %s335, 1
      %s337 = scalar_select %p334, %s335, %s336
      %p340 = pneg %p334
      %p341 = scmp.eq.s32.totalorder %s32, 1
      %p342 = por %p340, %p341
      %p343 = scmp.ne.s32.totalorder %s335, %s338
      %p344 = scmp.eq.s32.totalorder %s32, 0
      %p345 = por %p343, %p344
      %p346 = scmp.ne.s32.totalorder %s335, %s338
      %p347 = scmp.eq.s32.totalorder %s37, 1
      %p348 = por %p346, %p347
      %p349 = scmp.ne.s32.totalorder %s338, %s339
      %p350 = scmp.eq.s32.totalorder %s37, 0
      %p351 = por %p349, %p350
      %p352 = scmp.ne.s32.totalorder %s338, %s339
      %p353 = scmp.eq.s32.totalorder %s38, 1
      %p354 = por %p352, %p353
      %p356 = scmp.ne.s32.totalorder %s339, %s355
      %p357 = scmp.eq.s32.totalorder %s38, 0
      %p358 = por %p356, %p357
      %p359 = scmp.le.s32.totalorder 1, %s32
      %p360 = scmp.lt.s32.totalorder %s32, 3
      %p361 = pnand %p359, %p360
      %p362 = pneg %p361
      // Predicated region
      $region9: #{tpu_custom_call.1} parent=5 // pred_check
        _
      $region10: #{tpu_custom_call.1} parent=5 // pred_check_branch
        %364 = sbr.rel (%p361) target = $region12
      $region11: #{tpu_custom_call.1} parent=5 // pred_region
        %s365 = ssub.s32 %s32, 1
        // Predicated region
        $region13: #{tpu_custom_call.1} parent=11 // pred_check
          %p366 = pneg %p131
        $region14: #{tpu_custom_call.1} parent=11 // pred_check_branch
          %368 = sbr.rel (%p366) target = $region16
        $region15: #{tpu_custom_call.1} parent=11 // pred_region
          _
        $region16: #{tpu_custom_call.1} parent=11 // pred_fallthru
          _
        // Predicated region
        $region17: #{tpu_custom_call.1} parent=11 // pred_check
          %p369 = pneg %p152
        $region18: #{tpu_custom_call.1} parent=11 // pred_check_branch
          %371 = sbr.rel (%p369) target = $region20
        $region19: #{tpu_custom_call.1} parent=11 // pred_region
          _
        $region20: #{tpu_custom_call.1} parent=11 // pred_fallthru
          _
        // Predicated region
        $region21: #{tpu_custom_call.1} parent=11 // pred_check
          %p372 = pneg %p173
        $region22: #{tpu_custom_call.1} parent=11 // pred_check_branch
          %374 = sbr.rel (%p372) target = $region24
        $region23: #{tpu_custom_call.1} parent=11 // pred_region
          _
        $region24: #{tpu_custom_call.1} parent=11 // pred_fallthru
          _
        // Predicated region
        $region25: #{tpu_custom_call.1} parent=11 // pred_check
          %p375 = pneg %p194
        $region26: #{tpu_custom_call.1} parent=11 // pred_check_branch
          %377 = sbr.rel (%p375) target = $region28
        $region27: #{tpu_custom_call.1} parent=11 // pred_region
          _
        $region28: #{tpu_custom_call.1} parent=11 // pred_fallthru
          _
        // Predicated region
        $region29: #{tpu_custom_call.1} parent=11 // pred_check
          %p378 = pneg %p215
        $region30: #{tpu_custom_call.1} parent=11 // pred_check_branch
          %380 = sbr.rel (%p378) target = $region32
        $region31: #{tpu_custom_call.1} parent=11 // pred_region
          _
        $region32: #{tpu_custom_call.1} parent=11 // pred_fallthru
          _
        // Predicated region
        $region33: #{tpu_custom_call.1} parent=11 // pred_check
          %p381 = pneg %p236
        $region34: #{tpu_custom_call.1} parent=11 // pred_check_branch
          %383 = sbr.rel (%p381) target = $region36
        $region35: #{tpu_custom_call.1} parent=11 // pred_region
          _
        $region36: #{tpu_custom_call.1} parent=11 // pred_fallthru
          _
        // Predicated region
        $region37: #{tpu_custom_call.1} parent=11 // pred_check
          %p384 = pneg %p257
        $region38: #{tpu_custom_call.1} parent=11 // pred_check_branch
          %386 = sbr.rel (%p384) target = $region40
        $region39: #{tpu_custom_call.1} parent=11 // pred_region
          _
        $region40: #{tpu_custom_call.1} parent=11 // pred_fallthru
          _
        // Predicated region
        $region41: #{tpu_custom_call.1} parent=11 // pred_check
          %p387 = pneg %p278
        $region42: #{tpu_custom_call.1} parent=11 // pred_check_branch
          %389 = sbr.rel (%p387) target = $region44
        $region43: #{tpu_custom_call.1} parent=11 // pred_region
          _
        $region44: #{tpu_custom_call.1} parent=11 // pred_fallthru
          _
        // Predicated region
        $region45: #{tpu_custom_call.1} parent=11 // pred_check
          %p390 = pneg %p299
        $region46: #{tpu_custom_call.1} parent=11 // pred_check_branch
          %392 = sbr.rel (%p390) target = $region48
        $region47: #{tpu_custom_call.1} parent=11 // pred_region
          _
        $region48: #{tpu_custom_call.1} parent=11 // pred_fallthru
          _
      $region12: #{tpu_custom_call.1} parent=5 // pred_fallthru
        _
      %p393 = scmp.lt.s32.totalorder %s32, 2
      // Predicated region
      $region49: #{tpu_custom_call.1} parent=5 // pred_check
        %p394 = pneg %p393
      $region50: #{tpu_custom_call.1} parent=5 // pred_check_branch
        %396 = sbr.rel (%p394) target = $region52
      $region51: #{tpu_custom_call.1} parent=5 // pred_region
        // Predicated region
        $region53: #{tpu_custom_call.1} parent=51 // pred_check
          %p397 = pneg %p52
        $region54: #{tpu_custom_call.1} parent=51 // pred_check_branch
          %399 = sbr.rel (%p397) target = $region56
        $region55: #{tpu_custom_call.1} parent=51 // pred_region
          %s400 = sand.u32 %s42, 1
          %s401 = scalar_lea.sflag [#allocation3], %s400
          %s402 = sand.u32 %s42, 1
          %s403 = smul.addr %s402, 768
          %s404 = scalar_lea.vmem [#allocation2], %s403
          %s405 = smul.u32 32, %s32
          %s407 = ssub.s32 12288, 12288
          %408 = vsyncadd %s401, %s407
          %s409 = smul.addr %s405, 6
          %s410 = smul.addr %s409, 64
          %s411 = scalar_lea.hbm %s0, %s410
          %s412 = sshll.u32 %s404, 4
          %s413 = int_to_ptr.vmem [resolvable:$true] %s412
          %418 = dma.hbm_to_vmem [thread:$0]  %s411, 12288, %s413, %s401, 384, 384, 24
        $region56: #{tpu_custom_call.1} parent=51 // pred_fallthru
          _
        // Predicated region
        $region57: #{tpu_custom_call.1} parent=51 // pred_check
          %p419 = pneg %p78
        $region58: #{tpu_custom_call.1} parent=51 // pred_check_branch
          %421 = sbr.rel (%p419) target = $region60
        $region59: #{tpu_custom_call.1} parent=51 // pred_region
          %s422 = sand.u32 %s68, 1
          %s423 = scalar_lea.sflag [#allocation6], %s422
          %s424 = sand.u32 %s68, 1
          %s425 = smul.addr %s424, 768
          %s426 = scalar_lea.vmem [#allocation5], %s425
          %s427 = smul.u32 32, %s32
          %s429 = ssub.s32 12288, 12288
          %430 = vsyncadd %s423, %s429
          %s431 = smul.addr %s427, 6
          %s432 = smul.addr %s431, 64
          %s433 = scalar_lea.hbm %s1, %s432
          %s434 = sshll.u32 %s426, 4
          %s435 = int_to_ptr.vmem [resolvable:$true] %s434
          %440 = dma.hbm_to_vmem [thread:$0]  %s433, 12288, %s435, %s423, 384, 384, 24
        $region60: #{tpu_custom_call.1} parent=51 // pred_fallthru
          _
        // Predicated region
        $region61: #{tpu_custom_call.1} parent=51 // pred_check
          %p441 = pneg %p104
        $region62: #{tpu_custom_call.1} parent=51 // pred_check_branch
          %443 = sbr.rel (%p441) target = $region64
        $region63: #{tpu_custom_call.1} parent=51 // pred_region
          %s444 = smul.u32 32, %s32
          %p445 = scmp.lt.s32.totalorder %s444, 63
          %s446 = scalar_select %p445, %s444, 63
          %s447 = smul.addr %s446, 8
          %s448 = scalar_lea.vmem %s2, %s447
          %s449 = smul.u32 32, %s32
        $region64: #{tpu_custom_call.1} parent=51 // pred_fallthru
          _
      $region52: #{tpu_custom_call.1} parent=5 // pred_fallthru
        _
      %p450 = scmp.le.s32.totalorder 1, %s32
      %p451 = scmp.lt.s32.totalorder %s32, 3
      %p452 = pnand %p450, %p451
      %p453 = pneg %p452
      // Predicated region
      $region65: #{tpu_custom_call.1} parent=5 // pred_check
        _
      $region66: #{tpu_custom_call.1} parent=5 // pred_check_branch
        %455 = sbr.rel (%p452) target = $region68
      $region67: #{tpu_custom_call.1} parent=5 // pred_region
        %s456 = ssub.s32 %s32, 1
        %s457 = sand.u32 %s45, 1
        %s458 = scalar_lea.sflag [#allocation3], %s457
        %s459 = sand.u32 %s45, 1
        %s460 = smul.addr %s459, 768
        %s461 = scalar_lea.vmem [#allocation2], %s460
        // Predicated region
        $region69: #{tpu_custom_call.1} parent=67 // pred_check
          %p462 = pneg %p58
        $region70: #{tpu_custom_call.1} parent=67 // pred_check_branch
          %464 = sbr.rel (%p462) target = $region72
        $region71: #{tpu_custom_call.1} parent=67 // pred_region
          %465 = dma.done %s458, 12288
        $region72: #{tpu_custom_call.1} parent=67 // pred_fallthru
          _
        %s466 = sand.u32 %s71, 1
        %s467 = scalar_lea.sflag [#allocation6], %s466
        %s468 = sand.u32 %s71, 1
        %s469 = smul.addr %s468, 768
        %s470 = scalar_lea.vmem [#allocation5], %s469
        // Predicated region
        $region73: #{tpu_custom_call.1} parent=67 // pred_check
          %p471 = pneg %p84
        $region74: #{tpu_custom_call.1} parent=67 // pred_check_branch
          %473 = sbr.rel (%p471) target = $region76
        $region75: #{tpu_custom_call.1} parent=67 // pred_region
          %474 = dma.done %s467, 12288
        $region76: #{tpu_custom_call.1} parent=67 // pred_fallthru
          _
        %s475 = sand.u32 %s45, 1
        %s476 = scalar_lea.sflag [#allocation3], %s475
        %s477 = sand.u32 %s45, 1
        %s478 = smul.addr %s477, 768
        %s479 = scalar_lea.vmem [#allocation2], %s478
        %p480 = pneg %p58
        %p481 = pneg %p55
        %s482 = sand.u32 %s71, 1
        %s483 = scalar_lea.sflag [#allocation6], %s482
        %s484 = sand.u32 %s71, 1
        %s485 = smul.addr %s484, 768
        %s486 = scalar_lea.vmem [#allocation5], %s485
        %p487 = pneg %p84
        %p488 = pneg %p81
        %s489 = smul.u32 32, %s37
        %p490 = scmp.lt.s32.totalorder %s489, 63
        %s491 = scalar_select %p490, %s489, 63
        %s492 = smul.addr %s491, 8
        %s493 = scalar_lea.vmem %s2, %s492
        %p494 = pneg %p110
        %p495 = pneg %p107
        %p496 = pneg %p131
        %p497 = pneg %p128
        %p498 = pneg %p152
        %p499 = pneg %p149
        %p500 = pneg %p173
        %p501 = pneg %p170
        %p502 = pneg %p194
        %p503 = pneg %p191
        %p504 = pneg %p215
        %p505 = pneg %p212
        %p506 = pneg %p236
        %p507 = pneg %p233
        %p508 = pneg %p257
        %p509 = pneg %p254
        %p510 = pneg %p278
        %p511 = pneg %p275
        %p512 = pneg %p299
        %p513 = pneg %p296
        %p514 = pneg %p325
        %p515 = pneg %p322
        %s516 = sand.u32 %s312, 1
        %s517 = scalar_lea.sflag [#allocation4], %s516
        %s518 = sand.u32 %s312, 1
        %s519 = smul.addr %s518, 128
        %s520 = scalar_lea.vmem [#allocation7], %s519
        %p521 = pneg %p351
        %p522 = pneg %p348
        %s523 = sand.u32 %s338, 1
        %s524 = scalar_lea.sflag [#allocation9], %s523
        %s525 = sand.u32 %s338, 1
        %s526 = smul.addr %s525, 256
        %s527 = scalar_lea.vmem [#allocation8], %s526
        %s528 = smul.u32 32, %s37
        %s529 = smul.u32 32, %s37
        %s530 = smul.u32 32, %s37
        %p531 = scmp.lt.s32.totalorder %s530, 63
        %s532 = scalar_select %p531, %s530, 63
        %s533 = smul.addr %s532, 8
        %s534 = scalar_lea.vmem %s2, %s533
        %s535 = smul.u32 32, %s37
        %s536 = smul.u32 32, %s37
        %s537 = smul.u32 32, %s37
        %v539 = vld [vmem:[%s461] sm:$0xff]
        %v540 = vld [vmem:[%s461 + $0x8] sm:$0xff]
        %v541 = vld [vmem:[%s461 + $0x10] sm:$0xff]
        %v542 = vld [vmem:[%s461 + $0x18] sm:$0xff]
        %v543 = vld [vmem:[%s461 + $0x20] sm:$0xff]
        %v544 = vld [vmem:[%s461 + $0x28] sm:$0xff]
        %v545 = vld [vmem:[%s461 + $0x30] sm:$0xff]
        %v546 = vld [vmem:[%s461 + $0x38] sm:$0xff]
        %v547 = vld [vmem:[%s461 + $0x40] sm:$0xff]
        %v548 = vld [vmem:[%s461 + $0x48] sm:$0xff]
        %v549 = vld [vmem:[%s461 + $0x50] sm:$0xff]
        %v550 = vld [vmem:[%s461 + $0x58] sm:$0xff]
        %v551 = vld [vmem:[%s461 + $0x60] sm:$0xff]
        %v552 = vld [vmem:[%s461 + $0x68] sm:$0xff]
        %v553 = vld [vmem:[%s461 + $0x70] sm:$0xff]
        %v554 = vld [vmem:[%s461 + $0x78] sm:$0xff]
        %v555 = vld [vmem:[%s461 + $0x80] sm:$0xff]
        %v556 = vld [vmem:[%s461 + $0x88] sm:$0xff]
        %v557 = vld [vmem:[%s461 + $0x90] sm:$0xff]
        %v558 = vld [vmem:[%s461 + $0x98] sm:$0xff]
        %v559 = vld [vmem:[%s461 + $0xa0] sm:$0xff]
        %v560 = vld [vmem:[%s461 + $0xa8] sm:$0xff]
        %v561 = vld [vmem:[%s461 + $0xb0] sm:$0xff]
        %v562 = vld [vmem:[%s461 + $0xb8] sm:$0xff]
        %v563 = vld [vmem:[%s461 + $0xc0] sm:$0xff]
        %v564 = vld [vmem:[%s461 + $0xc8] sm:$0xff]
        %v565 = vld [vmem:[%s461 + $0xd0] sm:$0xff]
        %v566 = vld [vmem:[%s461 + $0xd8] sm:$0xff]
        %v567 = vld [vmem:[%s461 + $0xe0] sm:$0xff]
        %v568 = vld [vmem:[%s461 + $0xe8] sm:$0xff]
        %v569 = vld [vmem:[%s461 + $0xf0] sm:$0xff]
        %v570 = vld [vmem:[%s461 + $0xf8] sm:$0xff]
        %v571 = vld [vmem:[%s461 + $0x100] sm:$0xff]
        %v572 = vld [vmem:[%s461 + $0x108] sm:$0xff]
        %v573 = vld [vmem:[%s461 + $0x110] sm:$0xff]
        %v574 = vld [vmem:[%s461 + $0x118] sm:$0xff]
        %v575 = vld [vmem:[%s461 + $0x120] sm:$0xff]
        %v576 = vld [vmem:[%s461 + $0x128] sm:$0xff]
        %v577 = vld [vmem:[%s461 + $0x130] sm:$0xff]
        %v578 = vld [vmem:[%s461 + $0x138] sm:$0xff]
        %v579 = vld [vmem:[%s461 + $0x140] sm:$0xff]
        %v580 = vld [vmem:[%s461 + $0x148] sm:$0xff]
        %v581 = vld [vmem:[%s461 + $0x150] sm:$0xff]
        %v582 = vld [vmem:[%s461 + $0x158] sm:$0xff]
        %v583 = vld [vmem:[%s461 + $0x160] sm:$0xff]
        %v584 = vld [vmem:[%s461 + $0x168] sm:$0xff]
        %v585 = vld [vmem:[%s461 + $0x170] sm:$0xff]
        %v586 = vld [vmem:[%s461 + $0x178] sm:$0xff]
        %v587 = vld [vmem:[%s461 + $0x180] sm:$0xff]
        %v588 = vld [vmem:[%s461 + $0x188] sm:$0xff]
        %v589 = vld [vmem:[%s461 + $0x190] sm:$0xff]
        %v590 = vld [vmem:[%s461 + $0x198] sm:$0xff]
        %v591 = vld [vmem:[%s461 + $0x1a0] sm:$0xff]
        %v592 = vld [vmem:[%s461 + $0x1a8] sm:$0xff]
        %v593 = vld [vmem:[%s461 + $0x1b0] sm:$0xff]
        %v594 = vld [vmem:[%s461 + $0x1b8] sm:$0xff]
        %v595 = vld [vmem:[%s461 + $0x1c0] sm:$0xff]
        %v596 = vld [vmem:[%s461 + $0x1c8] sm:$0xff]
        %v597 = vld [vmem:[%s461 + $0x1d0] sm:$0xff]
        %v598 = vld [vmem:[%s461 + $0x1d8] sm:$0xff]
        %v599 = vld [vmem:[%s461 + $0x1e0] sm:$0xff]
        %v600 = vld [vmem:[%s461 + $0x1e8] sm:$0xff]
        %v601 = vld [vmem:[%s461 + $0x1f0] sm:$0xff]
        %v602 = vld [vmem:[%s461 + $0x1f8] sm:$0xff]
        %v603 = vld [vmem:[%s461 + $0x200] sm:$0xff]
        %v604 = vld [vmem:[%s461 + $0x208] sm:$0xff]
        %v605 = vld [vmem:[%s461 + $0x210] sm:$0xff]
        %v606 = vld [vmem:[%s461 + $0x218] sm:$0xff]
        %v607 = vld [vmem:[%s461 + $0x220] sm:$0xff]
        %v608 = vld [vmem:[%s461 + $0x228] sm:$0xff]
        %v609 = vld [vmem:[%s461 + $0x230] sm:$0xff]
        %v610 = vld [vmem:[%s461 + $0x238] sm:$0xff]
        %v611 = vld [vmem:[%s461 + $0x240] sm:$0xff]
        %v612 = vld [vmem:[%s461 + $0x248] sm:$0xff]
        %v613 = vld [vmem:[%s461 + $0x250] sm:$0xff]
        %v614 = vld [vmem:[%s461 + $0x258] sm:$0xff]
        %v615 = vld [vmem:[%s461 + $0x260] sm:$0xff]
        %v616 = vld [vmem:[%s461 + $0x268] sm:$0xff]
        %v617 = vld [vmem:[%s461 + $0x270] sm:$0xff]
        %v618 = vld [vmem:[%s461 + $0x278] sm:$0xff]
        %v619 = vld [vmem:[%s461 + $0x280] sm:$0xff]
        %v620 = vld [vmem:[%s461 + $0x288] sm:$0xff]
        %v621 = vld [vmem:[%s461 + $0x290] sm:$0xff]
        %v622 = vld [vmem:[%s461 + $0x298] sm:$0xff]
        %v623 = vld [vmem:[%s461 + $0x2a0] sm:$0xff]
        %v624 = vld [vmem:[%s461 + $0x2a8] sm:$0xff]
        %v625 = vld [vmem:[%s461 + $0x2b0] sm:$0xff]
        %v626 = vld [vmem:[%s461 + $0x2b8] sm:$0xff]
        %v627 = vld [vmem:[%s461 + $0x2c0] sm:$0xff]
        %v628 = vld [vmem:[%s461 + $0x2c8] sm:$0xff]
        %v629 = vld [vmem:[%s461 + $0x2d0] sm:$0xff]
        %v630 = vld [vmem:[%s461 + $0x2d8] sm:$0xff]
        %v631 = vld [vmem:[%s461 + $0x2e0] sm:$0xff]
        %v632 = vld [vmem:[%s461 + $0x2e8] sm:$0xff]
        %v633 = vld [vmem:[%s461 + $0x2f0] sm:$0xff]
        %v634 = vld [vmem:[%s461 + $0x2f8] sm:$0xff]
        %v635 = vld [vmem:[%s3] sm:$0xf]
        %v636 = vld [vmem:[%s3 + $0x4] sm:$0xf]
        %v637 = vld [vmem:[%s3 + $0x8] sm:$0xf]
        %v638 = vld [vmem:[%s3 + $0xc] sm:$0xf]
        %v639 = vld [vmem:[%s3 + $0x10] sm:$0xf]
        %v640 = vld [vmem:[%s3 + $0x14] sm:$0xf]
        %v641 = vld [vmem:[%s3 + $0x18] sm:$0xf]
        %v642 = vld [vmem:[%s3 + $0x1c] sm:$0xf]
        %v643 = vld [vmem:[%s3 + $0x20] sm:$0xf]
        %v644 = vld [vmem:[%s3 + $0x24] sm:$0xf]
        %v645 = vld [vmem:[%s3 + $0x28] sm:$0xf]
        %v646 = vld [vmem:[%s3 + $0x2c] sm:$0xf]
        %v647 = vld [vmem:[%s3 + $0x30] sm:$0xf]
        %v648 = vld [vmem:[%s3 + $0x34] sm:$0xf]
        %v649 = vld [vmem:[%s3 + $0x38] sm:$0xf]
        %v650 = vld [vmem:[%s3 + $0x3c] sm:$0xf]
        %v651 = vld [vmem:[%s3 + $0x40] sm:$0xf]
        %v652 = vld [vmem:[%s3 + $0x44] sm:$0xf]
        %v653 = vld [vmem:[%s3 + $0x48] sm:$0xf]
        %v654 = vld [vmem:[%s3 + $0x4c] sm:$0xf]
        %v655 = vld [vmem:[%s3 + $0x50] sm:$0xf]
        %v656 = vld [vmem:[%s3 + $0x54] sm:$0xf]
        %v657 = vld [vmem:[%s3 + $0x58] sm:$0xf]
        %v658 = vld [vmem:[%s3 + $0x5c] sm:$0xf]
        %v659 = vld [vmem:[%s3 + $0x60] sm:$0xf]
        %v660 = vld [vmem:[%s3 + $0x64] sm:$0xf]
        %v661 = vld [vmem:[%s3 + $0x68] sm:$0xf]
        %v662 = vld [vmem:[%s3 + $0x6c] sm:$0xf]
        %v663 = vld [vmem:[%s3 + $0x70] sm:$0xf]
        %v664 = vld [vmem:[%s3 + $0x74] sm:$0xf]
        %v665 = vld [vmem:[%s3 + $0x78] sm:$0xf]
        %v666 = vld [vmem:[%s3 + $0x7c] sm:$0xf]
        %v667 = vld [vmem:[%s3 + $0x80] sm:$0xf]
        %v668 = vld [vmem:[%s3 + $0x84] sm:$0xf]
        %v669 = vld [vmem:[%s3 + $0x88] sm:$0xf]
        %v670 = vld [vmem:[%s3 + $0x8c] sm:$0xf]
        %v671 = vld [vmem:[%s3 + $0x90] sm:$0xf]
        %v672 = vld [vmem:[%s3 + $0x94] sm:$0xf]
        %v673 = vld [vmem:[%s3 + $0x98] sm:$0xf]
        %v674 = vld [vmem:[%s3 + $0x9c] sm:$0xf]
        %v675 = vld [vmem:[%s3 + $0xa0] sm:$0xf]
        %v676 = vld [vmem:[%s3 + $0xa4] sm:$0xf]
        %v677 = vld [vmem:[%s3 + $0xa8] sm:$0xf]
        %v678 = vld [vmem:[%s3 + $0xac] sm:$0xf]
        %v679 = vld [vmem:[%s3 + $0xb0] sm:$0xf]
        %v680 = vld [vmem:[%s3 + $0xb4] sm:$0xf]
        %v681 = vld [vmem:[%s3 + $0xb8] sm:$0xf]
        %v682 = vld [vmem:[%s3 + $0xbc] sm:$0xf]
        %v683 = vld [vmem:[%s3 + $0xc0] sm:$0xf]
        %v684 = vld [vmem:[%s3 + $0xc4] sm:$0xf]
        %v685 = vld [vmem:[%s3 + $0xc8] sm:$0xf]
        %v686 = vld [vmem:[%s3 + $0xcc] sm:$0xf]
        %v687 = vld [vmem:[%s3 + $0xd0] sm:$0xf]
        %v688 = vld [vmem:[%s3 + $0xd4] sm:$0xf]
        %v689 = vld [vmem:[%s3 + $0xd8] sm:$0xf]
        %v690 = vld [vmem:[%s3 + $0xdc] sm:$0xf]
        %v691 = vld [vmem:[%s3 + $0xe0] sm:$0xf]
        %v692 = vld [vmem:[%s3 + $0xe4] sm:$0xf]
        %v693 = vld [vmem:[%s3 + $0xe8] sm:$0xf]
        %v694 = vld [vmem:[%s3 + $0xec] sm:$0xf]
        %v695 = vld [vmem:[%s3 + $0xf0] sm:$0xf]
        %v696 = vld [vmem:[%s3 + $0xf4] sm:$0xf]
        %v697 = vld [vmem:[%s3 + $0xf8] sm:$0xf]
        %v698 = vld [vmem:[%s3 + $0xfc] sm:$0xf]
        %v699 = vld [vmem:[%s3 + $0x100] sm:$0xf]
        %v700 = vld [vmem:[%s3 + $0x104] sm:$0xf]
        %v701 = vld [vmem:[%s3 + $0x108] sm:$0xf]
        %v702 = vld [vmem:[%s3 + $0x10c] sm:$0xf]
        %v703 = vld [vmem:[%s3 + $0x110] sm:$0xf]
        %v704 = vld [vmem:[%s3 + $0x114] sm:$0xf]
        %v705 = vld [vmem:[%s3 + $0x118] sm:$0xf]
        %v706 = vld [vmem:[%s3 + $0x11c] sm:$0xf]
        %v707 = vld [vmem:[%s3 + $0x120] sm:$0xf]
        %v708 = vld [vmem:[%s3 + $0x124] sm:$0xf]
        %v709 = vld [vmem:[%s3 + $0x128] sm:$0xf]
        %v710 = vld [vmem:[%s3 + $0x12c] sm:$0xf]
        %v711 = vld [vmem:[%s3 + $0x130] sm:$0xf]
        %v712 = vld [vmem:[%s3 + $0x134] sm:$0xf]
        %v713 = vld [vmem:[%s3 + $0x138] sm:$0xf]
        %v714 = vld [vmem:[%s3 + $0x13c] sm:$0xf]
        %v715 = vld [vmem:[%s3 + $0x140] sm:$0xf]
        %v716 = vld [vmem:[%s3 + $0x144] sm:$0xf]
        %v717 = vld [vmem:[%s3 + $0x148] sm:$0xf]
        %v718 = vld [vmem:[%s3 + $0x14c] sm:$0xf]
        %v719 = vld [vmem:[%s3 + $0x150] sm:$0xf]
        %v720 = vld [vmem:[%s3 + $0x154] sm:$0xf]
        %v721 = vld [vmem:[%s3 + $0x158] sm:$0xf]
        %v722 = vld [vmem:[%s3 + $0x15c] sm:$0xf]
        %v723 = vld [vmem:[%s3 + $0x160] sm:$0xf]
        %v724 = vld [vmem:[%s3 + $0x164] sm:$0xf]
        %v725 = vld [vmem:[%s3 + $0x168] sm:$0xf]
        %v726 = vld [vmem:[%s3 + $0x16c] sm:$0xf]
        %v727 = vld [vmem:[%s3 + $0x170] sm:$0xf]
        %v728 = vld [vmem:[%s3 + $0x174] sm:$0xf]
        %v729 = vld [vmem:[%s3 + $0x178] sm:$0xf]
        %v730 = vld [vmem:[%s3 + $0x17c] sm:$0xf]
        %v731 = vld [vmem:[%s4] sm:$0x1]
        %v733 = vlaneseq
        %v734 = vshrl.u32 %v733, 7
        %v735 = vsub.s32 0, %v734
        %v736 = vrot.slane %v731, %v735
        %v834 = vunpack.c.l.b16 %v539
        %v835 = vunpack.c.h.b16 %v539
        %v836 = vunpack.c.l.b16 %v540
        %v837 = vunpack.c.h.b16 %v540
        %v838 = vunpack.c.l.b16 %v541
        %v839 = vunpack.c.h.b16 %v541
        %v840 = vunpack.c.l.b16 %v542
        %v841 = vunpack.c.h.b16 %v542
        %v842 = vunpack.c.l.b16 %v543
        %v843 = vunpack.c.h.b16 %v543
        %v844 = vunpack.c.l.b16 %v544
        %v845 = vunpack.c.h.b16 %v544
        %v846 = vunpack.c.l.b16 %v545
        %v847 = vunpack.c.h.b16 %v545
        %v848 = vunpack.c.l.b16 %v546
        %v849 = vunpack.c.h.b16 %v546
        %v850 = vunpack.c.l.b16 %v547
        %v851 = vunpack.c.h.b16 %v547
        %v852 = vunpack.c.l.b16 %v548
        %v853 = vunpack.c.h.b16 %v548
        %v854 = vunpack.c.l.b16 %v549
        %v855 = vunpack.c.h.b16 %v549
        %v856 = vunpack.c.l.b16 %v550
        %v857 = vunpack.c.h.b16 %v550
        %v858 = vunpack.c.l.b16 %v551
        %v859 = vunpack.c.h.b16 %v551
        %v860 = vunpack.c.l.b16 %v552
        %v861 = vunpack.c.h.b16 %v552
        %v862 = vunpack.c.l.b16 %v553
        %v863 = vunpack.c.h.b16 %v553
        %v864 = vunpack.c.l.b16 %v554
        %v865 = vunpack.c.h.b16 %v554
        %v866 = vunpack.c.l.b16 %v555
        %v867 = vunpack.c.h.b16 %v555
        %v868 = vunpack.c.l.b16 %v556
        %v869 = vunpack.c.h.b16 %v556
        %v870 = vunpack.c.l.b16 %v557
        %v871 = vunpack.c.h.b16 %v557
        %v872 = vunpack.c.l.b16 %v558
        %v873 = vunpack.c.h.b16 %v558
        %v874 = vunpack.c.l.b16 %v559
        %v875 = vunpack.c.h.b16 %v559
        %v876 = vunpack.c.l.b16 %v560
        %v877 = vunpack.c.h.b16 %v560
        %v878 = vunpack.c.l.b16 %v561
        %v879 = vunpack.c.h.b16 %v561
        %v880 = vunpack.c.l.b16 %v562
        %v881 = vunpack.c.h.b16 %v562
        %v882 = vunpack.c.l.b16 %v563
        %v883 = vunpack.c.h.b16 %v563
        %v884 = vunpack.c.l.b16 %v564
        %v885 = vunpack.c.h.b16 %v564
        %v886 = vunpack.c.l.b16 %v565
        %v887 = vunpack.c.h.b16 %v565
        %v888 = vunpack.c.l.b16 %v566
        %v889 = vunpack.c.h.b16 %v566
        %v890 = vunpack.c.l.b16 %v567
        %v891 = vunpack.c.h.b16 %v567
        %v892 = vunpack.c.l.b16 %v568
        %v893 = vunpack.c.h.b16 %v568
        %v894 = vunpack.c.l.b16 %v569
        %v895 = vunpack.c.h.b16 %v569
        %v896 = vunpack.c.l.b16 %v570
        %v897 = vunpack.c.h.b16 %v570
        %v898 = vunpack.c.l.b16 %v571
        %v899 = vunpack.c.h.b16 %v571
        %v900 = vunpack.c.l.b16 %v572
        %v901 = vunpack.c.h.b16 %v572
        %v902 = vunpack.c.l.b16 %v573
        %v903 = vunpack.c.h.b16 %v573
        %v904 = vunpack.c.l.b16 %v574
        %v905 = vunpack.c.h.b16 %v574
        %v906 = vunpack.c.l.b16 %v575
        %v907 = vunpack.c.h.b16 %v575
        %v908 = vunpack.c.l.b16 %v576
        %v909 = vunpack.c.h.b16 %v576
        %v910 = vunpack.c.l.b16 %v577
        %v911 = vunpack.c.h.b16 %v577
        %v912 = vunpack.c.l.b16 %v578
        %v913 = vunpack.c.h.b16 %v578
        %v914 = vunpack.c.l.b16 %v579
        %v915 = vunpack.c.h.b16 %v579
        %v916 = vunpack.c.l.b16 %v580
        %v917 = vunpack.c.h.b16 %v580
        %v918 = vunpack.c.l.b16 %v581
        %v919 = vunpack.c.h.b16 %v581
        %v920 = vunpack.c.l.b16 %v582
        %v921 = vunpack.c.h.b16 %v582
        %v922 = vunpack.c.l.b16 %v583
        %v923 = vunpack.c.h.b16 %v583
        %v924 = vunpack.c.l.b16 %v584
        %v925 = vunpack.c.h.b16 %v584
        %v926 = vunpack.c.l.b16 %v585
        %v927 = vunpack.c.h.b16 %v585
        %v928 = vunpack.c.l.b16 %v586
        %v929 = vunpack.c.h.b16 %v586
        %v930 = vunpack.c.l.b16 %v587
        %v931 = vunpack.c.h.b16 %v587
        %v932 = vunpack.c.l.b16 %v588
        %v933 = vunpack.c.h.b16 %v588
        %v934 = vunpack.c.l.b16 %v589
        %v935 = vunpack.c.h.b16 %v589
        %v936 = vunpack.c.l.b16 %v590
        %v937 = vunpack.c.h.b16 %v590
        %v938 = vunpack.c.l.b16 %v591
        %v939 = vunpack.c.h.b16 %v591
        %v940 = vunpack.c.l.b16 %v592
        %v941 = vunpack.c.h.b16 %v592
        %v942 = vunpack.c.l.b16 %v593
        %v943 = vunpack.c.h.b16 %v593
        %v944 = vunpack.c.l.b16 %v594
        %v945 = vunpack.c.h.b16 %v594
        %v946 = vunpack.c.l.b16 %v595
        %v947 = vunpack.c.h.b16 %v595
        %v948 = vunpack.c.l.b16 %v596
        %v949 = vunpack.c.h.b16 %v596
        %v950 = vunpack.c.l.b16 %v597
        %v951 = vunpack.c.h.b16 %v597
        %v952 = vunpack.c.l.b16 %v598
        %v953 = vunpack.c.h.b16 %v598
        %v954 = vunpack.c.l.b16 %v599
        %v955 = vunpack.c.h.b16 %v599
        %v956 = vunpack.c.l.b16 %v600
        %v957 = vunpack.c.h.b16 %v600
        %v958 = vunpack.c.l.b16 %v601
        %v959 = vunpack.c.h.b16 %v601
        %v960 = vunpack.c.l.b16 %v602
        %v961 = vunpack.c.h.b16 %v602
        %v962 = vunpack.c.l.b16 %v603
        %v963 = vunpack.c.h.b16 %v603
        %v964 = vunpack.c.l.b16 %v604
        %v965 = vunpack.c.h.b16 %v604
        %v966 = vunpack.c.l.b16 %v605
        %v967 = vunpack.c.h.b16 %v605
        %v968 = vunpack.c.l.b16 %v606
        %v969 = vunpack.c.h.b16 %v606
        %v970 = vunpack.c.l.b16 %v607
        %v971 = vunpack.c.h.b16 %v607
        %v972 = vunpack.c.l.b16 %v608
        %v973 = vunpack.c.h.b16 %v608
        %v974 = vunpack.c.l.b16 %v609
        %v975 = vunpack.c.h.b16 %v609
        %v976 = vunpack.c.l.b16 %v610
        %v977 = vunpack.c.h.b16 %v610
        %v978 = vunpack.c.l.b16 %v611
        %v979 = vunpack.c.h.b16 %v611
        %v980 = vunpack.c.l.b16 %v612
        %v981 = vunpack.c.h.b16 %v612
        %v982 = vunpack.c.l.b16 %v613
        %v983 = vunpack.c.h.b16 %v613
        %v984 = vunpack.c.l.b16 %v614
        %v985 = vunpack.c.h.b16 %v614
        %v986 = vunpack.c.l.b16 %v615
        %v987 = vunpack.c.h.b16 %v615
        %v988 = vunpack.c.l.b16 %v616
        %v989 = vunpack.c.h.b16 %v616
        %v990 = vunpack.c.l.b16 %v617
        %v991 = vunpack.c.h.b16 %v617
        %v992 = vunpack.c.l.b16 %v618
        %v993 = vunpack.c.h.b16 %v618
        %v994 = vunpack.c.l.b16 %v619
        %v995 = vunpack.c.h.b16 %v619
        %v996 = vunpack.c.l.b16 %v620
        %v997 = vunpack.c.h.b16 %v620
        %v998 = vunpack.c.l.b16 %v621
        %v999 = vunpack.c.h.b16 %v621
        %v1000 = vunpack.c.l.b16 %v622
        %v1001 = vunpack.c.h.b16 %v622
        %v1002 = vunpack.c.l.b16 %v623
        %v1003 = vunpack.c.h.b16 %v623
        %v1004 = vunpack.c.l.b16 %v624
        %v1005 = vunpack.c.h.b16 %v624
        %v1006 = vunpack.c.l.b16 %v625
        %v1007 = vunpack.c.h.b16 %v625
        %v1008 = vunpack.c.l.b16 %v626
        %v1009 = vunpack.c.h.b16 %v626
        %v1010 = vunpack.c.l.b16 %v627
        %v1011 = vunpack.c.h.b16 %v627
        %v1012 = vunpack.c.l.b16 %v628
        %v1013 = vunpack.c.h.b16 %v628
        %v1014 = vunpack.c.l.b16 %v629
        %v1015 = vunpack.c.h.b16 %v629
        %v1016 = vunpack.c.l.b16 %v630
        %v1017 = vunpack.c.h.b16 %v630
        %v1018 = vunpack.c.l.b16 %v631
        %v1019 = vunpack.c.h.b16 %v631
        %v1020 = vunpack.c.l.b16 %v632
        %v1021 = vunpack.c.h.b16 %v632
        %v1022 = vunpack.c.l.b16 %v633
        %v1023 = vunpack.c.h.b16 %v633
        %v1024 = vunpack.c.l.b16 %v634
        %v1025 = vunpack.c.h.b16 %v634
        %v1026 = vpack.c.b16 %v840, %v834
        %v1027 = vpack.c.b16 %v841, %v835
        %v1028 = vpack.c.b16 %v842, %v836
        %v1029 = vpack.c.b16 %v843, %v837
        %v1030 = vpack.c.b16 %v844, %v838
        %v1031 = vpack.c.b16 %v845, %v839
        %v1032 = vpack.c.b16 %v852, %v846
        %v1033 = vpack.c.b16 %v853, %v847
        %v1034 = vpack.c.b16 %v854, %v848
        %v1035 = vpack.c.b16 %v855, %v849
        %v1036 = vpack.c.b16 %v856, %v850
        %v1037 = vpack.c.b16 %v857, %v851
        %v1038 = vpack.c.b16 %v864, %v858
        %v1039 = vpack.c.b16 %v865, %v859
        %v1040 = vpack.c.b16 %v866, %v860
        %v1041 = vpack.c.b16 %v867, %v861
        %v1042 = vpack.c.b16 %v868, %v862
        %v1043 = vpack.c.b16 %v869, %v863
        %v1044 = vpack.c.b16 %v876, %v870
        %v1045 = vpack.c.b16 %v877, %v871
        %v1046 = vpack.c.b16 %v878, %v872
        %v1047 = vpack.c.b16 %v879, %v873
        %v1048 = vpack.c.b16 %v880, %v874
        %v1049 = vpack.c.b16 %v881, %v875
        %v1050 = vpack.c.b16 %v888, %v882
        %v1051 = vpack.c.b16 %v889, %v883
        %v1052 = vpack.c.b16 %v890, %v884
        %v1053 = vpack.c.b16 %v891, %v885
        %v1054 = vpack.c.b16 %v892, %v886
        %v1055 = vpack.c.b16 %v893, %v887
        %v1056 = vpack.c.b16 %v900, %v894
        %v1057 = vpack.c.b16 %v901, %v895
        %v1058 = vpack.c.b16 %v902, %v896
        %v1059 = vpack.c.b16 %v903, %v897
        %v1060 = vpack.c.b16 %v904, %v898
        %v1061 = vpack.c.b16 %v905, %v899
        %v1062 = vpack.c.b16 %v912, %v906
        %v1063 = vpack.c.b16 %v913, %v907
        %v1064 = vpack.c.b16 %v914, %v908
        %v1065 = vpack.c.b16 %v915, %v909
        %v1066 = vpack.c.b16 %v916, %v910
        %v1067 = vpack.c.b16 %v917, %v911
        %v1068 = vpack.c.b16 %v924, %v918
        %v1069 = vpack.c.b16 %v925, %v919
        %v1070 = vpack.c.b16 %v926, %v920
        %v1071 = vpack.c.b16 %v927, %v921
        %v1072 = vpack.c.b16 %v928, %v922
        %v1073 = vpack.c.b16 %v929, %v923
        %v1074 = vpack.c.b16 %v936, %v930
        %v1075 = vpack.c.b16 %v937, %v931
        %v1076 = vpack.c.b16 %v938, %v932
        %v1077 = vpack.c.b16 %v939, %v933
        %v1078 = vpack.c.b16 %v940, %v934
        %v1079 = vpack.c.b16 %v941, %v935
        %v1080 = vpack.c.b16 %v948, %v942
        %v1081 = vpack.c.b16 %v949, %v943
        %v1082 = vpack.c.b16 %v950, %v944
        %v1083 = vpack.c.b16 %v951, %v945
        %v1084 = vpack.c.b16 %v952, %v946
        %v1085 = vpack.c.b16 %v953, %v947
        %v1086 = vpack.c.b16 %v960, %v954
        %v1087 = vpack.c.b16 %v961, %v955
        %v1088 = vpack.c.b16 %v962, %v956
        %v1089 = vpack.c.b16 %v963, %v957
        %v1090 = vpack.c.b16 %v964, %v958
        %v1091 = vpack.c.b16 %v965, %v959
        %v1092 = vpack.c.b16 %v972, %v966
        %v1093 = vpack.c.b16 %v973, %v967
        %v1094 = vpack.c.b16 %v974, %v968
        %v1095 = vpack.c.b16 %v975, %v969
        %v1096 = vpack.c.b16 %v976, %v970
        %v1097 = vpack.c.b16 %v977, %v971
        %v1098 = vpack.c.b16 %v984, %v978
        %v1099 = vpack.c.b16 %v985, %v979
        %v1100 = vpack.c.b16 %v986, %v980
        %v1101 = vpack.c.b16 %v987, %v981
        %v1102 = vpack.c.b16 %v988, %v982
        %v1103 = vpack.c.b16 %v989, %v983
        %v1104 = vpack.c.b16 %v996, %v990
        %v1105 = vpack.c.b16 %v997, %v991
        %v1106 = vpack.c.b16 %v998, %v992
        %v1107 = vpack.c.b16 %v999, %v993
        %v1108 = vpack.c.b16 %v1000, %v994
        %v1109 = vpack.c.b16 %v1001, %v995
        %v1110 = vpack.c.b16 %v1008, %v1002
        %v1111 = vpack.c.b16 %v1009, %v1003
        %v1112 = vpack.c.b16 %v1010, %v1004
        %v1113 = vpack.c.b16 %v1011, %v1005
        %v1114 = vpack.c.b16 %v1012, %v1006
        %v1115 = vpack.c.b16 %v1013, %v1007
        %v1116 = vpack.c.b16 %v1020, %v1014
        %v1117 = vpack.c.b16 %v1021, %v1015
        %v1118 = vpack.c.b16 %v1022, %v1016
        %v1119 = vpack.c.b16 %v1023, %v1017
        %v1120 = vpack.c.b16 %v1024, %v1018
        %v1121 = vpack.c.b16 %v1025, %v1019
        %v1314 = vunpack.c.l.b16 %v635
        %v1315 = vunpack.c.l.b16 %v636
        %v1316 = vunpack.c.l.b16 %v637
        %v1317 = vunpack.c.l.b16 %v638
        %v1318 = vunpack.c.l.b16 %v639
        %v1319 = vunpack.c.l.b16 %v640
        %v1320 = vunpack.c.l.b16 %v641
        %v1321 = vunpack.c.l.b16 %v642
        %v1322 = vunpack.c.l.b16 %v643
        %v1323 = vunpack.c.l.b16 %v644
        %v1324 = vunpack.c.l.b16 %v645
        %v1325 = vunpack.c.l.b16 %v646
        %v1326 = vunpack.c.l.b16 %v647
        %v1327 = vunpack.c.l.b16 %v648
        %v1328 = vunpack.c.l.b16 %v649
        %v1329 = vunpack.c.l.b16 %v650
        %v1330 = vunpack.c.l.b16 %v651
        %v1331 = vunpack.c.l.b16 %v652
        %v1332 = vunpack.c.l.b16 %v653
        %v1333 = vunpack.c.l.b16 %v654
        %v1334 = vunpack.c.l.b16 %v655
        %v1335 = vunpack.c.l.b16 %v656
        %v1336 = vunpack.c.l.b16 %v657
        %v1337 = vunpack.c.l.b16 %v658
        %v1338 = vunpack.c.l.b16 %v659
        %v1339 = vunpack.c.l.b16 %v660
        %v1340 = vunpack.c.l.b16 %v661
        %v1341 = vunpack.c.l.b16 %v662
        %v1342 = vunpack.c.l.b16 %v663
        %v1343 = vunpack.c.l.b16 %v664
        %v1344 = vunpack.c.l.b16 %v665
        %v1345 = vunpack.c.l.b16 %v666
        %v1346 = vunpack.c.l.b16 %v667
        %v1347 = vunpack.c.l.b16 %v668
        %v1348 = vunpack.c.l.b16 %v669
        %v1349 = vunpack.c.l.b16 %v670
        %v1350 = vunpack.c.l.b16 %v671
        %v1351 = vunpack.c.l.b16 %v672
        %v1352 = vunpack.c.l.b16 %v673
        %v1353 = vunpack.c.l.b16 %v674
        %v1354 = vunpack.c.l.b16 %v675
        %v1355 = vunpack.c.l.b16 %v676
        %v1356 = vunpack.c.l.b16 %v677
        %v1357 = vunpack.c.l.b16 %v678
        %v1358 = vunpack.c.l.b16 %v679
        %v1359 = vunpack.c.l.b16 %v680
        %v1360 = vunpack.c.l.b16 %v681
        %v1361 = vunpack.c.l.b16 %v682
        %v1362 = vunpack.c.l.b16 %v683
        %v1363 = vunpack.c.l.b16 %v684
        %v1364 = vunpack.c.l.b16 %v685
        %v1365 = vunpack.c.l.b16 %v686
        %v1366 = vunpack.c.l.b16 %v687
        %v1367 = vunpack.c.l.b16 %v688
        %v1368 = vunpack.c.l.b16 %v689
        %v1369 = vunpack.c.l.b16 %v690
        %v1370 = vunpack.c.l.b16 %v691
        %v1371 = vunpack.c.l.b16 %v692
        %v1372 = vunpack.c.l.b16 %v693
        %v1373 = vunpack.c.l.b16 %v694
        %v1374 = vunpack.c.l.b16 %v695
        %v1375 = vunpack.c.l.b16 %v696
        %v1376 = vunpack.c.l.b16 %v697
        %v1377 = vunpack.c.l.b16 %v698
        %v1378 = vunpack.c.l.b16 %v699
        %v1379 = vunpack.c.l.b16 %v700
        %v1380 = vunpack.c.l.b16 %v701
        %v1381 = vunpack.c.l.b16 %v702
        %v1382 = vunpack.c.l.b16 %v703
        %v1383 = vunpack.c.l.b16 %v704
        %v1384 = vunpack.c.l.b16 %v705
        %v1385 = vunpack.c.l.b16 %v706
        %v1386 = vunpack.c.l.b16 %v707
        %v1387 = vunpack.c.l.b16 %v708
        %v1388 = vunpack.c.l.b16 %v709
        %v1389 = vunpack.c.l.b16 %v710
        %v1390 = vunpack.c.l.b16 %v711
        %v1391 = vunpack.c.l.b16 %v712
        %v1392 = vunpack.c.l.b16 %v713
        %v1393 = vunpack.c.l.b16 %v714
        %v1394 = vunpack.c.l.b16 %v715
        %v1395 = vunpack.c.l.b16 %v716
        %v1396 = vunpack.c.l.b16 %v717
        %v1397 = vunpack.c.l.b16 %v718
        %v1398 = vunpack.c.l.b16 %v719
        %v1399 = vunpack.c.l.b16 %v720
        %v1400 = vunpack.c.l.b16 %v721
        %v1401 = vunpack.c.l.b16 %v722
        %v1402 = vunpack.c.l.b16 %v723
        %v1403 = vunpack.c.l.b16 %v724
        %v1404 = vunpack.c.l.b16 %v725
        %v1405 = vunpack.c.l.b16 %v726
        %v1406 = vunpack.c.l.b16 %v727
        %v1407 = vunpack.c.l.b16 %v728
        %v1408 = vunpack.c.l.b16 %v729
        %v1409 = vunpack.c.l.b16 %v730
        %v1410 = vpack.c.b16 %v1315, %v1314
        %v1411 = vpack.c.b16 %v1317, %v1316
        %v1412 = vpack.c.b16 %v1319, %v1318
        %v1413 = vpack.c.b16 %v1321, %v1320
        %v1414 = vpack.c.b16 %v1323, %v1322
        %v1415 = vpack.c.b16 %v1325, %v1324
        %v1416 = vpack.c.b16 %v1327, %v1326
        %v1417 = vpack.c.b16 %v1329, %v1328
        %v1418 = vpack.c.b16 %v1331, %v1330
        %v1419 = vpack.c.b16 %v1333, %v1332
        %v1420 = vpack.c.b16 %v1335, %v1334
        %v1421 = vpack.c.b16 %v1337, %v1336
        %v1422 = vpack.c.b16 %v1339, %v1338
        %v1423 = vpack.c.b16 %v1341, %v1340
        %v1424 = vpack.c.b16 %v1343, %v1342
        %v1425 = vpack.c.b16 %v1345, %v1344
        %v1426 = vpack.c.b16 %v1347, %v1346
        %v1427 = vpack.c.b16 %v1349, %v1348
        %v1428 = vpack.c.b16 %v1351, %v1350
        %v1429 = vpack.c.b16 %v1353, %v1352
        %v1430 = vpack.c.b16 %v1355, %v1354
        %v1431 = vpack.c.b16 %v1357, %v1356
        %v1432 = vpack.c.b16 %v1359, %v1358
        %v1433 = vpack.c.b16 %v1361, %v1360
        %v1434 = vpack.c.b16 %v1363, %v1362
        %v1435 = vpack.c.b16 %v1365, %v1364
        %v1436 = vpack.c.b16 %v1367, %v1366
        %v1437 = vpack.c.b16 %v1369, %v1368
        %v1438 = vpack.c.b16 %v1371, %v1370
        %v1439 = vpack.c.b16 %v1373, %v1372
        %v1440 = vpack.c.b16 %v1375, %v1374
        %v1441 = vpack.c.b16 %v1377, %v1376
        %v1442 = vpack.c.b16 %v1379, %v1378
        %v1443 = vpack.c.b16 %v1381, %v1380
        %v1444 = vpack.c.b16 %v1383, %v1382
        %v1445 = vpack.c.b16 %v1385, %v1384
        %v1446 = vpack.c.b16 %v1387, %v1386
        %v1447 = vpack.c.b16 %v1389, %v1388
        %v1448 = vpack.c.b16 %v1391, %v1390
        %v1449 = vpack.c.b16 %v1393, %v1392
        %v1450 = vpack.c.b16 %v1395, %v1394
        %v1451 = vpack.c.b16 %v1397, %v1396
        %v1452 = vpack.c.b16 %v1399, %v1398
        %v1453 = vpack.c.b16 %v1401, %v1400
        %v1454 = vpack.c.b16 %v1403, %v1402
        %v1455 = vpack.c.b16 %v1405, %v1404
        %v1456 = vpack.c.b16 %v1407, %v1406
        %v1457 = vpack.c.b16 %v1409, %v1408
        %1506 = vmatprep.subr.bf16.mxu0 0
        %1507 = vmatpush1.bf16.msra.mxu0 %v1410
        %1508 = vmatprep.subr.bf16.mxu0 0
        %1509 = vmatpush1.bf16.msra.mxu0 %v1411
        %1510 = vmatprep.subr.bf16.mxu0 0
        %1511 = vmatpush1.bf16.msra.mxu0 %v1412
        %1512 = vmatprep.subr.bf16.mxu0 0
        %1513 = vmatpush1.bf16.msra.mxu0 %v1413
        %1514 = vmatprep.subr.bf16.mxu0 0
        %1515 = vmatpush1.bf16.msra.mxu0 %v1414
        %1516 = vmatprep.subr.bf16.mxu0 0
        %1517 = vmatpush1.bf16.msra.mxu0 %v1415
        %1518 = vmatprep.subr.bf16.mxu0 0
        %1519 = vmatpush1.bf16.msra.mxu0 %v1416
        %1520 = vmatprep.subr.bf16.mxu0 0
        %1521 = vmatpush1.bf16.msra.mxu0 %v1417
        %1522 = vmatprep.subr.bf16.mxu0 0
        %1523 = vmatpush1.bf16.msra.mxu0 %v1418
        %1524 = vmatprep.subr.bf16.mxu0 0
        %1525 = vmatpush1.bf16.msra.mxu0 %v1419
        %1526 = vmatprep.subr.bf16.mxu0 0
        %1527 = vmatpush1.bf16.msra.mxu0 %v1420
        %1528 = vmatprep.subr.bf16.mxu0 0
        %1529 = vmatpush1.bf16.msra.mxu0 %v1421
        %1530 = vmatprep.subr.bf16.mxu0 0
        %1531 = vmatpush1.bf16.msra.mxu0 %v1422
        %1532 = vmatprep.subr.bf16.mxu0 0
        %1533 = vmatpush1.bf16.msra.mxu0 %v1423
        %1534 = vmatprep.subr.bf16.mxu0 0
        %1535 = vmatpush1.bf16.msra.mxu0 %v1424
        %1536 = vmatprep.subr.bf16.mxu0 0
        %1537 = vmatpush1.bf16.msra.mxu0 %v1425
        %1538 = vmatprep.mubr.bf16.mxu0 %v1027
        %1539 = vmatmul.mubr.bf16.gmra.mrb[0].mxu0 %v1026
        %v1540 = vpop.f32.mrb[0].mxu0
        %v1541 = vadd.f32 %v736, %v1540
        %v1542 = vpop.f32.mrb[0].mxu0
        %v1543 = vpop.f32.mrb[0].mxu0
        %v1544 = vadd.f32 %v736, %v1543
        %v1545 = vpop.f32.mrb[0].mxu0
        %1546 = vmatprep.mubr.bf16.mxu0 %v1033
        %1547 = vmatmul.mubr.bf16.gmra.mrb[0].mxu0 %v1032
        %v1548 = vpop.f32.mrb[0].mxu0
        %v1549 = vadd.f32 %v736, %v1548
        %v1550 = vpop.f32.mrb[0].mxu0
        %v1551 = vpop.f32.mrb[0].mxu0
        %v1552 = vadd.f32 %v736, %v1551
        %v1553 = vpop.f32.mrb[0].mxu0
        %1554 = vmatprep.mubr.bf16.mxu0 %v1039
        %1555 = vmatmul.mubr.bf16.gmra.mrb[0].mxu0 %v1038
        %v1556 = vpop.f32.mrb[0].mxu0
        %v1557 = vadd.f32 %v736, %v1556
        %v1558 = vpop.f32.mrb[0].mxu0
        %v1559 = vpop.f32.mrb[0].mxu0
        %v1560 = vadd.f32 %v736, %v1559
        %v1561 = vpop.f32.mrb[0].mxu0
        %1562 = vmatprep.mubr.bf16.mxu0 %v1045
        %1563 = vmatmul.mubr.bf16.gmra.mrb[0].mxu0 %v1044
        %v1564 = vpop.f32.mrb[0].mxu0
        %v1565 = vadd.f32 %v736, %v1564
        %v1566 = vpop.f32.mrb[0].mxu0
        %v1567 = vpop.f32.mrb[0].mxu0
        %v1568 = vadd.f32 %v736, %v1567
        %v1569 = vpop.f32.mrb[0].mxu0
        %1570 = vmatprep.mubr.bf16.mxu0 %v1051
        %1571 = vmatmul.mubr.bf16.gmra.mrb[0].mxu0 %v1050
        %v1572 = vpop.f32.mrb[0].mxu0
        %v1573 = vadd.f32 %v736, %v1572
        %v1574 = vpop.f32.mrb[0].mxu0
        %v1575 = vpop.f32.mrb[0].mxu0
        %v1576 = vadd.f32 %v736, %v1575
        %v1577 = vpop.f32.mrb[0].mxu0
        %1578 = vmatprep.mubr.bf16.mxu0 %v1057
        %1579 = vmatmul.mubr.bf16.gmra.mrb[0].mxu0 %v1056
        %v1580 = vpop.f32.mrb[0].mxu0
        %v1581 = vadd.f32 %v736, %v1580
        %v1582 = vpop.f32.mrb[0].mxu0
        %v1583 = vpop.f32.mrb[0].mxu0
        %v1584 = vadd.f32 %v736, %v1583
        %v1585 = vpop.f32.mrb[0].mxu0
        %1586 = vmatprep.mubr.bf16.mxu0 %v1063
        %1587 = vmatmul.mubr.bf16.gmra.mrb[0].mxu0 %v1062
        %v1588 = vpop.f32.mrb[0].mxu0
        %v1589 = vadd.f32 %v736, %v1588
        %v1590 = vpop.f32.mrb[0].mxu0
        %v1591 = vpop.f32.mrb[0].mxu0
        %v1592 = vadd.f32 %v736, %v1591
        %v1593 = vpop.f32.mrb[0].mxu0
        %1594 = vmatprep.mubr.bf16.mxu0 %v1069
        %1595 = vmatmul.mubr.bf16.gmra.mrb[0].mxu0 %v1068
        %v1596 = vpop.f32.mrb[0].mxu0
        %v1597 = vadd.f32 %v736, %v1596
        %v1598 = vpop.f32.mrb[0].mxu0
        %v1599 = vpop.f32.mrb[0].mxu0
        %v1600 = vadd.f32 %v736, %v1599
        %v1601 = vpop.f32.mrb[0].mxu0
        %1602 = vmatprep.mubr.bf16.mxu0 %v1075
        %1603 = vmatmul.mubr.bf16.gmra.mrb[0].mxu0 %v1074
        %v1604 = vpop.f32.mrb[0].mxu0
        %v1605 = vadd.f32 %v736, %v1604
        %v1606 = vpop.f32.mrb[0].mxu0
        %v1607 = vpop.f32.mrb[0].mxu0
        %v1608 = vadd.f32 %v736, %v1607
        %v1609 = vpop.f32.mrb[0].mxu0
        %1610 = vmatprep.mubr.bf16.mxu0 %v1081
        %1611 = vmatmul.mubr.bf16.gmra.mrb[0].mxu0 %v1080
        %v1612 = vpop.f32.mrb[0].mxu0
        %v1613 = vadd.f32 %v736, %v1612
        %v1614 = vpop.f32.mrb[0].mxu0
        %v1615 = vpop.f32.mrb[0].mxu0
        %v1616 = vadd.f32 %v736, %v1615
        %v1617 = vpop.f32.mrb[0].mxu0
        %1618 = vmatprep.mubr.bf16.mxu0 %v1087
        %1619 = vmatmul.mubr.bf16.gmra.mrb[0].mxu0 %v1086
        %v1620 = vpop.f32.mrb[0].mxu0
        %v1621 = vadd.f32 %v736, %v1620
        %v1622 = vpop.f32.mrb[0].mxu0
        %v1623 = vpop.f32.mrb[0].mxu0
        %v1624 = vadd.f32 %v736, %v1623
        %v1625 = vpop.f32.mrb[0].mxu0
        %1626 = vmatprep.mubr.bf16.mxu0 %v1093
        %1627 = vmatmul.mubr.bf16.gmra.mrb[0].mxu0 %v1092
        %v1628 = vpop.f32.mrb[0].mxu0
        %v1629 = vadd.f32 %v736, %v1628
        %v1630 = vpop.f32.mrb[0].mxu0
        %v1631 = vpop.f32.mrb[0].mxu0
        %v1632 = vadd.f32 %v736, %v1631
        %v1633 = vpop.f32.mrb[0].mxu0
        %1634 = vmatprep.mubr.bf16.mxu0 %v1099
        %1635 = vmatmul.mubr.bf16.gmra.mrb[0].mxu0 %v1098
        %v1636 = vpop.f32.mrb[0].mxu0
        %v1637 = vadd.f32 %v736, %v1636
        %v1638 = vpop.f32.mrb[0].mxu0
        %v1639 = vpop.f32.mrb[0].mxu0
        %v1640 = vadd.f32 %v736, %v1639
        %v1641 = vpop.f32.mrb[0].mxu0
        %1642 = vmatprep.mubr.bf16.mxu0 %v1105
        %1643 = vmatmul.mubr.bf16.gmra.mrb[0].mxu0 %v1104
        %v1644 = vpop.f32.mrb[0].mxu0
        %v1645 = vadd.f32 %v736, %v1644
        %v1646 = vpop.f32.mrb[0].mxu0
        %v1647 = vpop.f32.mrb[0].mxu0
        %v1648 = vadd.f32 %v736, %v1647
        %v1649 = vpop.f32.mrb[0].mxu0
        %1650 = vmatprep.mubr.bf16.mxu0 %v1111
        %1651 = vmatmul.mubr.bf16.gmra.mrb[0].mxu0 %v1110
        %v1652 = vpop.f32.mrb[0].mxu0
        %v1653 = vadd.f32 %v736, %v1652
        %v1654 = vpop.f32.mrb[0].mxu0
        %v1655 = vpop.f32.mrb[0].mxu0
        %v1656 = vadd.f32 %v736, %v1655
        %v1657 = vpop.f32.mrb[0].mxu0
        %1658 = vmatprep.mubr.bf16.mxu0 %v1117
        %1659 = vmatmul.mubr.bf16.gmra.mrb[0].mxu0 %v1116
        %v1660 = vpop.f32.mrb[0].mxu0
        %v1661 = vadd.f32 %v736, %v1660
        %v1662 = vpop.f32.mrb[0].mxu0
        %v1663 = vpop.f32.mrb[0].mxu0
        %v1664 = vadd.f32 %v736, %v1663
        %v1665 = vpop.f32.mrb[0].mxu0
        %1666 = vdwg.mxu0
        %1667 = vmatprep.subr.bf16.mxu0 0
        %1668 = vmatpush1.bf16.msra.mxu0 %v1426
        %1669 = vmatprep.subr.bf16.mxu0 0
        %1670 = vmatpush1.bf16.msra.mxu0 %v1427
        %1671 = vmatprep.subr.bf16.mxu0 0
        %1672 = vmatpush1.bf16.msra.mxu0 %v1428
        %1673 = vmatprep.subr.bf16.mxu0 0
        %1674 = vmatpush1.bf16.msra.mxu0 %v1429
        %1675 = vmatprep.subr.bf16.mxu0 0
        %1676 = vmatpush1.bf16.msra.mxu0 %v1430
        %1677 = vmatprep.subr.bf16.mxu0 0
        %1678 = vmatpush1.bf16.msra.mxu0 %v1431
        %1679 = vmatprep.subr.bf16.mxu0 0
        %1680 = vmatpush1.bf16.msra.mxu0 %v1432
        %1681 = vmatprep.subr.bf16.mxu0 0
        %1682 = vmatpush1.bf16.msra.mxu0 %v1433
        %1683 = vmatprep.subr.bf16.mxu0 0
        %1684 = vmatpush1.bf16.msra.mxu0 %v1434
        %1685 = vmatprep.subr.bf16.mxu0 0
        %1686 = vmatpush1.bf16.msra.mxu0 %v1435
        %1687 = vmatprep.subr.bf16.mxu0 0
        %1688 = vmatpush1.bf16.msra.mxu0 %v1436
        %1689 = vmatprep.subr.bf16.mxu0 0
        %1690 = vmatpush1.bf16.msra.mxu0 %v1437
        %1691 = vmatprep.subr.bf16.mxu0 0
        %1692 = vmatpush1.bf16.msra.mxu0 %v1438
        %1693 = vmatprep.subr.bf16.mxu0 0
        %1694 = vmatpush1.bf16.msra.mxu0 %v1439
        %1695 = vmatprep.subr.bf16.mxu0 0
        %1696 = vmatpush1.bf16.msra.mxu0 %v1440
        %1697 = vmatprep.subr.bf16.mxu0 0
        %1698 = vmatpush1.bf16.msra.mxu0 %v1441
        %1699 = vmatprep.mubr.bf16.mxu0 %v1029
        %1700 = vmatmul.mubr.bf16.gmra.mrb[0].mxu0 %v1028
        %v1701 = vpop.f32.mrb[0].mxu0
        %v1702 = vadd.f32 %v1541, %v1701
        %v1703 = vpop.f32.mrb[0].mxu0
        %v1704 = vpop.f32.mrb[0].mxu0
        %v1705 = vadd.f32 %v1544, %v1704
        %v1706 = vpop.f32.mrb[0].mxu0
        %1707 = vmatprep.mubr.bf16.mxu0 %v1035
        %1708 = vmatmul.mubr.bf16.gmra.mrb[0].mxu0 %v1034
        %v1709 = vpop.f32.mrb[0].mxu0
        %v1710 = vadd.f32 %v1549, %v1709
        %v1711 = vpop.f32.mrb[0].mxu0
        %v1712 = vpop.f32.mrb[0].mxu0
        %v1713 = vadd.f32 %v1552, %v1712
        %v1714 = vpop.f32.mrb[0].mxu0
        %1715 = vmatprep.mubr.bf16.mxu0 %v1041
        %1716 = vmatmul.mubr.bf16.gmra.mrb[0].mxu0 %v1040
        %v1717 = vpop.f32.mrb[0].mxu0
        %v1718 = vadd.f32 %v1557, %v1717
        %v1719 = vpop.f32.mrb[0].mxu0
        %v1720 = vpop.f32.mrb[0].mxu0
        %v1721 = vadd.f32 %v1560, %v1720
        %v1722 = vpop.f32.mrb[0].mxu0
        %1723 = vmatprep.mubr.bf16.mxu0 %v1047
        %1724 = vmatmul.mubr.bf16.gmra.mrb[0].mxu0 %v1046
        %v1725 = vpop.f32.mrb[0].mxu0
        %v1726 = vadd.f32 %v1565, %v1725
        %v1727 = vpop.f32.mrb[0].mxu0
        %v1728 = vpop.f32.mrb[0].mxu0
        %v1729 = vadd.f32 %v1568, %v1728
        %v1730 = vpop.f32.mrb[0].mxu0
        %1731 = vmatprep.mubr.bf16.mxu0 %v1053
        %1732 = vmatmul.mubr.bf16.gmra.mrb[0].mxu0 %v1052
        %v1733 = vpop.f32.mrb[0].mxu0
        %v1734 = vadd.f32 %v1573, %v1733
        %v1735 = vpop.f32.mrb[0].mxu0
        %v1736 = vpop.f32.mrb[0].mxu0
        %v1737 = vadd.f32 %v1576, %v1736
        %v1738 = vpop.f32.mrb[0].mxu0
        %1739 = vmatprep.mubr.bf16.mxu0 %v1059
        %1740 = vmatmul.mubr.bf16.gmra.mrb[0].mxu0 %v1058
        %v1741 = vpop.f32.mrb[0].mxu0
        %v1742 = vadd.f32 %v1581, %v1741
        %v1743 = vpop.f32.mrb[0].mxu0
        %v1744 = vpop.f32.mrb[0].mxu0
        %v1745 = vadd.f32 %v1584, %v1744
        %v1746 = vpop.f32.mrb[0].mxu0
        %1747 = vmatprep.mubr.bf16.mxu0 %v1065
        %1748 = vmatmul.mubr.bf16.gmra.mrb[0].mxu0 %v1064
        %v1749 = vpop.f32.mrb[0].mxu0
        %v1750 = vadd.f32 %v1589, %v1749
        %v1751 = vpop.f32.mrb[0].mxu0
        %v1752 = vpop.f32.mrb[0].mxu0
        %v1753 = vadd.f32 %v1592, %v1752
        %v1754 = vpop.f32.mrb[0].mxu0
        %1755 = vmatprep.mubr.bf16.mxu0 %v1071
        %1756 = vmatmul.mubr.bf16.gmra.mrb[0].mxu0 %v1070
        %v1757 = vpop.f32.mrb[0].mxu0
        %v1758 = vadd.f32 %v1597, %v1757
        %v1759 = vpop.f32.mrb[0].mxu0
        %v1760 = vpop.f32.mrb[0].mxu0
        %v1761 = vadd.f32 %v1600, %v1760
        %v1762 = vpop.f32.mrb[0].mxu0
        %1763 = vmatprep.mubr.bf16.mxu0 %v1077
        %1764 = vmatmul.mubr.bf16.gmra.mrb[0].mxu0 %v1076
        %v1765 = vpop.f32.mrb[0].mxu0
        %v1766 = vadd.f32 %v1605, %v1765
        %v1767 = vpop.f32.mrb[0].mxu0
        %v1768 = vpop.f32.mrb[0].mxu0
        %v1769 = vadd.f32 %v1608, %v1768
        %v1770 = vpop.f32.mrb[0].mxu0
        %1771 = vmatprep.mubr.bf16.mxu0 %v1083
        %1772 = vmatmul.mubr.bf16.gmra.mrb[0].mxu0 %v1082
        %v1773 = vpop.f32.mrb[0].mxu0
        %v1774 = vadd.f32 %v1613, %v1773
        %v1775 = vpop.f32.mrb[0].mxu0
        %v1776 = vpop.f32.mrb[0].mxu0
        %v1777 = vadd.f32 %v1616, %v1776
        %v1778 = vpop.f32.mrb[0].mxu0
        %1779 = vmatprep.mubr.bf16.mxu0 %v1089
        %1780 = vmatmul.mubr.bf16.gmra.mrb[0].mxu0 %v1088
        %v1781 = vpop.f32.mrb[0].mxu0
        %v1782 = vadd.f32 %v1621, %v1781
        %v1783 = vpop.f32.mrb[0].mxu0
        %v1784 = vpop.f32.mrb[0].mxu0
        %v1785 = vadd.f32 %v1624, %v1784
        %v1786 = vpop.f32.mrb[0].mxu0
        %1787 = vmatprep.mubr.bf16.mxu0 %v1095
        %1788 = vmatmul.mubr.bf16.gmra.mrb[0].mxu0 %v1094
        %v1789 = vpop.f32.mrb[0].mxu0
        %v1790 = vadd.f32 %v1629, %v1789
        %v1791 = vpop.f32.mrb[0].mxu0
        %v1792 = vpop.f32.mrb[0].mxu0
        %v1793 = vadd.f32 %v1632, %v1792
        %v1794 = vpop.f32.mrb[0].mxu0
        %1795 = vmatprep.mubr.bf16.mxu0 %v1101
        %1796 = vmatmul.mubr.bf16.gmra.mrb[0].mxu0 %v1100
        %v1797 = vpop.f32.mrb[0].mxu0
        %v1798 = vadd.f32 %v1637, %v1797
        %v1799 = vpop.f32.mrb[0].mxu0
        %v1800 = vpop.f32.mrb[0].mxu0
        %v1801 = vadd.f32 %v1640, %v1800
        %v1802 = vpop.f32.mrb[0].mxu0
        %1803 = vmatprep.mubr.bf16.mxu0 %v1107
        %1804 = vmatmul.mubr.bf16.gmra.mrb[0].mxu0 %v1106
        %v1805 = vpop.f32.mrb[0].mxu0
        %v1806 = vadd.f32 %v1645, %v1805
        %v1807 = vpop.f32.mrb[0].mxu0
        %v1808 = vpop.f32.mrb[0].mxu0
        %v1809 = vadd.f32 %v1648, %v1808
        %v1810 = vpop.f32.mrb[0].mxu0
        %1811 = vmatprep.mubr.bf16.mxu0 %v1113
        %1812 = vmatmul.mubr.bf16.gmra.mrb[0].mxu0 %v1112
        %v1813 = vpop.f32.mrb[0].mxu0
        %v1814 = vadd.f32 %v1653, %v1813
        %v1815 = vpop.f32.mrb[0].mxu0
        %v1816 = vpop.f32.mrb[0].mxu0
        %v1817 = vadd.f32 %v1656, %v1816
        %v1818 = vpop.f32.mrb[0].mxu0
        %1819 = vmatprep.mubr.bf16.mxu0 %v1119
        %1820 = vmatmul.mubr.bf16.gmra.mrb[0].mxu0 %v1118
        %v1821 = vpop.f32.mrb[0].mxu0
        %v1822 = vadd.f32 %v1661, %v1821
        %v1823 = vpop.f32.mrb[0].mxu0
        %v1824 = vpop.f32.mrb[0].mxu0
        %v1825 = vadd.f32 %v1664, %v1824
        %v1826 = vpop.f32.mrb[0].mxu0
        %1827 = vdwg.mxu0
        %1828 = vmatprep.subr.bf16.mxu0 0
        %1829 = vmatpush1.bf16.msra.mxu0 %v1442
        %1830 = vmatprep.subr.bf16.mxu0 0
        %1831 = vmatpush1.bf16.msra.mxu0 %v1443
        %1832 = vmatprep.subr.bf16.mxu0 0
        %1833 = vmatpush1.bf16.msra.mxu0 %v1444
        %1834 = vmatprep.subr.bf16.mxu0 0
        %1835 = vmatpush1.bf16.msra.mxu0 %v1445
        %1836 = vmatprep.subr.bf16.mxu0 0
        %1837 = vmatpush1.bf16.msra.mxu0 %v1446
        %1838 = vmatprep.subr.bf16.mxu0 0
        %1839 = vmatpush1.bf16.msra.mxu0 %v1447
        %1840 = vmatprep.subr.bf16.mxu0 0
        %1841 = vmatpush1.bf16.msra.mxu0 %v1448
        %1842 = vmatprep.subr.bf16.mxu0 0
        %1843 = vmatpush1.bf16.msra.mxu0 %v1449
        %1844 = vmatprep.subr.bf16.mxu0 0
        %1845 = vmatpush1.bf16.msra.mxu0 %v1450
        %1846 = vmatprep.subr.bf16.mxu0 0
        %1847 = vmatpush1.bf16.msra.mxu0 %v1451
        %1848 = vmatprep.subr.bf16.mxu0 0
        %1849 = vmatpush1.bf16.msra.mxu0 %v1452
        %1850 = vmatprep.subr.bf16.mxu0 0
        %1851 = vmatpush1.bf16.msra.mxu0 %v1453
        %1852 = vmatprep.subr.bf16.mxu0 0
        %1853 = vmatpush1.bf16.msra.mxu0 %v1454
        %1854 = vmatprep.subr.bf16.mxu0 0
        %1855 = vmatpush1.bf16.msra.mxu0 %v1455
        %1856 = vmatprep.subr.bf16.mxu0 0
        %1857 = vmatpush1.bf16.msra.mxu0 %v1456
        %1858 = vmatprep.subr.bf16.mxu0 0
        %1859 = vmatpush1.bf16.msra.mxu0 %v1457
        %1860 = vmatprep.mubr.bf16.mxu0 %v1031
        %1861 = vmatmul.mubr.bf16.gmra.mrb[0].mxu0 %v1030
        %v1862 = vpop.f32.mrb[0].mxu0
        %v1863 = vadd.f32 %v1702, %v1862
        %v1864 = vpop.f32.mrb[0].mxu0
        %v1865 = vpop.f32.mrb[0].mxu0
        %v1866 = vadd.f32 %v1705, %v1865
        %v1867 = vpop.f32.mrb[0].mxu0
        %1868 = vmatprep.mubr.bf16.mxu0 %v1037
        %1869 = vmatmul.mubr.bf16.gmra.mrb[0].mxu0 %v1036
        %v1870 = vpop.f32.mrb[0].mxu0
        %v1871 = vadd.f32 %v1710, %v1870
        %v1872 = vpop.f32.mrb[0].mxu0
        %v1873 = vpop.f32.mrb[0].mxu0
        %v1874 = vadd.f32 %v1713, %v1873
        %v1875 = vpop.f32.mrb[0].mxu0
        %1876 = vmatprep.mubr.bf16.mxu0 %v1043
        %1877 = vmatmul.mubr.bf16.gmra.mrb[0].mxu0 %v1042
        %v1878 = vpop.f32.mrb[0].mxu0
        %v1879 = vadd.f32 %v1718, %v1878
        %v1880 = vpop.f32.mrb[0].mxu0
        %v1881 = vpop.f32.mrb[0].mxu0
        %v1882 = vadd.f32 %v1721, %v1881
        %v1883 = vpop.f32.mrb[0].mxu0
        %1884 = vmatprep.mubr.bf16.mxu0 %v1049
        %1885 = vmatmul.mubr.bf16.gmra.mrb[0].mxu0 %v1048
        %v1886 = vpop.f32.mrb[0].mxu0
        %v1887 = vadd.f32 %v1726, %v1886
        %v1888 = vpop.f32.mrb[0].mxu0
        %v1889 = vpop.f32.mrb[0].mxu0
        %v1890 = vadd.f32 %v1729, %v1889
        %v1891 = vpop.f32.mrb[0].mxu0
        %1892 = vmatprep.mubr.bf16.mxu0 %v1055
        %1893 = vmatmul.mubr.bf16.gmra.mrb[0].mxu0 %v1054
        %v1894 = vpop.f32.mrb[0].mxu0
        %v1895 = vadd.f32 %v1734, %v1894
        %v1896 = vpop.f32.mrb[0].mxu0
        %v1897 = vpop.f32.mrb[0].mxu0
        %v1898 = vadd.f32 %v1737, %v1897
        %v1899 = vpop.f32.mrb[0].mxu0
        %1900 = vmatprep.mubr.bf16.mxu0 %v1061
        %1901 = vmatmul.mubr.bf16.gmra.mrb[0].mxu0 %v1060
        %v1902 = vpop.f32.mrb[0].mxu0
        %v1903 = vadd.f32 %v1742, %v1902
        %v1904 = vpop.f32.mrb[0].mxu0
        %v1905 = vpop.f32.mrb[0].mxu0
        %v1906 = vadd.f32 %v1745, %v1905
        %v1907 = vpop.f32.mrb[0].mxu0
        %1908 = vmatprep.mubr.bf16.mxu0 %v1067
        %1909 = vmatmul.mubr.bf16.gmra.mrb[0].mxu0 %v1066
        %v1910 = vpop.f32.mrb[0].mxu0
        %v1911 = vadd.f32 %v1750, %v1910
        %v1912 = vpop.f32.mrb[0].mxu0
        %v1913 = vpop.f32.mrb[0].mxu0
        %v1914 = vadd.f32 %v1753, %v1913
        %v1915 = vpop.f32.mrb[0].mxu0
        %1916 = vmatprep.mubr.bf16.mxu0 %v1073
        %1917 = vmatmul.mubr.bf16.gmra.mrb[0].mxu0 %v1072
        %v1918 = vpop.f32.mrb[0].mxu0
        %v1919 = vadd.f32 %v1758, %v1918
        %v1920 = vpop.f32.mrb[0].mxu0
        %v1921 = vpop.f32.mrb[0].mxu0
        %v1922 = vadd.f32 %v1761, %v1921
        %v1923 = vpop.f32.mrb[0].mxu0
        %1924 = vmatprep.mubr.bf16.mxu0 %v1079
        %1925 = vmatmul.mubr.bf16.gmra.mrb[0].mxu0 %v1078
        %v1926 = vpop.f32.mrb[0].mxu0
        %v1927 = vadd.f32 %v1766, %v1926
        %v1928 = vpop.f32.mrb[0].mxu0
        %v1929 = vpop.f32.mrb[0].mxu0
        %v1930 = vadd.f32 %v1769, %v1929
        %v1931 = vpop.f32.mrb[0].mxu0
        %1932 = vmatprep.mubr.bf16.mxu0 %v1085
        %1933 = vmatmul.mubr.bf16.gmra.mrb[0].mxu0 %v1084
        %v1934 = vpop.f32.mrb[0].mxu0
        %v1935 = vadd.f32 %v1774, %v1934
        %v1936 = vpop.f32.mrb[0].mxu0
        %v1937 = vpop.f32.mrb[0].mxu0
        %v1938 = vadd.f32 %v1777, %v1937
        %v1939 = vpop.f32.mrb[0].mxu0
        %1940 = vmatprep.mubr.bf16.mxu0 %v1091
        %1941 = vmatmul.mubr.bf16.gmra.mrb[0].mxu0 %v1090
        %v1942 = vpop.f32.mrb[0].mxu0
        %v1943 = vadd.f32 %v1782, %v1942
        %v1944 = vpop.f32.mrb[0].mxu0
        %v1945 = vpop.f32.mrb[0].mxu0
        %v1946 = vadd.f32 %v1785, %v1945
        %v1947 = vpop.f32.mrb[0].mxu0
        %1948 = vmatprep.mubr.bf16.mxu0 %v1097
        %1949 = vmatmul.mubr.bf16.gmra.mrb[0].mxu0 %v1096
        %v1950 = vpop.f32.mrb[0].mxu0
        %v1951 = vadd.f32 %v1790, %v1950
        %v1952 = vpop.f32.mrb[0].mxu0
        %v1953 = vpop.f32.mrb[0].mxu0
        %v1954 = vadd.f32 %v1793, %v1953
        %v1955 = vpop.f32.mrb[0].mxu0
        %1956 = vmatprep.mubr.bf16.mxu0 %v1103
        %1957 = vmatmul.mubr.bf16.gmra.mrb[0].mxu0 %v1102
        %v1958 = vpop.f32.mrb[0].mxu0
        %v1959 = vadd.f32 %v1798, %v1958
        %v1960 = vpop.f32.mrb[0].mxu0
        %v1961 = vpop.f32.mrb[0].mxu0
        %v1962 = vadd.f32 %v1801, %v1961
        %v1963 = vpop.f32.mrb[0].mxu0
        %1964 = vmatprep.mubr.bf16.mxu0 %v1109
        %1965 = vmatmul.mubr.bf16.gmra.mrb[0].mxu0 %v1108
        %v1966 = vpop.f32.mrb[0].mxu0
        %v1967 = vadd.f32 %v1806, %v1966
        %v1968 = vpop.f32.mrb[0].mxu0
        %v1969 = vpop.f32.mrb[0].mxu0
        %v1970 = vadd.f32 %v1809, %v1969
        %v1971 = vpop.f32.mrb[0].mxu0
        %1972 = vmatprep.mubr.bf16.mxu0 %v1115
        %1973 = vmatmul.mubr.bf16.gmra.mrb[0].mxu0 %v1114
        %v1974 = vpop.f32.mrb[0].mxu0
        %v1975 = vadd.f32 %v1814, %v1974
        %v1976 = vpop.f32.mrb[0].mxu0
        %v1977 = vpop.f32.mrb[0].mxu0
        %v1978 = vadd.f32 %v1817, %v1977
        %v1979 = vpop.f32.mrb[0].mxu0
        %1980 = vmatprep.mubr.bf16.mxu0 %v1121
        %1981 = vmatmul.mubr.bf16.gmra.mrb[0].mxu0 %v1120
        %v1982 = vpop.f32.mrb[0].mxu0
        %v1983 = vadd.f32 %v1822, %v1982
        %v1984 = vpop.f32.mrb[0].mxu0
        %v1985 = vpop.f32.mrb[0].mxu0
        %v1986 = vadd.f32 %v1825, %v1985
        %v1987 = vpop.f32.mrb[0].mxu0
        %1988 = vdwg.mxu0
        %vm1989 = vcmp.gt.f32.partialorder %v1863, 0.0
        %vm1990 = vcmp.gt.f32.partialorder %v1866, 0.0
        %vm1991 = vcmp.gt.f32.partialorder %v1871, 0.0
        %vm1992 = vcmp.gt.f32.partialorder %v1874, 0.0
        %vm1993 = vcmp.gt.f32.partialorder %v1879, 0.0
        %vm1994 = vcmp.gt.f32.partialorder %v1882, 0.0
        %vm1995 = vcmp.gt.f32.partialorder %v1887, 0.0
        %vm1996 = vcmp.gt.f32.partialorder %v1890, 0.0
        %vm1997 = vcmp.gt.f32.partialorder %v1895, 0.0
        %vm1998 = vcmp.gt.f32.partialorder %v1898, 0.0
        %vm1999 = vcmp.gt.f32.partialorder %v1903, 0.0
        %vm2000 = vcmp.gt.f32.partialorder %v1906, 0.0
        %vm2001 = vcmp.gt.f32.partialorder %v1911, 0.0
        %vm2002 = vcmp.gt.f32.partialorder %v1914, 0.0
        %vm2003 = vcmp.gt.f32.partialorder %v1919, 0.0
        %vm2004 = vcmp.gt.f32.partialorder %v1922, 0.0
        %vm2005 = vcmp.gt.f32.partialorder %v1927, 0.0
        %vm2006 = vcmp.gt.f32.partialorder %v1930, 0.0
        %vm2007 = vcmp.gt.f32.partialorder %v1935, 0.0
        %vm2008 = vcmp.gt.f32.partialorder %v1938, 0.0
        %vm2009 = vcmp.gt.f32.partialorder %v1943, 0.0
        %vm2010 = vcmp.gt.f32.partialorder %v1946, 0.0
        %vm2011 = vcmp.gt.f32.partialorder %v1951, 0.0
        %vm2012 = vcmp.gt.f32.partialorder %v1954, 0.0
        %vm2013 = vcmp.gt.f32.partialorder %v1959, 0.0
        %vm2014 = vcmp.gt.f32.partialorder %v1962, 0.0
        %vm2015 = vcmp.gt.f32.partialorder %v1967, 0.0
        %vm2016 = vcmp.gt.f32.partialorder %v1970, 0.0
        %vm2017 = vcmp.gt.f32.partialorder %v1975, 0.0
        %vm2018 = vcmp.gt.f32.partialorder %v1978, 0.0
        %vm2019 = vcmp.gt.f32.partialorder %v1983, 0.0
        %vm2020 = vcmp.gt.f32.partialorder %v1986, 0.0
        %v2021 = vmul.f32 %v1863, 0.01
        %v2022 = vmul.f32 %v1866, 0.01
        %v2023 = vmul.f32 %v1871, 0.01
        %v2024 = vmul.f32 %v1874, 0.01
        %v2025 = vmul.f32 %v1879, 0.01
        %v2026 = vmul.f32 %v1882, 0.01
        %v2027 = vmul.f32 %v1887, 0.01
        %v2028 = vmul.f32 %v1890, 0.01
        %v2029 = vmul.f32 %v1895, 0.01
        %v2030 = vmul.f32 %v1898, 0.01
        %v2031 = vmul.f32 %v1903, 0.01
        %v2032 = vmul.f32 %v1906, 0.01
        %v2033 = vmul.f32 %v1911, 0.01
        %v2034 = vmul.f32 %v1914, 0.01
        %v2035 = vmul.f32 %v1919, 0.01
        %v2036 = vmul.f32 %v1922, 0.01
        %v2037 = vmul.f32 %v1927, 0.01
        %v2038 = vmul.f32 %v1930, 0.01
        %v2039 = vmul.f32 %v1935, 0.01
        %v2040 = vmul.f32 %v1938, 0.01
        %v2041 = vmul.f32 %v1943, 0.01
        %v2042 = vmul.f32 %v1946, 0.01
        %v2043 = vmul.f32 %v1951, 0.01
        %v2044 = vmul.f32 %v1954, 0.01
        %v2045 = vmul.f32 %v1959, 0.01
        %v2046 = vmul.f32 %v1962, 0.01
        %v2047 = vmul.f32 %v1967, 0.01
        %v2048 = vmul.f32 %v1970, 0.01
        %v2049 = vmul.f32 %v1975, 0.01
        %v2050 = vmul.f32 %v1978, 0.01
        %v2051 = vmul.f32 %v1983, 0.01
        %v2052 = vmul.f32 %v1986, 0.01
        %v2053 = vsel %vm1989, %v1863, %v2021
        %v2054 = vsel %vm1990, %v1866, %v2022
        %v2055 = vsel %vm1991, %v1871, %v2023
        %v2056 = vsel %vm1992, %v1874, %v2024
        %v2057 = vsel %vm1993, %v1879, %v2025
        %v2058 = vsel %vm1994, %v1882, %v2026
        %v2059 = vsel %vm1995, %v1887, %v2027
        %v2060 = vsel %vm1996, %v1890, %v2028
        %v2061 = vsel %vm1997, %v1895, %v2029
        %v2062 = vsel %vm1998, %v1898, %v2030
        %v2063 = vsel %vm1999, %v1903, %v2031
        %v2064 = vsel %vm2000, %v1906, %v2032
        %v2065 = vsel %vm2001, %v1911, %v2033
        %v2066 = vsel %vm2002, %v1914, %v2034
        %v2067 = vsel %vm2003, %v1919, %v2035
        %v2068 = vsel %vm2004, %v1922, %v2036
        %v2069 = vsel %vm2005, %v1927, %v2037
        %v2070 = vsel %vm2006, %v1930, %v2038
        %v2071 = vsel %vm2007, %v1935, %v2039
        %v2072 = vsel %vm2008, %v1938, %v2040
        %v2073 = vsel %vm2009, %v1943, %v2041
        %v2074 = vsel %vm2010, %v1946, %v2042
        %v2075 = vsel %vm2011, %v1951, %v2043
        %v2076 = vsel %vm2012, %v1954, %v2044
        %v2077 = vsel %vm2013, %v1959, %v2045
        %v2078 = vsel %vm2014, %v1962, %v2046
        %v2079 = vsel %vm2015, %v1967, %v2047
        %v2080 = vsel %vm2016, %v1970, %v2048
        %v2081 = vsel %vm2017, %v1975, %v2049
        %v2082 = vsel %vm2018, %v1978, %v2050
        %v2083 = vsel %vm2019, %v1983, %v2051
        %v2084 = vsel %vm2020, %v1986, %v2052
        %v2085 = vld [vmem:[%s470] sm:$0xff]
        %v2086 = vld [vmem:[%s470 + $0x8] sm:$0xff]
        %v2087 = vld [vmem:[%s470 + $0x10] sm:$0xff]
        %v2088 = vld [vmem:[%s470 + $0x18] sm:$0xff]
        %v2089 = vld [vmem:[%s470 + $0x20] sm:$0xff]
        %v2090 = vld [vmem:[%s470 + $0x28] sm:$0xff]
        %v2091 = vld [vmem:[%s470 + $0x30] sm:$0xff]
        %v2092 = vld [vmem:[%s470 + $0x38] sm:$0xff]
        %v2093 = vld [vmem:[%s470 + $0x40] sm:$0xff]
        %v2094 = vld [vmem:[%s470 + $0x48] sm:$0xff]
        %v2095 = vld [vmem:[%s470 + $0x50] sm:$0xff]
        %v2096 = vld [vmem:[%s470 + $0x58] sm:$0xff]
        %v2097 = vld [vmem:[%s470 + $0x60] sm:$0xff]
        %v2098 = vld [vmem:[%s470 + $0x68] sm:$0xff]
        %v2099 = vld [vmem:[%s470 + $0x70] sm:$0xff]
        %v2100 = vld [vmem:[%s470 + $0x78] sm:$0xff]
        %v2101 = vld [vmem:[%s470 + $0x80] sm:$0xff]
        %v2102 = vld [vmem:[%s470 + $0x88] sm:$0xff]
        %v2103 = vld [vmem:[%s470 + $0x90] sm:$0xff]
        %v2104 = vld [vmem:[%s470 + $0x98] sm:$0xff]
        %v2105 = vld [vmem:[%s470 + $0xa0] sm:$0xff]
        %v2106 = vld [vmem:[%s470 + $0xa8] sm:$0xff]
        %v2107 = vld [vmem:[%s470 + $0xb0] sm:$0xff]
        %v2108 = vld [vmem:[%s470 + $0xb8] sm:$0xff]
        %v2109 = vld [vmem:[%s470 + $0xc0] sm:$0xff]
        %v2110 = vld [vmem:[%s470 + $0xc8] sm:$0xff]
        %v2111 = vld [vmem:[%s470 + $0xd0] sm:$0xff]
        %v2112 = vld [vmem:[%s470 + $0xd8] sm:$0xff]
        %v2113 = vld [vmem:[%s470 + $0xe0] sm:$0xff]
        %v2114 = vld [vmem:[%s470 + $0xe8] sm:$0xff]
        %v2115 = vld [vmem:[%s470 + $0xf0] sm:$0xff]
        %v2116 = vld [vmem:[%s470 + $0xf8] sm:$0xff]
        %v2117 = vld [vmem:[%s470 + $0x100] sm:$0xff]
        %v2118 = vld [vmem:[%s470 + $0x108] sm:$0xff]
        %v2119 = vld [vmem:[%s470 + $0x110] sm:$0xff]
        %v2120 = vld [vmem:[%s470 + $0x118] sm:$0xff]
        %v2121 = vld [vmem:[%s470 + $0x120] sm:$0xff]
        %v2122 = vld [vmem:[%s470 + $0x128] sm:$0xff]
        %v2123 = vld [vmem:[%s470 + $0x130] sm:$0xff]
        %v2124 = vld [vmem:[%s470 + $0x138] sm:$0xff]
        %v2125 = vld [vmem:[%s470 + $0x140] sm:$0xff]
        %v2126 = vld [vmem:[%s470 + $0x148] sm:$0xff]
        %v2127 = vld [vmem:[%s470 + $0x150] sm:$0xff]
        %v2128 = vld [vmem:[%s470 + $0x158] sm:$0xff]
        %v2129 = vld [vmem:[%s470 + $0x160] sm:$0xff]
        %v2130 = vld [vmem:[%s470 + $0x168] sm:$0xff]
        %v2131 = vld [vmem:[%s470 + $0x170] sm:$0xff]
        %v2132 = vld [vmem:[%s470 + $0x178] sm:$0xff]
        %v2133 = vld [vmem:[%s470 + $0x180] sm:$0xff]
        %v2134 = vld [vmem:[%s470 + $0x188] sm:$0xff]
        %v2135 = vld [vmem:[%s470 + $0x190] sm:$0xff]
        %v2136 = vld [vmem:[%s470 + $0x198] sm:$0xff]
        %v2137 = vld [vmem:[%s470 + $0x1a0] sm:$0xff]
        %v2138 = vld [vmem:[%s470 + $0x1a8] sm:$0xff]
        %v2139 = vld [vmem:[%s470 + $0x1b0] sm:$0xff]
        %v2140 = vld [vmem:[%s470 + $0x1b8] sm:$0xff]
        %v2141 = vld [vmem:[%s470 + $0x1c0] sm:$0xff]
        %v2142 = vld [vmem:[%s470 + $0x1c8] sm:$0xff]
        %v2143 = vld [vmem:[%s470 + $0x1d0] sm:$0xff]
        %v2144 = vld [vmem:[%s470 + $0x1d8] sm:$0xff]
        %v2145 = vld [vmem:[%s470 + $0x1e0] sm:$0xff]
        %v2146 = vld [vmem:[%s470 + $0x1e8] sm:$0xff]
        %v2147 = vld [vmem:[%s470 + $0x1f0] sm:$0xff]
        %v2148 = vld [vmem:[%s470 + $0x1f8] sm:$0xff]
        %v2149 = vld [vmem:[%s470 + $0x200] sm:$0xff]
        %v2150 = vld [vmem:[%s470 + $0x208] sm:$0xff]
        %v2151 = vld [vmem:[%s470 + $0x210] sm:$0xff]
        %v2152 = vld [vmem:[%s470 + $0x218] sm:$0xff]
        %v2153 = vld [vmem:[%s470 + $0x220] sm:$0xff]
        %v2154 = vld [vmem:[%s470 + $0x228] sm:$0xff]
        %v2155 = vld [vmem:[%s470 + $0x230] sm:$0xff]
        %v2156 = vld [vmem:[%s470 + $0x238] sm:$0xff]
        %v2157 = vld [vmem:[%s470 + $0x240] sm:$0xff]
        %v2158 = vld [vmem:[%s470 + $0x248] sm:$0xff]
        %v2159 = vld [vmem:[%s470 + $0x250] sm:$0xff]
        %v2160 = vld [vmem:[%s470 + $0x258] sm:$0xff]
        %v2161 = vld [vmem:[%s470 + $0x260] sm:$0xff]
        %v2162 = vld [vmem:[%s470 + $0x268] sm:$0xff]
        %v2163 = vld [vmem:[%s470 + $0x270] sm:$0xff]
        %v2164 = vld [vmem:[%s470 + $0x278] sm:$0xff]
        %v2165 = vld [vmem:[%s470 + $0x280] sm:$0xff]
        %v2166 = vld [vmem:[%s470 + $0x288] sm:$0xff]
        %v2167 = vld [vmem:[%s470 + $0x290] sm:$0xff]
        %v2168 = vld [vmem:[%s470 + $0x298] sm:$0xff]
        %v2169 = vld [vmem:[%s470 + $0x2a0] sm:$0xff]
        %v2170 = vld [vmem:[%s470 + $0x2a8] sm:$0xff]
        %v2171 = vld [vmem:[%s470 + $0x2b0] sm:$0xff]
        %v2172 = vld [vmem:[%s470 + $0x2b8] sm:$0xff]
        %v2173 = vld [vmem:[%s470 + $0x2c0] sm:$0xff]
        %v2174 = vld [vmem:[%s470 + $0x2c8] sm:$0xff]
        %v2175 = vld [vmem:[%s470 + $0x2d0] sm:$0xff]
        %v2176 = vld [vmem:[%s470 + $0x2d8] sm:$0xff]
        %v2177 = vld [vmem:[%s470 + $0x2e0] sm:$0xff]
        %v2178 = vld [vmem:[%s470 + $0x2e8] sm:$0xff]
        %v2179 = vld [vmem:[%s470 + $0x2f0] sm:$0xff]
        %v2180 = vld [vmem:[%s470 + $0x2f8] sm:$0xff]
        %v2181 = vld [vmem:[%s5] sm:$0xf]
        %v2182 = vld [vmem:[%s5 + $0x4] sm:$0xf]
        %v2183 = vld [vmem:[%s5 + $0x8] sm:$0xf]
        %v2184 = vld [vmem:[%s5 + $0xc] sm:$0xf]
        %v2185 = vld [vmem:[%s5 + $0x10] sm:$0xf]
        %v2186 = vld [vmem:[%s5 + $0x14] sm:$0xf]
        %v2187 = vld [vmem:[%s5 + $0x18] sm:$0xf]
        %v2188 = vld [vmem:[%s5 + $0x1c] sm:$0xf]
        %v2189 = vld [vmem:[%s5 + $0x20] sm:$0xf]
        %v2190 = vld [vmem:[%s5 + $0x24] sm:$0xf]
        %v2191 = vld [vmem:[%s5 + $0x28] sm:$0xf]
        %v2192 = vld [vmem:[%s5 + $0x2c] sm:$0xf]
        %v2193 = vld [vmem:[%s5 + $0x30] sm:$0xf]
        %v2194 = vld [vmem:[%s5 + $0x34] sm:$0xf]
        %v2195 = vld [vmem:[%s5 + $0x38] sm:$0xf]
        %v2196 = vld [vmem:[%s5 + $0x3c] sm:$0xf]
        %v2197 = vld [vmem:[%s5 + $0x40] sm:$0xf]
        %v2198 = vld [vmem:[%s5 + $0x44] sm:$0xf]
        %v2199 = vld [vmem:[%s5 + $0x48] sm:$0xf]
        %v2200 = vld [vmem:[%s5 + $0x4c] sm:$0xf]
        %v2201 = vld [vmem:[%s5 + $0x50] sm:$0xf]
        %v2202 = vld [vmem:[%s5 + $0x54] sm:$0xf]
        %v2203 = vld [vmem:[%s5 + $0x58] sm:$0xf]
        %v2204 = vld [vmem:[%s5 + $0x5c] sm:$0xf]
        %v2205 = vld [vmem:[%s5 + $0x60] sm:$0xf]
        %v2206 = vld [vmem:[%s5 + $0x64] sm:$0xf]
        %v2207 = vld [vmem:[%s5 + $0x68] sm:$0xf]
        %v2208 = vld [vmem:[%s5 + $0x6c] sm:$0xf]
        %v2209 = vld [vmem:[%s5 + $0x70] sm:$0xf]
        %v2210 = vld [vmem:[%s5 + $0x74] sm:$0xf]
        %v2211 = vld [vmem:[%s5 + $0x78] sm:$0xf]
        %v2212 = vld [vmem:[%s5 + $0x7c] sm:$0xf]
        %v2213 = vld [vmem:[%s5 + $0x80] sm:$0xf]
        %v2214 = vld [vmem:[%s5 + $0x84] sm:$0xf]
        %v2215 = vld [vmem:[%s5 + $0x88] sm:$0xf]
        %v2216 = vld [vmem:[%s5 + $0x8c] sm:$0xf]
        %v2217 = vld [vmem:[%s5 + $0x90] sm:$0xf]
        %v2218 = vld [vmem:[%s5 + $0x94] sm:$0xf]
        %v2219 = vld [vmem:[%s5 + $0x98] sm:$0xf]
        %v2220 = vld [vmem:[%s5 + $0x9c] sm:$0xf]
        %v2221 = vld [vmem:[%s5 + $0xa0] sm:$0xf]
        %v2222 = vld [vmem:[%s5 + $0xa4] sm:$0xf]
        %v2223 = vld [vmem:[%s5 + $0xa8] sm:$0xf]
        %v2224 = vld [vmem:[%s5 + $0xac] sm:$0xf]
        %v2225 = vld [vmem:[%s5 + $0xb0] sm:$0xf]
        %v2226 = vld [vmem:[%s5 + $0xb4] sm:$0xf]
        %v2227 = vld [vmem:[%s5 + $0xb8] sm:$0xf]
        %v2228 = vld [vmem:[%s5 + $0xbc] sm:$0xf]
        %v2229 = vld [vmem:[%s5 + $0xc0] sm:$0xf]
        %v2230 = vld [vmem:[%s5 + $0xc4] sm:$0xf]
        %v2231 = vld [vmem:[%s5 + $0xc8] sm:$0xf]
        %v2232 = vld [vmem:[%s5 + $0xcc] sm:$0xf]
        %v2233 = vld [vmem:[%s5 + $0xd0] sm:$0xf]
        %v2234 = vld [vmem:[%s5 + $0xd4] sm:$0xf]
        %v2235 = vld [vmem:[%s5 + $0xd8] sm:$0xf]
        %v2236 = vld [vmem:[%s5 + $0xdc] sm:$0xf]
        %v2237 = vld [vmem:[%s5 + $0xe0] sm:$0xf]
        %v2238 = vld [vmem:[%s5 + $0xe4] sm:$0xf]
        %v2239 = vld [vmem:[%s5 + $0xe8] sm:$0xf]
        %v2240 = vld [vmem:[%s5 + $0xec] sm:$0xf]
        %v2241 = vld [vmem:[%s5 + $0xf0] sm:$0xf]
        %v2242 = vld [vmem:[%s5 + $0xf4] sm:$0xf]
        %v2243 = vld [vmem:[%s5 + $0xf8] sm:$0xf]
        %v2244 = vld [vmem:[%s5 + $0xfc] sm:$0xf]
        %v2245 = vld [vmem:[%s5 + $0x100] sm:$0xf]
        %v2246 = vld [vmem:[%s5 + $0x104] sm:$0xf]
        %v2247 = vld [vmem:[%s5 + $0x108] sm:$0xf]
        %v2248 = vld [vmem:[%s5 + $0x10c] sm:$0xf]
        %v2249 = vld [vmem:[%s5 + $0x110] sm:$0xf]
        %v2250 = vld [vmem:[%s5 + $0x114] sm:$0xf]
        %v2251 = vld [vmem:[%s5 + $0x118] sm:$0xf]
        %v2252 = vld [vmem:[%s5 + $0x11c] sm:$0xf]
        %v2253 = vld [vmem:[%s5 + $0x120] sm:$0xf]
        %v2254 = vld [vmem:[%s5 + $0x124] sm:$0xf]
        %v2255 = vld [vmem:[%s5 + $0x128] sm:$0xf]
        %v2256 = vld [vmem:[%s5 + $0x12c] sm:$0xf]
        %v2257 = vld [vmem:[%s5 + $0x130] sm:$0xf]
        %v2258 = vld [vmem:[%s5 + $0x134] sm:$0xf]
        %v2259 = vld [vmem:[%s5 + $0x138] sm:$0xf]
        %v2260 = vld [vmem:[%s5 + $0x13c] sm:$0xf]
        %v2261 = vld [vmem:[%s5 + $0x140] sm:$0xf]
        %v2262 = vld [vmem:[%s5 + $0x144] sm:$0xf]
        %v2263 = vld [vmem:[%s5 + $0x148] sm:$0xf]
        %v2264 = vld [vmem:[%s5 + $0x14c] sm:$0xf]
        %v2265 = vld [vmem:[%s5 + $0x150] sm:$0xf]
        %v2266 = vld [vmem:[%s5 + $0x154] sm:$0xf]
        %v2267 = vld [vmem:[%s5 + $0x158] sm:$0xf]
        %v2268 = vld [vmem:[%s5 + $0x15c] sm:$0xf]
        %v2269 = vld [vmem:[%s5 + $0x160] sm:$0xf]
        %v2270 = vld [vmem:[%s5 + $0x164] sm:$0xf]
        %v2271 = vld [vmem:[%s5 + $0x168] sm:$0xf]
        %v2272 = vld [vmem:[%s5 + $0x16c] sm:$0xf]
        %v2273 = vld [vmem:[%s5 + $0x170] sm:$0xf]
        %v2274 = vld [vmem:[%s5 + $0x174] sm:$0xf]
        %v2275 = vld [vmem:[%s5 + $0x178] sm:$0xf]
        %v2276 = vld [vmem:[%s5 + $0x17c] sm:$0xf]
        %v2277 = vld [vmem:[%s6] sm:$0x1]
        %v2279 = vlaneseq
        %v2280 = vshrl.u32 %v2279, 7
        %v2281 = vsub.s32 0, %v2280
        %v2282 = vrot.slane %v2277, %v2281
        %v2380 = vunpack.c.l.b16 %v2085
        %v2381 = vunpack.c.h.b16 %v2085
        %v2382 = vunpack.c.l.b16 %v2086
        %v2383 = vunpack.c.h.b16 %v2086
        %v2384 = vunpack.c.l.b16 %v2087
        %v2385 = vunpack.c.h.b16 %v2087
        %v2386 = vunpack.c.l.b16 %v2088
        %v2387 = vunpack.c.h.b16 %v2088
        %v2388 = vunpack.c.l.b16 %v2089
        %v2389 = vunpack.c.h.b16 %v2089
        %v2390 = vunpack.c.l.b16 %v2090
        %v2391 = vunpack.c.h.b16 %v2090
        %v2392 = vunpack.c.l.b16 %v2091
        %v2393 = vunpack.c.h.b16 %v2091
        %v2394 = vunpack.c.l.b16 %v2092
        %v2395 = vunpack.c.h.b16 %v2092
        %v2396 = vunpack.c.l.b16 %v2093
        %v2397 = vunpack.c.h.b16 %v2093
        %v2398 = vunpack.c.l.b16 %v2094
        %v2399 = vunpack.c.h.b16 %v2094
        %v2400 = vunpack.c.l.b16 %v2095
        %v2401 = vunpack.c.h.b16 %v2095
        %v2402 = vunpack.c.l.b16 %v2096
        %v2403 = vunpack.c.h.b16 %v2096
        %v2404 = vunpack.c.l.b16 %v2097
        %v2405 = vunpack.c.h.b16 %v2097
        %v2406 = vunpack.c.l.b16 %v2098
        %v2407 = vunpack.c.h.b16 %v2098
        %v2408 = vunpack.c.l.b16 %v2099
        %v2409 = vunpack.c.h.b16 %v2099
        %v2410 = vunpack.c.l.b16 %v2100
        %v2411 = vunpack.c.h.b16 %v2100
        %v2412 = vunpack.c.l.b16 %v2101
        %v2413 = vunpack.c.h.b16 %v2101
        %v2414 = vunpack.c.l.b16 %v2102
        %v2415 = vunpack.c.h.b16 %v2102
        %v2416 = vunpack.c.l.b16 %v2103
        %v2417 = vunpack.c.h.b16 %v2103
        %v2418 = vunpack.c.l.b16 %v2104
        %v2419 = vunpack.c.h.b16 %v2104
        %v2420 = vunpack.c.l.b16 %v2105
        %v2421 = vunpack.c.h.b16 %v2105
        %v2422 = vunpack.c.l.b16 %v2106
        %v2423 = vunpack.c.h.b16 %v2106
        %v2424 = vunpack.c.l.b16 %v2107
        %v2425 = vunpack.c.h.b16 %v2107
        %v2426 = vunpack.c.l.b16 %v2108
        %v2427 = vunpack.c.h.b16 %v2108
        %v2428 = vunpack.c.l.b16 %v2109
        %v2429 = vunpack.c.h.b16 %v2109
        %v2430 = vunpack.c.l.b16 %v2110
        %v2431 = vunpack.c.h.b16 %v2110
        %v2432 = vunpack.c.l.b16 %v2111
        %v2433 = vunpack.c.h.b16 %v2111
        %v2434 = vunpack.c.l.b16 %v2112
        %v2435 = vunpack.c.h.b16 %v2112
        %v2436 = vunpack.c.l.b16 %v2113
        %v2437 = vunpack.c.h.b16 %v2113
        %v2438 = vunpack.c.l.b16 %v2114
        %v2439 = vunpack.c.h.b16 %v2114
        %v2440 = vunpack.c.l.b16 %v2115
        %v2441 = vunpack.c.h.b16 %v2115
        %v2442 = vunpack.c.l.b16 %v2116
        %v2443 = vunpack.c.h.b16 %v2116
        %v2444 = vunpack.c.l.b16 %v2117
        %v2445 = vunpack.c.h.b16 %v2117
        %v2446 = vunpack.c.l.b16 %v2118
        %v2447 = vunpack.c.h.b16 %v2118
        %v2448 = vunpack.c.l.b16 %v2119
        %v2449 = vunpack.c.h.b16 %v2119
        %v2450 = vunpack.c.l.b16 %v2120
        %v2451 = vunpack.c.h.b16 %v2120
        %v2452 = vunpack.c.l.b16 %v2121
        %v2453 = vunpack.c.h.b16 %v2121
        %v2454 = vunpack.c.l.b16 %v2122
        %v2455 = vunpack.c.h.b16 %v2122
        %v2456 = vunpack.c.l.b16 %v2123
        %v2457 = vunpack.c.h.b16 %v2123
        %v2458 = vunpack.c.l.b16 %v2124
        %v2459 = vunpack.c.h.b16 %v2124
        %v2460 = vunpack.c.l.b16 %v2125
        %v2461 = vunpack.c.h.b16 %v2125
        %v2462 = vunpack.c.l.b16 %v2126
        %v2463 = vunpack.c.h.b16 %v2126
        %v2464 = vunpack.c.l.b16 %v2127
        %v2465 = vunpack.c.h.b16 %v2127
        %v2466 = vunpack.c.l.b16 %v2128
        %v2467 = vunpack.c.h.b16 %v2128
        %v2468 = vunpack.c.l.b16 %v2129
        %v2469 = vunpack.c.h.b16 %v2129
        %v2470 = vunpack.c.l.b16 %v2130
        %v2471 = vunpack.c.h.b16 %v2130
        %v2472 = vunpack.c.l.b16 %v2131
        %v2473 = vunpack.c.h.b16 %v2131
        %v2474 = vunpack.c.l.b16 %v2132
        %v2475 = vunpack.c.h.b16 %v2132
        %v2476 = vunpack.c.l.b16 %v2133
        %v2477 = vunpack.c.h.b16 %v2133
        %v2478 = vunpack.c.l.b16 %v2134
        %v2479 = vunpack.c.h.b16 %v2134
        %v2480 = vunpack.c.l.b16 %v2135
        %v2481 = vunpack.c.h.b16 %v2135
        %v2482 = vunpack.c.l.b16 %v2136
        %v2483 = vunpack.c.h.b16 %v2136
        %v2484 = vunpack.c.l.b16 %v2137
        %v2485 = vunpack.c.h.b16 %v2137
        %v2486 = vunpack.c.l.b16 %v2138
        %v2487 = vunpack.c.h.b16 %v2138
        %v2488 = vunpack.c.l.b16 %v2139
        %v2489 = vunpack.c.h.b16 %v2139
        %v2490 = vunpack.c.l.b16 %v2140
        %v2491 = vunpack.c.h.b16 %v2140
        %v2492 = vunpack.c.l.b16 %v2141
        %v2493 = vunpack.c.h.b16 %v2141
        %v2494 = vunpack.c.l.b16 %v2142
        %v2495 = vunpack.c.h.b16 %v2142
        %v2496 = vunpack.c.l.b16 %v2143
        %v2497 = vunpack.c.h.b16 %v2143
        %v2498 = vunpack.c.l.b16 %v2144
        %v2499 = vunpack.c.h.b16 %v2144
        %v2500 = vunpack.c.l.b16 %v2145
        %v2501 = vunpack.c.h.b16 %v2145
        %v2502 = vunpack.c.l.b16 %v2146
        %v2503 = vunpack.c.h.b16 %v2146
        %v2504 = vunpack.c.l.b16 %v2147
        %v2505 = vunpack.c.h.b16 %v2147
        %v2506 = vunpack.c.l.b16 %v2148
        %v2507 = vunpack.c.h.b16 %v2148
        %v2508 = vunpack.c.l.b16 %v2149
        %v2509 = vunpack.c.h.b16 %v2149
        %v2510 = vunpack.c.l.b16 %v2150
        %v2511 = vunpack.c.h.b16 %v2150
        %v2512 = vunpack.c.l.b16 %v2151
        %v2513 = vunpack.c.h.b16 %v2151
        %v2514 = vunpack.c.l.b16 %v2152
        %v2515 = vunpack.c.h.b16 %v2152
        %v2516 = vunpack.c.l.b16 %v2153
        %v2517 = vunpack.c.h.b16 %v2153
        %v2518 = vunpack.c.l.b16 %v2154
        %v2519 = vunpack.c.h.b16 %v2154
        %v2520 = vunpack.c.l.b16 %v2155
        %v2521 = vunpack.c.h.b16 %v2155
        %v2522 = vunpack.c.l.b16 %v2156
        %v2523 = vunpack.c.h.b16 %v2156
        %v2524 = vunpack.c.l.b16 %v2157
        %v2525 = vunpack.c.h.b16 %v2157
        %v2526 = vunpack.c.l.b16 %v2158
        %v2527 = vunpack.c.h.b16 %v2158
        %v2528 = vunpack.c.l.b16 %v2159
        %v2529 = vunpack.c.h.b16 %v2159
        %v2530 = vunpack.c.l.b16 %v2160
        %v2531 = vunpack.c.h.b16 %v2160
        %v2532 = vunpack.c.l.b16 %v2161
        %v2533 = vunpack.c.h.b16 %v2161
        %v2534 = vunpack.c.l.b16 %v2162
        %v2535 = vunpack.c.h.b16 %v2162
        %v2536 = vunpack.c.l.b16 %v2163
        %v2537 = vunpack.c.h.b16 %v2163
        %v2538 = vunpack.c.l.b16 %v2164
        %v2539 = vunpack.c.h.b16 %v2164
        %v2540 = vunpack.c.l.b16 %v2165
        %v2541 = vunpack.c.h.b16 %v2165
        %v2542 = vunpack.c.l.b16 %v2166
        %v2543 = vunpack.c.h.b16 %v2166
        %v2544 = vunpack.c.l.b16 %v2167
        %v2545 = vunpack.c.h.b16 %v2167
        %v2546 = vunpack.c.l.b16 %v2168
        %v2547 = vunpack.c.h.b16 %v2168
        %v2548 = vunpack.c.l.b16 %v2169
        %v2549 = vunpack.c.h.b16 %v2169
        %v2550 = vunpack.c.l.b16 %v2170
        %v2551 = vunpack.c.h.b16 %v2170
        %v2552 = vunpack.c.l.b16 %v2171
        %v2553 = vunpack.c.h.b16 %v2171
        %v2554 = vunpack.c.l.b16 %v2172
        %v2555 = vunpack.c.h.b16 %v2172
        %v2556 = vunpack.c.l.b16 %v2173
        %v2557 = vunpack.c.h.b16 %v2173
        %v2558 = vunpack.c.l.b16 %v2174
        %v2559 = vunpack.c.h.b16 %v2174
        %v2560 = vunpack.c.l.b16 %v2175
        %v2561 = vunpack.c.h.b16 %v2175
        %v2562 = vunpack.c.l.b16 %v2176
        %v2563 = vunpack.c.h.b16 %v2176
        %v2564 = vunpack.c.l.b16 %v2177
        %v2565 = vunpack.c.h.b16 %v2177
        %v2566 = vunpack.c.l.b16 %v2178
        %v2567 = vunpack.c.h.b16 %v2178
        %v2568 = vunpack.c.l.b16 %v2179
        %v2569 = vunpack.c.h.b16 %v2179
        %v2570 = vunpack.c.l.b16 %v2180
        %v2571 = vunpack.c.h.b16 %v2180
        %v2572 = vpack.c.b16 %v2386, %v2380
        %v2573 = vpack.c.b16 %v2387, %v2381
        %v2574 = vpack.c.b16 %v2388, %v2382
        %v2575 = vpack.c.b16 %v2389, %v2383
        %v2576 = vpack.c.b16 %v2390, %v2384
        %v2577 = vpack.c.b16 %v2391, %v2385
        %v2578 = vpack.c.b16 %v2398, %v2392
        %v2579 = vpack.c.b16 %v2399, %v2393
        %v2580 = vpack.c.b16 %v2400, %v2394
        %v2581 = vpack.c.b16 %v2401, %v2395
        %v2582 = vpack.c.b16 %v2402, %v2396
        %v2583 = vpack.c.b16 %v2403, %v2397
        %v2584 = vpack.c.b16 %v2410, %v2404
        %v2585 = vpack.c.b16 %v2411, %v2405
        %v2586 = vpack.c.b16 %v2412, %v2406
        %v2587 = vpack.c.b16 %v2413, %v2407
        %v2588 = vpack.c.b16 %v2414, %v2408
        %v2589 = vpack.c.b16 %v2415, %v2409
        %v2590 = vpack.c.b16 %v2422, %v2416
        %v2591 = vpack.c.b16 %v2423, %v2417
        %v2592 = vpack.c.b16 %v2424, %v2418
        %v2593 = vpack.c.b16 %v2425, %v2419
        %v2594 = vpack.c.b16 %v2426, %v2420
        %v2595 = vpack.c.b16 %v2427, %v2421
        %v2596 = vpack.c.b16 %v2434, %v2428
        %v2597 = vpack.c.b16 %v2435, %v2429
        %v2598 = vpack.c.b16 %v2436, %v2430
        %v2599 = vpack.c.b16 %v2437, %v2431
        %v2600 = vpack.c.b16 %v2438, %v2432
        %v2601 = vpack.c.b16 %v2439, %v2433
        %v2602 = vpack.c.b16 %v2446, %v2440
        %v2603 = vpack.c.b16 %v2447, %v2441
        %v2604 = vpack.c.b16 %v2448, %v2442
        %v2605 = vpack.c.b16 %v2449, %v2443
        %v2606 = vpack.c.b16 %v2450, %v2444
        %v2607 = vpack.c.b16 %v2451, %v2445
        %v2608 = vpack.c.b16 %v2458, %v2452
        %v2609 = vpack.c.b16 %v2459, %v2453
        %v2610 = vpack.c.b16 %v2460, %v2454
        %v2611 = vpack.c.b16 %v2461, %v2455
        %v2612 = vpack.c.b16 %v2462, %v2456
        %v2613 = vpack.c.b16 %v2463, %v2457
        %v2614 = vpack.c.b16 %v2470, %v2464
        %v2615 = vpack.c.b16 %v2471, %v2465
        %v2616 = vpack.c.b16 %v2472, %v2466
        %v2617 = vpack.c.b16 %v2473, %v2467
        %v2618 = vpack.c.b16 %v2474, %v2468
        %v2619 = vpack.c.b16 %v2475, %v2469
        %v2620 = vpack.c.b16 %v2482, %v2476
        %v2621 = vpack.c.b16 %v2483, %v2477
        %v2622 = vpack.c.b16 %v2484, %v2478
        %v2623 = vpack.c.b16 %v2485, %v2479
        %v2624 = vpack.c.b16 %v2486, %v2480
        %v2625 = vpack.c.b16 %v2487, %v2481
        %v2626 = vpack.c.b16 %v2494, %v2488
        %v2627 = vpack.c.b16 %v2495, %v2489
        %v2628 = vpack.c.b16 %v2496, %v2490
        %v2629 = vpack.c.b16 %v2497, %v2491
        %v2630 = vpack.c.b16 %v2498, %v2492
        %v2631 = vpack.c.b16 %v2499, %v2493
        %v2632 = vpack.c.b16 %v2506, %v2500
        %v2633 = vpack.c.b16 %v2507, %v2501
        %v2634 = vpack.c.b16 %v2508, %v2502
        %v2635 = vpack.c.b16 %v2509, %v2503
        %v2636 = vpack.c.b16 %v2510, %v2504
        %v2637 = vpack.c.b16 %v2511, %v2505
        %v2638 = vpack.c.b16 %v2518, %v2512
        %v2639 = vpack.c.b16 %v2519, %v2513
        %v2640 = vpack.c.b16 %v2520, %v2514
        %v2641 = vpack.c.b16 %v2521, %v2515
        %v2642 = vpack.c.b16 %v2522, %v2516
        %v2643 = vpack.c.b16 %v2523, %v2517
        %v2644 = vpack.c.b16 %v2530, %v2524
        %v2645 = vpack.c.b16 %v2531, %v2525
        %v2646 = vpack.c.b16 %v2532, %v2526
        %v2647 = vpack.c.b16 %v2533, %v2527
        %v2648 = vpack.c.b16 %v2534, %v2528
        %v2649 = vpack.c.b16 %v2535, %v2529
        %v2650 = vpack.c.b16 %v2542, %v2536
        %v2651 = vpack.c.b16 %v2543, %v2537
        %v2652 = vpack.c.b16 %v2544, %v2538
        %v2653 = vpack.c.b16 %v2545, %v2539
        %v2654 = vpack.c.b16 %v2546, %v2540
        %v2655 = vpack.c.b16 %v2547, %v2541
        %v2656 = vpack.c.b16 %v2554, %v2548
        %v2657 = vpack.c.b16 %v2555, %v2549
        %v2658 = vpack.c.b16 %v2556, %v2550
        %v2659 = vpack.c.b16 %v2557, %v2551
        %v2660 = vpack.c.b16 %v2558, %v2552
        %v2661 = vpack.c.b16 %v2559, %v2553
        %v2662 = vpack.c.b16 %v2566, %v2560
        %v2663 = vpack.c.b16 %v2567, %v2561
        %v2664 = vpack.c.b16 %v2568, %v2562
        %v2665 = vpack.c.b16 %v2569, %v2563
        %v2666 = vpack.c.b16 %v2570, %v2564
        %v2667 = vpack.c.b16 %v2571, %v2565
        %v2860 = vunpack.c.l.b16 %v2181
        %v2861 = vunpack.c.l.b16 %v2182
        %v2862 = vunpack.c.l.b16 %v2183
        %v2863 = vunpack.c.l.b16 %v2184
        %v2864 = vunpack.c.l.b16 %v2185
        %v2865 = vunpack.c.l.b16 %v2186
        %v2866 = vunpack.c.l.b16 %v2187
        %v2867 = vunpack.c.l.b16 %v2188
        %v2868 = vunpack.c.l.b16 %v2189
        %v2869 = vunpack.c.l.b16 %v2190
        %v2870 = vunpack.c.l.b16 %v2191
        %v2871 = vunpack.c.l.b16 %v2192
        %v2872 = vunpack.c.l.b16 %v2193
        %v2873 = vunpack.c.l.b16 %v2194
        %v2874 = vunpack.c.l.b16 %v2195
        %v2875 = vunpack.c.l.b16 %v2196
        %v2876 = vunpack.c.l.b16 %v2197
        %v2877 = vunpack.c.l.b16 %v2198
        %v2878 = vunpack.c.l.b16 %v2199
        %v2879 = vunpack.c.l.b16 %v2200
        %v2880 = vunpack.c.l.b16 %v2201
        %v2881 = vunpack.c.l.b16 %v2202
        %v2882 = vunpack.c.l.b16 %v2203
        %v2883 = vunpack.c.l.b16 %v2204
        %v2884 = vunpack.c.l.b16 %v2205
        %v2885 = vunpack.c.l.b16 %v2206
        %v2886 = vunpack.c.l.b16 %v2207
        %v2887 = vunpack.c.l.b16 %v2208
        %v2888 = vunpack.c.l.b16 %v2209
        %v2889 = vunpack.c.l.b16 %v2210
        %v2890 = vunpack.c.l.b16 %v2211
        %v2891 = vunpack.c.l.b16 %v2212
        %v2892 = vunpack.c.l.b16 %v2213
        %v2893 = vunpack.c.l.b16 %v2214
        %v2894 = vunpack.c.l.b16 %v2215
        %v2895 = vunpack.c.l.b16 %v2216
        %v2896 = vunpack.c.l.b16 %v2217
        %v2897 = vunpack.c.l.b16 %v2218
        %v2898 = vunpack.c.l.b16 %v2219
        %v2899 = vunpack.c.l.b16 %v2220
        %v2900 = vunpack.c.l.b16 %v2221
        %v2901 = vunpack.c.l.b16 %v2222
        %v2902 = vunpack.c.l.b16 %v2223
        %v2903 = vunpack.c.l.b16 %v2224
        %v2904 = vunpack.c.l.b16 %v2225
        %v2905 = vunpack.c.l.b16 %v2226
        %v2906 = vunpack.c.l.b16 %v2227
        %v2907 = vunpack.c.l.b16 %v2228
        %v2908 = vunpack.c.l.b16 %v2229
        %v2909 = vunpack.c.l.b16 %v2230
        %v2910 = vunpack.c.l.b16 %v2231
        %v2911 = vunpack.c.l.b16 %v2232
        %v2912 = vunpack.c.l.b16 %v2233
        %v2913 = vunpack.c.l.b16 %v2234
        %v2914 = vunpack.c.l.b16 %v2235
        %v2915 = vunpack.c.l.b16 %v2236
        %v2916 = vunpack.c.l.b16 %v2237
        %v2917 = vunpack.c.l.b16 %v2238
        %v2918 = vunpack.c.l.b16 %v2239
        %v2919 = vunpack.c.l.b16 %v2240
        %v2920 = vunpack.c.l.b16 %v2241
        %v2921 = vunpack.c.l.b16 %v2242
        %v2922 = vunpack.c.l.b16 %v2243
        %v2923 = vunpack.c.l.b16 %v2244
        %v2924 = vunpack.c.l.b16 %v2245
        %v2925 = vunpack.c.l.b16 %v2246
        %v2926 = vunpack.c.l.b16 %v2247
        %v2927 = vunpack.c.l.b16 %v2248
        %v2928 = vunpack.c.l.b16 %v2249
        %v2929 = vunpack.c.l.b16 %v2250
        %v2930 = vunpack.c.l.b16 %v2251
        %v2931 = vunpack.c.l.b16 %v2252
        %v2932 = vunpack.c.l.b16 %v2253
        %v2933 = vunpack.c.l.b16 %v2254
        %v2934 = vunpack.c.l.b16 %v2255
        %v2935 = vunpack.c.l.b16 %v2256
        %v2936 = vunpack.c.l.b16 %v2257
        %v2937 = vunpack.c.l.b16 %v2258
        %v2938 = vunpack.c.l.b16 %v2259
        %v2939 = vunpack.c.l.b16 %v2260
        %v2940 = vunpack.c.l.b16 %v2261
        %v2941 = vunpack.c.l.b16 %v2262
        %v2942 = vunpack.c.l.b16 %v2263
        %v2943 = vunpack.c.l.b16 %v2264
        %v2944 = vunpack.c.l.b16 %v2265
        %v2945 = vunpack.c.l.b16 %v2266
        %v2946 = vunpack.c.l.b16 %v2267
        %v2947 = vunpack.c.l.b16 %v2268
        %v2948 = vunpack.c.l.b16 %v2269
        %v2949 = vunpack.c.l.b16 %v2270
        %v2950 = vunpack.c.l.b16 %v2271
        %v2951 = vunpack.c.l.b16 %v2272
        %v2952 = vunpack.c.l.b16 %v2273
        %v2953 = vunpack.c.l.b16 %v2274
        %v2954 = vunpack.c.l.b16 %v2275
        %v2955 = vunpack.c.l.b16 %v2276
        %v2956 = vpack.c.b16 %v2861, %v2860
        %v2957 = vpack.c.b16 %v2863, %v2862
        %v2958 = vpack.c.b16 %v2865, %v2864
        %v2959 = vpack.c.b16 %v2867, %v2866
        %v2960 = vpack.c.b16 %v2869, %v2868
        %v2961 = vpack.c.b16 %v2871, %v2870
        %v2962 = vpack.c.b16 %v2873, %v2872
        %v2963 = vpack.c.b16 %v2875, %v2874
        %v2964 = vpack.c.b16 %v2877, %v2876
        %v2965 = vpack.c.b16 %v2879, %v2878
        %v2966 = vpack.c.b16 %v2881, %v2880
        %v2967 = vpack.c.b16 %v2883, %v2882
        %v2968 = vpack.c.b16 %v2885, %v2884
        %v2969 = vpack.c.b16 %v2887, %v2886
        %v2970 = vpack.c.b16 %v2889, %v2888
        %v2971 = vpack.c.b16 %v2891, %v2890
        %v2972 = vpack.c.b16 %v2893, %v2892
        %v2973 = vpack.c.b16 %v2895, %v2894
        %v2974 = vpack.c.b16 %v2897, %v2896
        %v2975 = vpack.c.b16 %v2899, %v2898
        %v2976 = vpack.c.b16 %v2901, %v2900
        %v2977 = vpack.c.b16 %v2903, %v2902
        %v2978 = vpack.c.b16 %v2905, %v2904
        %v2979 = vpack.c.b16 %v2907, %v2906
        %v2980 = vpack.c.b16 %v2909, %v2908
        %v2981 = vpack.c.b16 %v2911, %v2910
        %v2982 = vpack.c.b16 %v2913, %v2912
        %v2983 = vpack.c.b16 %v2915, %v2914
        %v2984 = vpack.c.b16 %v2917, %v2916
        %v2985 = vpack.c.b16 %v2919, %v2918
        %v2986 = vpack.c.b16 %v2921, %v2920
        %v2987 = vpack.c.b16 %v2923, %v2922
        %v2988 = vpack.c.b16 %v2925, %v2924
        %v2989 = vpack.c.b16 %v2927, %v2926
        %v2990 = vpack.c.b16 %v2929, %v2928
        %v2991 = vpack.c.b16 %v2931, %v2930
        %v2992 = vpack.c.b16 %v2933, %v2932
        %v2993 = vpack.c.b16 %v2935, %v2934
        %v2994 = vpack.c.b16 %v2937, %v2936
        %v2995 = vpack.c.b16 %v2939, %v2938
        %v2996 = vpack.c.b16 %v2941, %v2940
        %v2997 = vpack.c.b16 %v2943, %v2942
        %v2998 = vpack.c.b16 %v2945, %v2944
        %v2999 = vpack.c.b16 %v2947, %v2946
        %v3000 = vpack.c.b16 %v2949, %v2948
        %v3001 = vpack.c.b16 %v2951, %v2950
        %v3002 = vpack.c.b16 %v2953, %v2952
        %v3003 = vpack.c.b16 %v2955, %v2954
        %3052 = vmatprep.subr.bf16.mxu0 0
        %3053 = vmatpush1.bf16.msra.mxu0 %v2956
        %3054 = vmatprep.subr.bf16.mxu0 0
        %3055 = vmatpush1.bf16.msra.mxu0 %v2957
        %3056 = vmatprep.subr.bf16.mxu0 0
        %3057 = vmatpush1.bf16.msra.mxu0 %v2958
        %3058 = vmatprep.subr.bf16.mxu0 0
        %3059 = vmatpush1.bf16.msra.mxu0 %v2959
        %3060 = vmatprep.subr.bf16.mxu0 0
        %3061 = vmatpush1.bf16.msra.mxu0 %v2960
        %3062 = vmatprep.subr.bf16.mxu0 0
        %3063 = vmatpush1.bf16.msra.mxu0 %v2961
        %3064 = vmatprep.subr.bf16.mxu0 0
        %3065 = vmatpush1.bf16.msra.mxu0 %v2962
        %3066 = vmatprep.subr.bf16.mxu0 0
        %3067 = vmatpush1.bf16.msra.mxu0 %v2963
        %3068 = vmatprep.subr.bf16.mxu0 0
        %3069 = vmatpush1.bf16.msra.mxu0 %v2964
        %3070 = vmatprep.subr.bf16.mxu0 0
        %3071 = vmatpush1.bf16.msra.mxu0 %v2965
        %3072 = vmatprep.subr.bf16.mxu0 0
        %3073 = vmatpush1.bf16.msra.mxu0 %v2966
        %3074 = vmatprep.subr.bf16.mxu0 0
        %3075 = vmatpush1.bf16.msra.mxu0 %v2967
        %3076 = vmatprep.subr.bf16.mxu0 0
        %3077 = vmatpush1.bf16.msra.mxu0 %v2968
        %3078 = vmatprep.subr.bf16.mxu0 0
        %3079 = vmatpush1.bf16.msra.mxu0 %v2969
        %3080 = vmatprep.subr.bf16.mxu0 0
        %3081 = vmatpush1.bf16.msra.mxu0 %v2970
        %3082 = vmatprep.subr.bf16.mxu0 0
        %3083 = vmatpush1.bf16.msra.mxu0 %v2971
        %3084 = vmatprep.mubr.bf16.mxu0 %v2573
        %3085 = vmatmul.mubr.bf16.gmra.mrb[0].mxu0 %v2572
        %v3086 = vpop.f32.mrb[0].mxu0
        %v3087 = vadd.f32 %v2282, %v3086
        %v3088 = vpop.f32.mrb[0].mxu0
        %v3089 = vpop.f32.mrb[0].mxu0
        %v3090 = vadd.f32 %v2282, %v3089
        %v3091 = vpop.f32.mrb[0].mxu0
        %3092 = vmatprep.mubr.bf16.mxu0 %v2579
        %3093 = vmatmul.mubr.bf16.gmra.mrb[0].mxu0 %v2578
        %v3094 = vpop.f32.mrb[0].mxu0
        %v3095 = vadd.f32 %v2282, %v3094
        %v3096 = vpop.f32.mrb[0].mxu0
        %v3097 = vpop.f32.mrb[0].mxu0
        %v3098 = vadd.f32 %v2282, %v3097
        %v3099 = vpop.f32.mrb[0].mxu0
        %3100 = vmatprep.mubr.bf16.mxu0 %v2585
        %3101 = vmatmul.mubr.bf16.gmra.mrb[0].mxu0 %v2584
        %v3102 = vpop.f32.mrb[0].mxu0
        %v3103 = vadd.f32 %v2282, %v3102
        %v3104 = vpop.f32.mrb[0].mxu0
        %v3105 = vpop.f32.mrb[0].mxu0
        %v3106 = vadd.f32 %v2282, %v3105
        %v3107 = vpop.f32.mrb[0].mxu0
        %3108 = vmatprep.mubr.bf16.mxu0 %v2591
        %3109 = vmatmul.mubr.bf16.gmra.mrb[0].mxu0 %v2590
        %v3110 = vpop.f32.mrb[0].mxu0
        %v3111 = vadd.f32 %v2282, %v3110
        %v3112 = vpop.f32.mrb[0].mxu0
        %v3113 = vpop.f32.mrb[0].mxu0
        %v3114 = vadd.f32 %v2282, %v3113
        %v3115 = vpop.f32.mrb[0].mxu0
        %3116 = vmatprep.mubr.bf16.mxu0 %v2597
        %3117 = vmatmul.mubr.bf16.gmra.mrb[0].mxu0 %v2596
        %v3118 = vpop.f32.mrb[0].mxu0
        %v3119 = vadd.f32 %v2282, %v3118
        %v3120 = vpop.f32.mrb[0].mxu0
        %v3121 = vpop.f32.mrb[0].mxu0
        %v3122 = vadd.f32 %v2282, %v3121
        %v3123 = vpop.f32.mrb[0].mxu0
        %3124 = vmatprep.mubr.bf16.mxu0 %v2603
        %3125 = vmatmul.mubr.bf16.gmra.mrb[0].mxu0 %v2602
        %v3126 = vpop.f32.mrb[0].mxu0
        %v3127 = vadd.f32 %v2282, %v3126
        %v3128 = vpop.f32.mrb[0].mxu0
        %v3129 = vpop.f32.mrb[0].mxu0
        %v3130 = vadd.f32 %v2282, %v3129
        %v3131 = vpop.f32.mrb[0].mxu0
        %3132 = vmatprep.mubr.bf16.mxu0 %v2609
        %3133 = vmatmul.mubr.bf16.gmra.mrb[0].mxu0 %v2608
        %v3134 = vpop.f32.mrb[0].mxu0
        %v3135 = vadd.f32 %v2282, %v3134
        %v3136 = vpop.f32.mrb[0].mxu0
        %v3137 = vpop.f32.mrb[0].mxu0
        %v3138 = vadd.f32 %v2282, %v3137
        %v3139 = vpop.f32.mrb[0].mxu0
        %3140 = vmatprep.mubr.bf16.mxu0 %v2615
        %3141 = vmatmul.mubr.bf16.gmra.mrb[0].mxu0 %v2614
        %v3142 = vpop.f32.mrb[0].mxu0
        %v3143 = vadd.f32 %v2282, %v3142
        %v3144 = vpop.f32.mrb[0].mxu0
        %v3145 = vpop.f32.mrb[0].mxu0
        %v3146 = vadd.f32 %v2282, %v3145
        %v3147 = vpop.f32.mrb[0].mxu0
        %3148 = vmatprep.mubr.bf16.mxu0 %v2621
        %3149 = vmatmul.mubr.bf16.gmra.mrb[0].mxu0 %v2620
        %v3150 = vpop.f32.mrb[0].mxu0
        %v3151 = vadd.f32 %v2282, %v3150
        %v3152 = vpop.f32.mrb[0].mxu0
        %v3153 = vpop.f32.mrb[0].mxu0
        %v3154 = vadd.f32 %v2282, %v3153
        %v3155 = vpop.f32.mrb[0].mxu0
        %3156 = vmatprep.mubr.bf16.mxu0 %v2627
        %3157 = vmatmul.mubr.bf16.gmra.mrb[0].mxu0 %v2626
        %v3158 = vpop.f32.mrb[0].mxu0
        %v3159 = vadd.f32 %v2282, %v3158
        %v3160 = vpop.f32.mrb[0].mxu0
        %v3161 = vpop.f32.mrb[0].mxu0
        %v3162 = vadd.f32 %v2282, %v3161
        %v3163 = vpop.f32.mrb[0].mxu0
        %3164 = vmatprep.mubr.bf16.mxu0 %v2633
        %3165 = vmatmul.mubr.bf16.gmra.mrb[0].mxu0 %v2632
        %v3166 = vpop.f32.mrb[0].mxu0
        %v3167 = vadd.f32 %v2282, %v3166
        %v3168 = vpop.f32.mrb[0].mxu0
        %v3169 = vpop.f32.mrb[0].mxu0
        %v3170 = vadd.f32 %v2282, %v3169
        %v3171 = vpop.f32.mrb[0].mxu0
        %3172 = vmatprep.mubr.bf16.mxu0 %v2639
        %3173 = vmatmul.mubr.bf16.gmra.mrb[0].mxu0 %v2638
        %v3174 = vpop.f32.mrb[0].mxu0
        %v3175 = vadd.f32 %v2282, %v3174
        %v3176 = vpop.f32.mrb[0].mxu0
        %v3177 = vpop.f32.mrb[0].mxu0
        %v3178 = vadd.f32 %v2282, %v3177
        %v3179 = vpop.f32.mrb[0].mxu0
        %3180 = vmatprep.mubr.bf16.mxu0 %v2645
        %3181 = vmatmul.mubr.bf16.gmra.mrb[0].mxu0 %v2644
        %v3182 = vpop.f32.mrb[0].mxu0
        %v3183 = vadd.f32 %v2282, %v3182
        %v3184 = vpop.f32.mrb[0].mxu0
        %v3185 = vpop.f32.mrb[0].mxu0
        %v3186 = vadd.f32 %v2282, %v3185
        %v3187 = vpop.f32.mrb[0].mxu0
        %3188 = vmatprep.mubr.bf16.mxu0 %v2651
        %3189 = vmatmul.mubr.bf16.gmra.mrb[0].mxu0 %v2650
        %v3190 = vpop.f32.mrb[0].mxu0
        %v3191 = vadd.f32 %v2282, %v3190
        %v3192 = vpop.f32.mrb[0].mxu0
        %v3193 = vpop.f32.mrb[0].mxu0
        %v3194 = vadd.f32 %v2282, %v3193
        %v3195 = vpop.f32.mrb[0].mxu0
        %3196 = vmatprep.mubr.bf16.mxu0 %v2657
        %3197 = vmatmul.mubr.bf16.gmra.mrb[0].mxu0 %v2656
        %v3198 = vpop.f32.mrb[0].mxu0
        %v3199 = vadd.f32 %v2282, %v3198
        %v3200 = vpop.f32.mrb[0].mxu0
        %v3201 = vpop.f32.mrb[0].mxu0
        %v3202 = vadd.f32 %v2282, %v3201
        %v3203 = vpop.f32.mrb[0].mxu0
        %3204 = vmatprep.mubr.bf16.mxu0 %v2663
        %3205 = vmatmul.mubr.bf16.gmra.mrb[0].mxu0 %v2662
        %v3206 = vpop.f32.mrb[0].mxu0
        %v3207 = vadd.f32 %v2282, %v3206
        %v3208 = vpop.f32.mrb[0].mxu0
        %v3209 = vpop.f32.mrb[0].mxu0
        %v3210 = vadd.f32 %v2282, %v3209
        %v3211 = vpop.f32.mrb[0].mxu0
        %3212 = vdwg.mxu0
        %3213 = vmatprep.subr.bf16.mxu0 0
        %3214 = vmatpush1.bf16.msra.mxu0 %v2972
        %3215 = vmatprep.subr.bf16.mxu0 0
        %3216 = vmatpush1.bf16.msra.mxu0 %v2973
        %3217 = vmatprep.subr.bf16.mxu0 0
        %3218 = vmatpush1.bf16.msra.mxu0 %v2974
        %3219 = vmatprep.subr.bf16.mxu0 0
        %3220 = vmatpush1.bf16.msra.mxu0 %v2975
        %3221 = vmatprep.subr.bf16.mxu0 0
        %3222 = vmatpush1.bf16.msra.mxu0 %v2976
        %3223 = vmatprep.subr.bf16.mxu0 0
        %3224 = vmatpush1.bf16.msra.mxu0 %v2977
        %3225 = vmatprep.subr.bf16.mxu0 0
        %3226 = vmatpush1.bf16.msra.mxu0 %v2978
        %3227 = vmatprep.subr.bf16.mxu0 0
        %3228 = vmatpush1.bf16.msra.mxu0 %v2979
        %3229 = vmatprep.subr.bf16.mxu0 0
        %3230 = vmatpush1.bf16.msra.mxu0 %v2980
        %3231 = vmatprep.subr.bf16.mxu0 0
        %3232 = vmatpush1.bf16.msra.mxu0 %v2981
        %3233 = vmatprep.subr.bf16.mxu0 0
        %3234 = vmatpush1.bf16.msra.mxu0 %v2982
        %3235 = vmatprep.subr.bf16.mxu0 0
        %3236 = vmatpush1.bf16.msra.mxu0 %v2983
        %3237 = vmatprep.subr.bf16.mxu0 0
        %3238 = vmatpush1.bf16.msra.mxu0 %v2984
        %3239 = vmatprep.subr.bf16.mxu0 0
        %3240 = vmatpush1.bf16.msra.mxu0 %v2985
        %3241 = vmatprep.subr.bf16.mxu0 0
        %3242 = vmatpush1.bf16.msra.mxu0 %v2986
        %3243 = vmatprep.subr.bf16.mxu0 0
        %3244 = vmatpush1.bf16.msra.mxu0 %v2987
        %3245 = vmatprep.mubr.bf16.mxu0 %v2575
        %3246 = vmatmul.mubr.bf16.gmra.mrb[0].mxu0 %v2574
        %v3247 = vpop.f32.mrb[0].mxu0
        %v3248 = vadd.f32 %v3087, %v3247
        %v3249 = vpop.f32.mrb[0].mxu0
        %v3250 = vpop.f32.mrb[0].mxu0
        %v3251 = vadd.f32 %v3090, %v3250
        %v3252 = vpop.f32.mrb[0].mxu0
        %3253 = vmatprep.mubr.bf16.mxu0 %v2581
        %3254 = vmatmul.mubr.bf16.gmra.mrb[0].mxu0 %v2580
        %v3255 = vpop.f32.mrb[0].mxu0
        %v3256 = vadd.f32 %v3095, %v3255
        %v3257 = vpop.f32.mrb[0].mxu0
        %v3258 = vpop.f32.mrb[0].mxu0
        %v3259 = vadd.f32 %v3098, %v3258
        %v3260 = vpop.f32.mrb[0].mxu0
        %3261 = vmatprep.mubr.bf16.mxu0 %v2587
        %3262 = vmatmul.mubr.bf16.gmra.mrb[0].mxu0 %v2586
        %v3263 = vpop.f32.mrb[0].mxu0
        %v3264 = vadd.f32 %v3103, %v3263
        %v3265 = vpop.f32.mrb[0].mxu0
        %v3266 = vpop.f32.mrb[0].mxu0
        %v3267 = vadd.f32 %v3106, %v3266
        %v3268 = vpop.f32.mrb[0].mxu0
        %3269 = vmatprep.mubr.bf16.mxu0 %v2593
        %3270 = vmatmul.mubr.bf16.gmra.mrb[0].mxu0 %v2592
        %v3271 = vpop.f32.mrb[0].mxu0
        %v3272 = vadd.f32 %v3111, %v3271
        %v3273 = vpop.f32.mrb[0].mxu0
        %v3274 = vpop.f32.mrb[0].mxu0
        %v3275 = vadd.f32 %v3114, %v3274
        %v3276 = vpop.f32.mrb[0].mxu0
        %3277 = vmatprep.mubr.bf16.mxu0 %v2599
        %3278 = vmatmul.mubr.bf16.gmra.mrb[0].mxu0 %v2598
        %v3279 = vpop.f32.mrb[0].mxu0
        %v3280 = vadd.f32 %v3119, %v3279
        %v3281 = vpop.f32.mrb[0].mxu0
        %v3282 = vpop.f32.mrb[0].mxu0
        %v3283 = vadd.f32 %v3122, %v3282
        %v3284 = vpop.f32.mrb[0].mxu0
        %3285 = vmatprep.mubr.bf16.mxu0 %v2605
        %3286 = vmatmul.mubr.bf16.gmra.mrb[0].mxu0 %v2604
        %v3287 = vpop.f32.mrb[0].mxu0
        %v3288 = vadd.f32 %v3127, %v3287
        %v3289 = vpop.f32.mrb[0].mxu0
        %v3290 = vpop.f32.mrb[0].mxu0
        %v3291 = vadd.f32 %v3130, %v3290
        %v3292 = vpop.f32.mrb[0].mxu0
        %3293 = vmatprep.mubr.bf16.mxu0 %v2611
        %3294 = vmatmul.mubr.bf16.gmra.mrb[0].mxu0 %v2610
        %v3295 = vpop.f32.mrb[0].mxu0
        %v3296 = vadd.f32 %v3135, %v3295
        %v3297 = vpop.f32.mrb[0].mxu0
        %v3298 = vpop.f32.mrb[0].mxu0
        %v3299 = vadd.f32 %v3138, %v3298
        %v3300 = vpop.f32.mrb[0].mxu0
        %3301 = vmatprep.mubr.bf16.mxu0 %v2617
        %3302 = vmatmul.mubr.bf16.gmra.mrb[0].mxu0 %v2616
        %v3303 = vpop.f32.mrb[0].mxu0
        %v3304 = vadd.f32 %v3143, %v3303
        %v3305 = vpop.f32.mrb[0].mxu0
        %v3306 = vpop.f32.mrb[0].mxu0
        %v3307 = vadd.f32 %v3146, %v3306
        %v3308 = vpop.f32.mrb[0].mxu0
        %3309 = vmatprep.mubr.bf16.mxu0 %v2623
        %3310 = vmatmul.mubr.bf16.gmra.mrb[0].mxu0 %v2622
        %v3311 = vpop.f32.mrb[0].mxu0
        %v3312 = vadd.f32 %v3151, %v3311
        %v3313 = vpop.f32.mrb[0].mxu0
        %v3314 = vpop.f32.mrb[0].mxu0
        %v3315 = vadd.f32 %v3154, %v3314
        %v3316 = vpop.f32.mrb[0].mxu0
        %3317 = vmatprep.mubr.bf16.mxu0 %v2629
        %3318 = vmatmul.mubr.bf16.gmra.mrb[0].mxu0 %v2628
        %v3319 = vpop.f32.mrb[0].mxu0
        %v3320 = vadd.f32 %v3159, %v3319
        %v3321 = vpop.f32.mrb[0].mxu0
        %v3322 = vpop.f32.mrb[0].mxu0
        %v3323 = vadd.f32 %v3162, %v3322
        %v3324 = vpop.f32.mrb[0].mxu0
        %3325 = vmatprep.mubr.bf16.mxu0 %v2635
        %3326 = vmatmul.mubr.bf16.gmra.mrb[0].mxu0 %v2634
        %v3327 = vpop.f32.mrb[0].mxu0
        %v3328 = vadd.f32 %v3167, %v3327
        %v3329 = vpop.f32.mrb[0].mxu0
        %v3330 = vpop.f32.mrb[0].mxu0
        %v3331 = vadd.f32 %v3170, %v3330
        %v3332 = vpop.f32.mrb[0].mxu0
        %3333 = vmatprep.mubr.bf16.mxu0 %v2641
        %3334 = vmatmul.mubr.bf16.gmra.mrb[0].mxu0 %v2640
        %v3335 = vpop.f32.mrb[0].mxu0
        %v3336 = vadd.f32 %v3175, %v3335
        %v3337 = vpop.f32.mrb[0].mxu0
        %v3338 = vpop.f32.mrb[0].mxu0
        %v3339 = vadd.f32 %v3178, %v3338
        %v3340 = vpop.f32.mrb[0].mxu0
        %3341 = vmatprep.mubr.bf16.mxu0 %v2647
        %3342 = vmatmul.mubr.bf16.gmra.mrb[0].mxu0 %v2646
        %v3343 = vpop.f32.mrb[0].mxu0
        %v3344 = vadd.f32 %v3183, %v3343
        %v3345 = vpop.f32.mrb[0].mxu0
        %v3346 = vpop.f32.mrb[0].mxu0
        %v3347 = vadd.f32 %v3186, %v3346
        %v3348 = vpop.f32.mrb[0].mxu0
        %3349 = vmatprep.mubr.bf16.mxu0 %v2653
        %3350 = vmatmul.mubr.bf16.gmra.mrb[0].mxu0 %v2652
        %v3351 = vpop.f32.mrb[0].mxu0
        %v3352 = vadd.f32 %v3191, %v3351
        %v3353 = vpop.f32.mrb[0].mxu0
        %v3354 = vpop.f32.mrb[0].mxu0
        %v3355 = vadd.f32 %v3194, %v3354
        %v3356 = vpop.f32.mrb[0].mxu0
        %3357 = vmatprep.mubr.bf16.mxu0 %v2659
        %3358 = vmatmul.mubr.bf16.gmra.mrb[0].mxu0 %v2658
        %v3359 = vpop.f32.mrb[0].mxu0
        %v3360 = vadd.f32 %v3199, %v3359
        %v3361 = vpop.f32.mrb[0].mxu0
        %v3362 = vpop.f32.mrb[0].mxu0
        %v3363 = vadd.f32 %v3202, %v3362
        %v3364 = vpop.f32.mrb[0].mxu0
        %3365 = vmatprep.mubr.bf16.mxu0 %v2665
        %3366 = vmatmul.mubr.bf16.gmra.mrb[0].mxu0 %v2664
        %v3367 = vpop.f32.mrb[0].mxu0
        %v3368 = vadd.f32 %v3207, %v3367
        %v3369 = vpop.f32.mrb[0].mxu0
        %v3370 = vpop.f32.mrb[0].mxu0
        %v3371 = vadd.f32 %v3210, %v3370
        %v3372 = vpop.f32.mrb[0].mxu0
        %3373 = vdwg.mxu0
        %3374 = vmatprep.subr.bf16.mxu0 0
        %3375 = vmatpush1.bf16.msra.mxu0 %v2988
        %3376 = vmatprep.subr.bf16.mxu0 0
        %3377 = vmatpush1.bf16.msra.mxu0 %v2989
        %3378 = vmatprep.subr.bf16.mxu0 0
        %3379 = vmatpush1.bf16.msra.mxu0 %v2990
        %3380 = vmatprep.subr.bf16.mxu0 0
        %3381 = vmatpush1.bf16.msra.mxu0 %v2991
        %3382 = vmatprep.subr.bf16.mxu0 0
        %3383 = vmatpush1.bf16.msra.mxu0 %v2992
        %3384 = vmatprep.subr.bf16.mxu0 0
        %3385 = vmatpush1.bf16.msra.mxu0 %v2993
        %3386 = vmatprep.subr.bf16.mxu0 0
        %3387 = vmatpush1.bf16.msra.mxu0 %v2994
        %3388 = vmatprep.subr.bf16.mxu0 0
        %3389 = vmatpush1.bf16.msra.mxu0 %v2995
        %3390 = vmatprep.subr.bf16.mxu0 0
        %3391 = vmatpush1.bf16.msra.mxu0 %v2996
        %3392 = vmatprep.subr.bf16.mxu0 0
        %3393 = vmatpush1.bf16.msra.mxu0 %v2997
        %3394 = vmatprep.subr.bf16.mxu0 0
        %3395 = vmatpush1.bf16.msra.mxu0 %v2998
        %3396 = vmatprep.subr.bf16.mxu0 0
        %3397 = vmatpush1.bf16.msra.mxu0 %v2999
        %3398 = vmatprep.subr.bf16.mxu0 0
        %3399 = vmatpush1.bf16.msra.mxu0 %v3000
        %3400 = vmatprep.subr.bf16.mxu0 0
        %3401 = vmatpush1.bf16.msra.mxu0 %v3001
        %3402 = vmatprep.subr.bf16.mxu0 0
        %3403 = vmatpush1.bf16.msra.mxu0 %v3002
        %3404 = vmatprep.subr.bf16.mxu0 0
        %3405 = vmatpush1.bf16.msra.mxu0 %v3003
        %3406 = vmatprep.mubr.bf16.mxu0 %v2577
        %3407 = vmatmul.mubr.bf16.gmra.mrb[0].mxu0 %v2576
        %v3408 = vpop.f32.mrb[0].mxu0
        %v3409 = vadd.f32 %v3248, %v3408
        %v3410 = vpop.f32.mrb[0].mxu0
        %v3411 = vpop.f32.mrb[0].mxu0
        %v3412 = vadd.f32 %v3251, %v3411
        %v3413 = vpop.f32.mrb[0].mxu0
        %3414 = vmatprep.mubr.bf16.mxu0 %v2583
        %3415 = vmatmul.mubr.bf16.gmra.mrb[0].mxu0 %v2582
        %v3416 = vpop.f32.mrb[0].mxu0
        %v3417 = vadd.f32 %v3256, %v3416
        %v3418 = vpop.f32.mrb[0].mxu0
        %v3419 = vpop.f32.mrb[0].mxu0
        %v3420 = vadd.f32 %v3259, %v3419
        %v3421 = vpop.f32.mrb[0].mxu0
        %3422 = vmatprep.mubr.bf16.mxu0 %v2589
        %3423 = vmatmul.mubr.bf16.gmra.mrb[0].mxu0 %v2588
        %v3424 = vpop.f32.mrb[0].mxu0
        %v3425 = vadd.f32 %v3264, %v3424
        %v3426 = vpop.f32.mrb[0].mxu0
        %v3427 = vpop.f32.mrb[0].mxu0
        %v3428 = vadd.f32 %v3267, %v3427
        %v3429 = vpop.f32.mrb[0].mxu0
        %3430 = vmatprep.mubr.bf16.mxu0 %v2595
        %3431 = vmatmul.mubr.bf16.gmra.mrb[0].mxu0 %v2594
        %v3432 = vpop.f32.mrb[0].mxu0
        %v3433 = vadd.f32 %v3272, %v3432
        %v3434 = vpop.f32.mrb[0].mxu0
        %v3435 = vpop.f32.mrb[0].mxu0
        %v3436 = vadd.f32 %v3275, %v3435
        %v3437 = vpop.f32.mrb[0].mxu0
        %3438 = vmatprep.mubr.bf16.mxu0 %v2601
        %3439 = vmatmul.mubr.bf16.gmra.mrb[0].mxu0 %v2600
        %v3440 = vpop.f32.mrb[0].mxu0
        %v3441 = vadd.f32 %v3280, %v3440
        %v3442 = vpop.f32.mrb[0].mxu0
        %v3443 = vpop.f32.mrb[0].mxu0
        %v3444 = vadd.f32 %v3283, %v3443
        %v3445 = vpop.f32.mrb[0].mxu0
        %3446 = vmatprep.mubr.bf16.mxu0 %v2607
        %3447 = vmatmul.mubr.bf16.gmra.mrb[0].mxu0 %v2606
        %v3448 = vpop.f32.mrb[0].mxu0
        %v3449 = vadd.f32 %v3288, %v3448
        %v3450 = vpop.f32.mrb[0].mxu0
        %v3451 = vpop.f32.mrb[0].mxu0
        %v3452 = vadd.f32 %v3291, %v3451
        %v3453 = vpop.f32.mrb[0].mxu0
        %3454 = vmatprep.mubr.bf16.mxu0 %v2613
        %3455 = vmatmul.mubr.bf16.gmra.mrb[0].mxu0 %v2612
        %v3456 = vpop.f32.mrb[0].mxu0
        %v3457 = vadd.f32 %v3296, %v3456
        %v3458 = vpop.f32.mrb[0].mxu0
        %v3459 = vpop.f32.mrb[0].mxu0
        %v3460 = vadd.f32 %v3299, %v3459
        %v3461 = vpop.f32.mrb[0].mxu0
        %3462 = vmatprep.mubr.bf16.mxu0 %v2619
        %3463 = vmatmul.mubr.bf16.gmra.mrb[0].mxu0 %v2618
        %v3464 = vpop.f32.mrb[0].mxu0
        %v3465 = vadd.f32 %v3304, %v3464
        %v3466 = vpop.f32.mrb[0].mxu0
        %v3467 = vpop.f32.mrb[0].mxu0
        %v3468 = vadd.f32 %v3307, %v3467
        %v3469 = vpop.f32.mrb[0].mxu0
        %3470 = vmatprep.mubr.bf16.mxu0 %v2625
        %3471 = vmatmul.mubr.bf16.gmra.mrb[0].mxu0 %v2624
        %v3472 = vpop.f32.mrb[0].mxu0
        %v3473 = vadd.f32 %v3312, %v3472
        %v3474 = vpop.f32.mrb[0].mxu0
        %v3475 = vpop.f32.mrb[0].mxu0
        %v3476 = vadd.f32 %v3315, %v3475
        %v3477 = vpop.f32.mrb[0].mxu0
        %3478 = vmatprep.mubr.bf16.mxu0 %v2631
        %3479 = vmatmul.mubr.bf16.gmra.mrb[0].mxu0 %v2630
        %v3480 = vpop.f32.mrb[0].mxu0
        %v3481 = vadd.f32 %v3320, %v3480
        %v3482 = vpop.f32.mrb[0].mxu0
        %v3483 = vpop.f32.mrb[0].mxu0
        %v3484 = vadd.f32 %v3323, %v3483
        %v3485 = vpop.f32.mrb[0].mxu0
        %3486 = vmatprep.mubr.bf16.mxu0 %v2637
        %3487 = vmatmul.mubr.bf16.gmra.mrb[0].mxu0 %v2636
        %v3488 = vpop.f32.mrb[0].mxu0
        %v3489 = vadd.f32 %v3328, %v3488
        %v3490 = vpop.f32.mrb[0].mxu0
        %v3491 = vpop.f32.mrb[0].mxu0
        %v3492 = vadd.f32 %v3331, %v3491
        %v3493 = vpop.f32.mrb[0].mxu0
        %3494 = vmatprep.mubr.bf16.mxu0 %v2643
        %3495 = vmatmul.mubr.bf16.gmra.mrb[0].mxu0 %v2642
        %v3496 = vpop.f32.mrb[0].mxu0
        %v3497 = vadd.f32 %v3336, %v3496
        %v3498 = vpop.f32.mrb[0].mxu0
        %v3499 = vpop.f32.mrb[0].mxu0
        %v3500 = vadd.f32 %v3339, %v3499
        %v3501 = vpop.f32.mrb[0].mxu0
        %3502 = vmatprep.mubr.bf16.mxu0 %v2649
        %3503 = vmatmul.mubr.bf16.gmra.mrb[0].mxu0 %v2648
        %v3504 = vpop.f32.mrb[0].mxu0
        %v3505 = vadd.f32 %v3344, %v3504
        %v3506 = vpop.f32.mrb[0].mxu0
        %v3507 = vpop.f32.mrb[0].mxu0
        %v3508 = vadd.f32 %v3347, %v3507
        %v3509 = vpop.f32.mrb[0].mxu0
        %3510 = vmatprep.mubr.bf16.mxu0 %v2655
        %3511 = vmatmul.mubr.bf16.gmra.mrb[0].mxu0 %v2654
        %v3512 = vpop.f32.mrb[0].mxu0
        %v3513 = vadd.f32 %v3352, %v3512
        %v3514 = vpop.f32.mrb[0].mxu0
        %v3515 = vpop.f32.mrb[0].mxu0
        %v3516 = vadd.f32 %v3355, %v3515
        %v3517 = vpop.f32.mrb[0].mxu0
        %3518 = vmatprep.mubr.bf16.mxu0 %v2661
        %3519 = vmatmul.mubr.bf16.gmra.mrb[0].mxu0 %v2660
        %v3520 = vpop.f32.mrb[0].mxu0
        %v3521 = vadd.f32 %v3360, %v3520
        %v3522 = vpop.f32.mrb[0].mxu0
        %v3523 = vpop.f32.mrb[0].mxu0
        %v3524 = vadd.f32 %v3363, %v3523
        %v3525 = vpop.f32.mrb[0].mxu0
        %3526 = vmatprep.mubr.bf16.mxu0 %v2667
        %3527 = vmatmul.mubr.bf16.gmra.mrb[0].mxu0 %v2666
        %v3528 = vpop.f32.mrb[0].mxu0
        %v3529 = vadd.f32 %v3368, %v3528
        %v3530 = vpop.f32.mrb[0].mxu0
        %v3531 = vpop.f32.mrb[0].mxu0
        %v3532 = vadd.f32 %v3371, %v3531
        %v3533 = vpop.f32.mrb[0].mxu0
        %3534 = vdwg.mxu0
        %vm3535 = vcmp.gt.f32.partialorder %v3409, 0.0
        %vm3536 = vcmp.gt.f32.partialorder %v3412, 0.0
        %vm3537 = vcmp.gt.f32.partialorder %v3417, 0.0
        %vm3538 = vcmp.gt.f32.partialorder %v3420, 0.0
        %vm3539 = vcmp.gt.f32.partialorder %v3425, 0.0
        %vm3540 = vcmp.gt.f32.partialorder %v3428, 0.0
        %vm3541 = vcmp.gt.f32.partialorder %v3433, 0.0
        %vm3542 = vcmp.gt.f32.partialorder %v3436, 0.0
        %vm3543 = vcmp.gt.f32.partialorder %v3441, 0.0
        %vm3544 = vcmp.gt.f32.partialorder %v3444, 0.0
        %vm3545 = vcmp.gt.f32.partialorder %v3449, 0.0
        %vm3546 = vcmp.gt.f32.partialorder %v3452, 0.0
        %vm3547 = vcmp.gt.f32.partialorder %v3457, 0.0
        %vm3548 = vcmp.gt.f32.partialorder %v3460, 0.0
        %vm3549 = vcmp.gt.f32.partialorder %v3465, 0.0
        %vm3550 = vcmp.gt.f32.partialorder %v3468, 0.0
        %vm3551 = vcmp.gt.f32.partialorder %v3473, 0.0
        %vm3552 = vcmp.gt.f32.partialorder %v3476, 0.0
        %vm3553 = vcmp.gt.f32.partialorder %v3481, 0.0
        %vm3554 = vcmp.gt.f32.partialorder %v3484, 0.0
        %vm3555 = vcmp.gt.f32.partialorder %v3489, 0.0
        %vm3556 = vcmp.gt.f32.partialorder %v3492, 0.0
        %vm3557 = vcmp.gt.f32.partialorder %v3497, 0.0
        %vm3558 = vcmp.gt.f32.partialorder %v3500, 0.0
        %vm3559 = vcmp.gt.f32.partialorder %v3505, 0.0
        %vm3560 = vcmp.gt.f32.partialorder %v3508, 0.0
        %vm3561 = vcmp.gt.f32.partialorder %v3513, 0.0
        %vm3562 = vcmp.gt.f32.partialorder %v3516, 0.0
        %vm3563 = vcmp.gt.f32.partialorder %v3521, 0.0
        %vm3564 = vcmp.gt.f32.partialorder %v3524, 0.0
        %vm3565 = vcmp.gt.f32.partialorder %v3529, 0.0
        %vm3566 = vcmp.gt.f32.partialorder %v3532, 0.0
        %v3567 = vmul.f32 %v3409, 0.01
        %v3568 = vmul.f32 %v3412, 0.01
        %v3569 = vmul.f32 %v3417, 0.01
        %v3570 = vmul.f32 %v3420, 0.01
        %v3571 = vmul.f32 %v3425, 0.01
        %v3572 = vmul.f32 %v3428, 0.01
        %v3573 = vmul.f32 %v3433, 0.01
        %v3574 = vmul.f32 %v3436, 0.01
        %v3575 = vmul.f32 %v3441, 0.01
        %v3576 = vmul.f32 %v3444, 0.01
        %v3577 = vmul.f32 %v3449, 0.01
        %v3578 = vmul.f32 %v3452, 0.01
        %v3579 = vmul.f32 %v3457, 0.01
        %v3580 = vmul.f32 %v3460, 0.01
        %v3581 = vmul.f32 %v3465, 0.01
        %v3582 = vmul.f32 %v3468, 0.01
        %v3583 = vmul.f32 %v3473, 0.01
        %v3584 = vmul.f32 %v3476, 0.01
        %v3585 = vmul.f32 %v3481, 0.01
        %v3586 = vmul.f32 %v3484, 0.01
        %v3587 = vmul.f32 %v3489, 0.01
        %v3588 = vmul.f32 %v3492, 0.01
        %v3589 = vmul.f32 %v3497, 0.01
        %v3590 = vmul.f32 %v3500, 0.01
        %v3591 = vmul.f32 %v3505, 0.01
        %v3592 = vmul.f32 %v3508, 0.01
        %v3593 = vmul.f32 %v3513, 0.01
        %v3594 = vmul.f32 %v3516, 0.01
        %v3595 = vmul.f32 %v3521, 0.01
        %v3596 = vmul.f32 %v3524, 0.01
        %v3597 = vmul.f32 %v3529, 0.01
        %v3598 = vmul.f32 %v3532, 0.01
        %v3599 = vsel %vm3535, %v3409, %v3567
        %v3600 = vsel %vm3536, %v3412, %v3568
        %v3601 = vsel %vm3537, %v3417, %v3569
        %v3602 = vsel %vm3538, %v3420, %v3570
        %v3603 = vsel %vm3539, %v3425, %v3571
        %v3604 = vsel %vm3540, %v3428, %v3572
        %v3605 = vsel %vm3541, %v3433, %v3573
        %v3606 = vsel %vm3542, %v3436, %v3574
        %v3607 = vsel %vm3543, %v3441, %v3575
        %v3608 = vsel %vm3544, %v3444, %v3576
        %v3609 = vsel %vm3545, %v3449, %v3577
        %v3610 = vsel %vm3546, %v3452, %v3578
        %v3611 = vsel %vm3547, %v3457, %v3579
        %v3612 = vsel %vm3548, %v3460, %v3580
        %v3613 = vsel %vm3549, %v3465, %v3581
        %v3614 = vsel %vm3550, %v3468, %v3582
        %v3615 = vsel %vm3551, %v3473, %v3583
        %v3616 = vsel %vm3552, %v3476, %v3584
        %v3617 = vsel %vm3553, %v3481, %v3585
        %v3618 = vsel %vm3554, %v3484, %v3586
        %v3619 = vsel %vm3555, %v3489, %v3587
        %v3620 = vsel %vm3556, %v3492, %v3588
        %v3621 = vsel %vm3557, %v3497, %v3589
        %v3622 = vsel %vm3558, %v3500, %v3590
        %v3623 = vsel %vm3559, %v3505, %v3591
        %v3624 = vsel %vm3560, %v3508, %v3592
        %v3625 = vsel %vm3561, %v3513, %v3593
        %v3626 = vsel %vm3562, %v3516, %v3594
        %v3627 = vsel %vm3563, %v3521, %v3595
        %v3628 = vsel %vm3564, %v3524, %v3596
        %v3629 = vsel %vm3565, %v3529, %v3597
        %v3630 = vsel %vm3566, %v3532, %v3598
        %v3631 = vld [vmem:[%s534] sm:$0xff]
        %v3632 = vld [vmem:[%s534 + $0x8] sm:$0xff]
        %v3633 = vld [vmem:[%s534 + $0x10] sm:$0xff]
        %v3634 = vld [vmem:[%s534 + $0x18] sm:$0xff]
        %v3635 = vld [vmem:[%s534 + $0x20] sm:$0xff]
        %v3636 = vld [vmem:[%s534 + $0x28] sm:$0xff]
        %v3637 = vld [vmem:[%s534 + $0x30] sm:$0xff]
        %v3638 = vld [vmem:[%s534 + $0x38] sm:$0xff]
        %v3639 = vld [vmem:[%s534 + $0x40] sm:$0xff]
        %v3640 = vld [vmem:[%s534 + $0x48] sm:$0xff]
        %v3641 = vld [vmem:[%s534 + $0x50] sm:$0xff]
        %v3642 = vld [vmem:[%s534 + $0x58] sm:$0xff]
        %v3643 = vld [vmem:[%s534 + $0x60] sm:$0xff]
        %v3644 = vld [vmem:[%s534 + $0x68] sm:$0xff]
        %v3645 = vld [vmem:[%s534 + $0x70] sm:$0xff]
        %v3646 = vld [vmem:[%s534 + $0x78] sm:$0xff]
        %v3647 = vld [vmem:[%s534 + $0x80] sm:$0xff]
        %v3648 = vld [vmem:[%s534 + $0x88] sm:$0xff]
        %v3649 = vld [vmem:[%s534 + $0x90] sm:$0xff]
        %v3650 = vld [vmem:[%s534 + $0x98] sm:$0xff]
        %v3651 = vld [vmem:[%s534 + $0xa0] sm:$0xff]
        %v3652 = vld [vmem:[%s534 + $0xa8] sm:$0xff]
        %v3653 = vld [vmem:[%s534 + $0xb0] sm:$0xff]
        %v3654 = vld [vmem:[%s534 + $0xb8] sm:$0xff]
        %v3655 = vld [vmem:[%s534 + $0xc0] sm:$0xff]
        %v3656 = vld [vmem:[%s534 + $0xc8] sm:$0xff]
        %v3657 = vld [vmem:[%s534 + $0xd0] sm:$0xff]
        %v3658 = vld [vmem:[%s534 + $0xd8] sm:$0xff]
        %v3659 = vld [vmem:[%s534 + $0xe0] sm:$0xff]
        %v3660 = vld [vmem:[%s534 + $0xe8] sm:$0xff]
        %v3661 = vld [vmem:[%s534 + $0xf0] sm:$0xff]
        %v3662 = vld [vmem:[%s534 + $0xf8] sm:$0xff]
        %v3663 = vld [vmem:[%s7] sm:$0xff]
        %v3664 = vld [vmem:[%s8] sm:$0x1]
        %v3666 = vlaneseq
        %v3667 = vshrl.u32 %v3666, 7
        %v3668 = vsub.s32 0, %v3667
        %v3669 = vrot.slane %v3664, %v3668
        %vm3671 = vcmask 64512
        %v3673 = vsel %vm3671, %v3631, 0
        %v3676 = vsel %vm3671, %v3632, 0
        %v3679 = vsel %vm3671, %v3633, 0
        %v3682 = vsel %vm3671, %v3634, 0
        %v3685 = vsel %vm3671, %v3635, 0
        %v3688 = vsel %vm3671, %v3636, 0
        %v3691 = vsel %vm3671, %v3637, 0
        %v3694 = vsel %vm3671, %v3638, 0
        %v3697 = vsel %vm3671, %v3639, 0
        %v3700 = vsel %vm3671, %v3640, 0
        %v3703 = vsel %vm3671, %v3641, 0
        %v3706 = vsel %vm3671, %v3642, 0
        %v3709 = vsel %vm3671, %v3643, 0
        %v3712 = vsel %vm3671, %v3644, 0
        %v3715 = vsel %vm3671, %v3645, 0
        %v3718 = vsel %vm3671, %v3646, 0
        %v3721 = vsel %vm3671, %v3647, 0
        %v3724 = vsel %vm3671, %v3648, 0
        %v3727 = vsel %vm3671, %v3649, 0
        %v3730 = vsel %vm3671, %v3650, 0
        %v3733 = vsel %vm3671, %v3651, 0
        %v3736 = vsel %vm3671, %v3652, 0
        %v3739 = vsel %vm3671, %v3653, 0
        %v3742 = vsel %vm3671, %v3654, 0
        %v3745 = vsel %vm3671, %v3655, 0
        %v3748 = vsel %vm3671, %v3656, 0
        %v3751 = vsel %vm3671, %v3657, 0
        %v3754 = vsel %vm3671, %v3658, 0
        %v3757 = vsel %vm3671, %v3659, 0
        %v3760 = vsel %vm3671, %v3660, 0
        %v3763 = vsel %vm3671, %v3661, 0
        %v3766 = vsel %vm3671, %v3662, 0
        %3768 = vmatprep.subr.mxu0 0.0
        %3769 = vmatpush1.msra.mxu0 %v3663
        %3770 = vmatprep.subr.mxu0 0.0
        %3771 = vmatpush1.msra.mxu0 0.0
        %3772 = vmatprep.subr.mxu0 0.0
        %3773 = vmatpush1.msra.mxu0 0.0
        %3774 = vmatprep.subr.mxu0 0.0
        %3775 = vmatpush1.msra.mxu0 0.0
        %3776 = vmatprep.subr.mxu0 0.0
        %3777 = vmatpush1.msra.mxu0 0.0
        %3778 = vmatprep.subr.mxu0 0.0
        %3779 = vmatpush1.msra.mxu0 0.0
        %3780 = vmatprep.subr.mxu0 0.0
        %3781 = vmatpush1.msra.mxu0 0.0
        %3782 = vmatprep.subr.mxu0 0.0
        %3783 = vmatpush1.msra.mxu0 0.0
        %3784 = vmatprep.subr.mxu0 0.0
        %3785 = vmatpush1.msra.mxu0 0.0
        %3786 = vmatprep.subr.mxu0 0.0
        %3787 = vmatpush1.msra.mxu0 0.0
        %3788 = vmatprep.subr.mxu0 0.0
        %3789 = vmatpush1.msra.mxu0 0.0
        %3790 = vmatprep.subr.mxu0 0.0
        %3791 = vmatpush1.msra.mxu0 0.0
        %3792 = vmatprep.subr.mxu0 0.0
        %3793 = vmatpush1.msra.mxu0 0.0
        %3794 = vmatprep.subr.mxu0 0.0
        %3795 = vmatpush1.msra.mxu0 0.0
        %3796 = vmatprep.subr.mxu0 0.0
        %3797 = vmatpush1.msra.mxu0 0.0
        %3798 = vmatprep.subr.mxu0 0.0
        %3799 = vmatpush1.msra.mxu0 0.0
        %3800 = vmatprep.subr.mxu0 0.0
        %3801 = vmatpush1.msra.mxu0 0.0
        %3802 = vmatprep.subr.mxu0 0.0
        %3803 = vmatpush1.msra.mxu0 0.0
        %3804 = vmatprep.subr.mxu0 0.0
        %3805 = vmatpush1.msra.mxu0 0.0
        %3806 = vmatprep.subr.mxu0 0.0
        %3807 = vmatpush1.msra.mxu0 0.0
        %3808 = vmatprep.subr.mxu0 0.0
        %3809 = vmatpush1.msra.mxu0 0.0
        %3810 = vmatprep.subr.mxu0 0.0
        %3811 = vmatpush1.msra.mxu0 0.0
        %3812 = vmatprep.subr.mxu0 0.0
        %3813 = vmatpush1.msra.mxu0 0.0
        %3814 = vmatprep.subr.mxu0 0.0
        %3815 = vmatpush1.msra.mxu0 0.0
        %3816 = vmatprep.subr.mxu0 0.0
        %3817 = vmatpush1.msra.mxu0 0.0
        %3818 = vmatprep.subr.mxu0 0.0
        %3819 = vmatpush1.msra.mxu0 0.0
        %3820 = vmatprep.subr.mxu0 0.0
        %3821 = vmatpush1.msra.mxu0 0.0
        %3822 = vmatprep.subr.mxu0 0.0
        %3823 = vmatpush1.msra.mxu0 0.0
        %3824 = vmatprep.subr.mxu0 0.0
        %3825 = vmatpush1.msra.mxu0 0.0
        %3826 = vmatprep.subr.mxu0 0.0
        %3827 = vmatpush1.msra.mxu0 0.0
        %3828 = vmatprep.subr.mxu0 0.0
        %3829 = vmatpush1.msra.mxu0 0.0
        %3830 = vmatprep.subr.mxu0 0.0
        %3831 = vmatpush1.msra.mxu0 0.0
        %3832 = vmatprep.mubr.f32.mxu0 0.0
        %3833 = vmatmul.mubr.f32.gmra.mrb[0].mxu0 %v3673
        %v3834 = vpop.f32.mrb[0].mxu0
        %v3835 = vadd.f32 %v3669, %v3834
        %v3836 = vpop.f32.mrb[0].mxu0
        %3837 = vmatprep.mubr.f32.mxu0 0.0
        %3838 = vmatmul.mubr.f32.gmra.mrb[0].mxu0 %v3676
        %v3839 = vpop.f32.mrb[0].mxu0
        %v3840 = vadd.f32 %v3669, %v3839
        %v3841 = vpop.f32.mrb[0].mxu0
        %3842 = vmatprep.mubr.f32.mxu0 0.0
        %3843 = vmatmul.mubr.f32.gmra.mrb[0].mxu0 %v3679
        %v3844 = vpop.f32.mrb[0].mxu0
        %v3845 = vadd.f32 %v3669, %v3844
        %v3846 = vpop.f32.mrb[0].mxu0
        %3847 = vmatprep.mubr.f32.mxu0 0.0
        %3848 = vmatmul.mubr.f32.gmra.mrb[0].mxu0 %v3682
        %v3849 = vpop.f32.mrb[0].mxu0
        %v3850 = vadd.f32 %v3669, %v3849
        %v3851 = vpop.f32.mrb[0].mxu0
        %3852 = vmatprep.mubr.f32.mxu0 0.0
        %3853 = vmatmul.mubr.f32.gmra.mrb[0].mxu0 %v3685
        %v3854 = vpop.f32.mrb[0].mxu0
        %v3855 = vadd.f32 %v3669, %v3854
        %v3856 = vpop.f32.mrb[0].mxu0
        %3857 = vmatprep.mubr.f32.mxu0 0.0
        %3858 = vmatmul.mubr.f32.gmra.mrb[0].mxu0 %v3688
        %v3859 = vpop.f32.mrb[0].mxu0
        %v3860 = vadd.f32 %v3669, %v3859
        %v3861 = vpop.f32.mrb[0].mxu0
        %3862 = vmatprep.mubr.f32.mxu0 0.0
        %3863 = vmatmul.mubr.f32.gmra.mrb[0].mxu0 %v3691
        %v3864 = vpop.f32.mrb[0].mxu0
        %v3865 = vadd.f32 %v3669, %v3864
        %v3866 = vpop.f32.mrb[0].mxu0
        %3867 = vmatprep.mubr.f32.mxu0 0.0
        %3868 = vmatmul.mubr.f32.gmra.mrb[0].mxu0 %v3694
        %v3869 = vpop.f32.mrb[0].mxu0
        %v3870 = vadd.f32 %v3669, %v3869
        %v3871 = vpop.f32.mrb[0].mxu0
        %3872 = vmatprep.mubr.f32.mxu0 0.0
        %3873 = vmatmul.mubr.f32.gmra.mrb[0].mxu0 %v3697
        %v3874 = vpop.f32.mrb[0].mxu0
        %v3875 = vadd.f32 %v3669, %v3874
        %v3876 = vpop.f32.mrb[0].mxu0
        %3877 = vmatprep.mubr.f32.mxu0 0.0
        %3878 = vmatmul.mubr.f32.gmra.mrb[0].mxu0 %v3700
        %v3879 = vpop.f32.mrb[0].mxu0
        %v3880 = vadd.f32 %v3669, %v3879
        %v3881 = vpop.f32.mrb[0].mxu0
        %3882 = vmatprep.mubr.f32.mxu0 0.0
        %3883 = vmatmul.mubr.f32.gmra.mrb[0].mxu0 %v3703
        %v3884 = vpop.f32.mrb[0].mxu0
        %v3885 = vadd.f32 %v3669, %v3884
        %v3886 = vpop.f32.mrb[0].mxu0
        %3887 = vmatprep.mubr.f32.mxu0 0.0
        %3888 = vmatmul.mubr.f32.gmra.mrb[0].mxu0 %v3706
        %v3889 = vpop.f32.mrb[0].mxu0
        %v3890 = vadd.f32 %v3669, %v3889
        %v3891 = vpop.f32.mrb[0].mxu0
        %3892 = vmatprep.mubr.f32.mxu0 0.0
        %3893 = vmatmul.mubr.f32.gmra.mrb[0].mxu0 %v3709
        %v3894 = vpop.f32.mrb[0].mxu0
        %v3895 = vadd.f32 %v3669, %v3894
        %v3896 = vpop.f32.mrb[0].mxu0
        %3897 = vmatprep.mubr.f32.mxu0 0.0
        %3898 = vmatmul.mubr.f32.gmra.mrb[0].mxu0 %v3712
        %v3899 = vpop.f32.mrb[0].mxu0
        %v3900 = vadd.f32 %v3669, %v3899
        %v3901 = vpop.f32.mrb[0].mxu0
        %3902 = vmatprep.mubr.f32.mxu0 0.0
        %3903 = vmatmul.mubr.f32.gmra.mrb[0].mxu0 %v3715
        %v3904 = vpop.f32.mrb[0].mxu0
        %v3905 = vadd.f32 %v3669, %v3904
        %v3906 = vpop.f32.mrb[0].mxu0
        %3907 = vmatprep.mubr.f32.mxu0 0.0
        %3908 = vmatmul.mubr.f32.gmra.mrb[0].mxu0 %v3718
        %v3909 = vpop.f32.mrb[0].mxu0
        %v3910 = vadd.f32 %v3669, %v3909
        %v3911 = vpop.f32.mrb[0].mxu0
        %3912 = vmatprep.mubr.f32.mxu0 0.0
        %3913 = vmatmul.mubr.f32.gmra.mrb[0].mxu0 %v3721
        %v3914 = vpop.f32.mrb[0].mxu0
        %v3915 = vadd.f32 %v3669, %v3914
        %v3916 = vpop.f32.mrb[0].mxu0
        %3917 = vmatprep.mubr.f32.mxu0 0.0
        %3918 = vmatmul.mubr.f32.gmra.mrb[0].mxu0 %v3724
        %v3919 = vpop.f32.mrb[0].mxu0
        %v3920 = vadd.f32 %v3669, %v3919
        %v3921 = vpop.f32.mrb[0].mxu0
        %3922 = vmatprep.mubr.f32.mxu0 0.0
        %3923 = vmatmul.mubr.f32.gmra.mrb[0].mxu0 %v3727
        %v3924 = vpop.f32.mrb[0].mxu0
        %v3925 = vadd.f32 %v3669, %v3924
        %v3926 = vpop.f32.mrb[0].mxu0
        %3927 = vmatprep.mubr.f32.mxu0 0.0
        %3928 = vmatmul.mubr.f32.gmra.mrb[0].mxu0 %v3730
        %v3929 = vpop.f32.mrb[0].mxu0
        %v3930 = vadd.f32 %v3669, %v3929
        %v3931 = vpop.f32.mrb[0].mxu0
        %3932 = vmatprep.mubr.f32.mxu0 0.0
        %3933 = vmatmul.mubr.f32.gmra.mrb[0].mxu0 %v3733
        %v3934 = vpop.f32.mrb[0].mxu0
        %v3935 = vadd.f32 %v3669, %v3934
        %v3936 = vpop.f32.mrb[0].mxu0
        %3937 = vmatprep.mubr.f32.mxu0 0.0
        %3938 = vmatmul.mubr.f32.gmra.mrb[0].mxu0 %v3736
        %v3939 = vpop.f32.mrb[0].mxu0
        %v3940 = vadd.f32 %v3669, %v3939
        %v3941 = vpop.f32.mrb[0].mxu0
        %3942 = vmatprep.mubr.f32.mxu0 0.0
        %3943 = vmatmul.mubr.f32.gmra.mrb[0].mxu0 %v3739
        %v3944 = vpop.f32.mrb[0].mxu0
        %v3945 = vadd.f32 %v3669, %v3944
        %v3946 = vpop.f32.mrb[0].mxu0
        %3947 = vmatprep.mubr.f32.mxu0 0.0
        %3948 = vmatmul.mubr.f32.gmra.mrb[0].mxu0 %v3742
        %v3949 = vpop.f32.mrb[0].mxu0
        %v3950 = vadd.f32 %v3669, %v3949
        %v3951 = vpop.f32.mrb[0].mxu0
        %3952 = vmatprep.mubr.f32.mxu0 0.0
        %3953 = vmatmul.mubr.f32.gmra.mrb[0].mxu0 %v3745
        %v3954 = vpop.f32.mrb[0].mxu0
        %v3955 = vadd.f32 %v3669, %v3954
        %v3956 = vpop.f32.mrb[0].mxu0
        %3957 = vmatprep.mubr.f32.mxu0 0.0
        %3958 = vmatmul.mubr.f32.gmra.mrb[0].mxu0 %v3748
        %v3959 = vpop.f32.mrb[0].mxu0
        %v3960 = vadd.f32 %v3669, %v3959
        %v3961 = vpop.f32.mrb[0].mxu0
        %3962 = vmatprep.mubr.f32.mxu0 0.0
        %3963 = vmatmul.mubr.f32.gmra.mrb[0].mxu0 %v3751
        %v3964 = vpop.f32.mrb[0].mxu0
        %v3965 = vadd.f32 %v3669, %v3964
        %v3966 = vpop.f32.mrb[0].mxu0
        %3967 = vmatprep.mubr.f32.mxu0 0.0
        %3968 = vmatmul.mubr.f32.gmra.mrb[0].mxu0 %v3754
        %v3969 = vpop.f32.mrb[0].mxu0
        %v3970 = vadd.f32 %v3669, %v3969
        %v3971 = vpop.f32.mrb[0].mxu0
        %3972 = vmatprep.mubr.f32.mxu0 0.0
        %3973 = vmatmul.mubr.f32.gmra.mrb[0].mxu0 %v3757
        %v3974 = vpop.f32.mrb[0].mxu0
        %v3975 = vadd.f32 %v3669, %v3974
        %v3976 = vpop.f32.mrb[0].mxu0
        %3977 = vmatprep.mubr.f32.mxu0 0.0
        %3978 = vmatmul.mubr.f32.gmra.mrb[0].mxu0 %v3760
        %v3979 = vpop.f32.mrb[0].mxu0
        %v3980 = vadd.f32 %v3669, %v3979
        %v3981 = vpop.f32.mrb[0].mxu0
        %3982 = vmatprep.mubr.f32.mxu0 0.0
        %3983 = vmatmul.mubr.f32.gmra.mrb[0].mxu0 %v3763
        %v3984 = vpop.f32.mrb[0].mxu0
        %v3985 = vadd.f32 %v3669, %v3984
        %v3986 = vpop.f32.mrb[0].mxu0
        %3987 = vmatprep.mubr.f32.mxu0 0.0
        %3988 = vmatmul.mubr.f32.gmra.mrb[0].mxu0 %v3766
        %v3989 = vpop.f32.mrb[0].mxu0
        %v3990 = vadd.f32 %v3669, %v3989
        %v3991 = vpop.f32.mrb[0].mxu0
        %3992 = vdwg.mxu0
        %vm3993 = vcmp.gt.f32.partialorder %v3835, 0.0
        %vm3994 = vcmp.gt.f32.partialorder %v3840, 0.0
        %vm3995 = vcmp.gt.f32.partialorder %v3845, 0.0
        %vm3996 = vcmp.gt.f32.partialorder %v3850, 0.0
        %vm3997 = vcmp.gt.f32.partialorder %v3855, 0.0
        %vm3998 = vcmp.gt.f32.partialorder %v3860, 0.0
        %vm3999 = vcmp.gt.f32.partialorder %v3865, 0.0
        %vm4000 = vcmp.gt.f32.partialorder %v3870, 0.0
        %vm4001 = vcmp.gt.f32.partialorder %v3875, 0.0
        %vm4002 = vcmp.gt.f32.partialorder %v3880, 0.0
        %vm4003 = vcmp.gt.f32.partialorder %v3885, 0.0
        %vm4004 = vcmp.gt.f32.partialorder %v3890, 0.0
        %vm4005 = vcmp.gt.f32.partialorder %v3895, 0.0
        %vm4006 = vcmp.gt.f32.partialorder %v3900, 0.0
        %vm4007 = vcmp.gt.f32.partialorder %v3905, 0.0
        %vm4008 = vcmp.gt.f32.partialorder %v3910, 0.0
        %vm4009 = vcmp.gt.f32.partialorder %v3915, 0.0
        %vm4010 = vcmp.gt.f32.partialorder %v3920, 0.0
        %vm4011 = vcmp.gt.f32.partialorder %v3925, 0.0
        %vm4012 = vcmp.gt.f32.partialorder %v3930, 0.0
        %vm4013 = vcmp.gt.f32.partialorder %v3935, 0.0
        %vm4014 = vcmp.gt.f32.partialorder %v3940, 0.0
        %vm4015 = vcmp.gt.f32.partialorder %v3945, 0.0
        %vm4016 = vcmp.gt.f32.partialorder %v3950, 0.0
        %vm4017 = vcmp.gt.f32.partialorder %v3955, 0.0
        %vm4018 = vcmp.gt.f32.partialorder %v3960, 0.0
        %vm4019 = vcmp.gt.f32.partialorder %v3965, 0.0
        %vm4020 = vcmp.gt.f32.partialorder %v3970, 0.0
        %vm4021 = vcmp.gt.f32.partialorder %v3975, 0.0
        %vm4022 = vcmp.gt.f32.partialorder %v3980, 0.0
        %vm4023 = vcmp.gt.f32.partialorder %v3985, 0.0
        %vm4024 = vcmp.gt.f32.partialorder %v3990, 0.0
        %v4025 = vmul.f32 %v3835, 0.01
        %v4026 = vmul.f32 %v3840, 0.01
        %v4027 = vmul.f32 %v3845, 0.01
        %v4028 = vmul.f32 %v3850, 0.01
        %v4029 = vmul.f32 %v3855, 0.01
        %v4030 = vmul.f32 %v3860, 0.01
        %v4031 = vmul.f32 %v3865, 0.01
        %v4032 = vmul.f32 %v3870, 0.01
        %v4033 = vmul.f32 %v3875, 0.01
        %v4034 = vmul.f32 %v3880, 0.01
        %v4035 = vmul.f32 %v3885, 0.01
        %v4036 = vmul.f32 %v3890, 0.01
        %v4037 = vmul.f32 %v3895, 0.01
        %v4038 = vmul.f32 %v3900, 0.01
        %v4039 = vmul.f32 %v3905, 0.01
        %v4040 = vmul.f32 %v3910, 0.01
        %v4041 = vmul.f32 %v3915, 0.01
        %v4042 = vmul.f32 %v3920, 0.01
        %v4043 = vmul.f32 %v3925, 0.01
        %v4044 = vmul.f32 %v3930, 0.01
        %v4045 = vmul.f32 %v3935, 0.01
        %v4046 = vmul.f32 %v3940, 0.01
        %v4047 = vmul.f32 %v3945, 0.01
        %v4048 = vmul.f32 %v3950, 0.01
        %v4049 = vmul.f32 %v3955, 0.01
        %v4050 = vmul.f32 %v3960, 0.01
        %v4051 = vmul.f32 %v3965, 0.01
        %v4052 = vmul.f32 %v3970, 0.01
        %v4053 = vmul.f32 %v3975, 0.01
        %v4054 = vmul.f32 %v3980, 0.01
        %v4055 = vmul.f32 %v3985, 0.01
        %v4056 = vmul.f32 %v3990, 0.01
        %v4057 = vsel %vm3993, %v3835, %v4025
        %v4058 = vsel %vm3994, %v3840, %v4026
        %v4059 = vsel %vm3995, %v3845, %v4027
        %v4060 = vsel %vm3996, %v3850, %v4028
        %v4061 = vsel %vm3997, %v3855, %v4029
        %v4062 = vsel %vm3998, %v3860, %v4030
        %v4063 = vsel %vm3999, %v3865, %v4031
        %v4064 = vsel %vm4000, %v3870, %v4032
        %v4065 = vsel %vm4001, %v3875, %v4033
        %v4066 = vsel %vm4002, %v3880, %v4034
        %v4067 = vsel %vm4003, %v3885, %v4035
        %v4068 = vsel %vm4004, %v3890, %v4036
        %v4069 = vsel %vm4005, %v3895, %v4037
        %v4070 = vsel %vm4006, %v3900, %v4038
        %v4071 = vsel %vm4007, %v3905, %v4039
        %v4072 = vsel %vm4008, %v3910, %v4040
        %v4073 = vsel %vm4009, %v3915, %v4041
        %v4074 = vsel %vm4010, %v3920, %v4042
        %v4075 = vsel %vm4011, %v3925, %v4043
        %v4076 = vsel %vm4012, %v3930, %v4044
        %v4077 = vsel %vm4013, %v3935, %v4045
        %v4078 = vsel %vm4014, %v3940, %v4046
        %v4079 = vsel %vm4015, %v3945, %v4047
        %v4080 = vsel %vm4016, %v3950, %v4048
        %v4081 = vsel %vm4017, %v3955, %v4049
        %v4082 = vsel %vm4018, %v3960, %v4050
        %v4083 = vsel %vm4019, %v3965, %v4051
        %v4084 = vsel %vm4020, %v3970, %v4052
        %v4085 = vsel %vm4021, %v3975, %v4053
        %v4086 = vsel %vm4022, %v3980, %v4054
        %v4087 = vsel %vm4023, %v3985, %v4055
        %v4088 = vsel %vm4024, %v3990, %v4056
        %v4089 = vld [vmem:[%s9] sm:$0xf]
        %v4090 = vld [vmem:[%s9 + $0x4] sm:$0xf]
        %v4091 = vld [vmem:[%s9 + $0x8] sm:$0xf]
        %v4092 = vld [vmem:[%s9 + $0xc] sm:$0xf]
        %v4093 = vld [vmem:[%s9 + $0x10] sm:$0xf]
        %v4094 = vld [vmem:[%s9 + $0x14] sm:$0xf]
        %v4095 = vld [vmem:[%s9 + $0x18] sm:$0xf]
        %v4096 = vld [vmem:[%s9 + $0x1c] sm:$0xf]
        %v4097 = vld [vmem:[%s9 + $0x20] sm:$0xf]
        %v4098 = vld [vmem:[%s9 + $0x24] sm:$0xf]
        %v4099 = vld [vmem:[%s9 + $0x28] sm:$0xf]
        %v4100 = vld [vmem:[%s9 + $0x2c] sm:$0xf]
        %v4101 = vld [vmem:[%s9 + $0x30] sm:$0xf]
        %v4102 = vld [vmem:[%s9 + $0x34] sm:$0xf]
        %v4103 = vld [vmem:[%s9 + $0x38] sm:$0xf]
        %v4104 = vld [vmem:[%s9 + $0x3c] sm:$0xf]
        %v4105 = vpack.c.bf16 %v2054, %v2053
        %v4106 = vpack.c.bf16 %v2056, %v2055
        %v4107 = vpack.c.bf16 %v2058, %v2057
        %v4108 = vpack.c.bf16 %v2060, %v2059
        %v4109 = vpack.c.bf16 %v2062, %v2061
        %v4110 = vpack.c.bf16 %v2064, %v2063
        %v4111 = vpack.c.bf16 %v2066, %v2065
        %v4112 = vpack.c.bf16 %v2068, %v2067
        %v4113 = vpack.c.bf16 %v2070, %v2069
        %v4114 = vpack.c.bf16 %v2072, %v2071
        %v4115 = vpack.c.bf16 %v2074, %v2073
        %v4116 = vpack.c.bf16 %v2076, %v2075
        %v4117 = vpack.c.bf16 %v2078, %v2077
        %v4118 = vpack.c.bf16 %v2080, %v2079
        %v4119 = vpack.c.bf16 %v2082, %v2081
        %v4120 = vpack.c.bf16 %v2084, %v2083
        %v4121 = vpack.c.bf16 %v3600, %v3599
        %v4122 = vpack.c.bf16 %v3602, %v3601
        %v4123 = vpack.c.bf16 %v3604, %v3603
        %v4124 = vpack.c.bf16 %v3606, %v3605
        %v4125 = vpack.c.bf16 %v3608, %v3607
        %v4126 = vpack.c.bf16 %v3610, %v3609
        %v4127 = vpack.c.bf16 %v3612, %v3611
        %v4128 = vpack.c.bf16 %v3614, %v3613
        %v4129 = vpack.c.bf16 %v3616, %v3615
        %v4130 = vpack.c.bf16 %v3618, %v3617
        %v4131 = vpack.c.bf16 %v3620, %v3619
        %v4132 = vpack.c.bf16 %v3622, %v3621
        %v4133 = vpack.c.bf16 %v3624, %v3623
        %v4134 = vpack.c.bf16 %v3626, %v3625
        %v4135 = vpack.c.bf16 %v3628, %v3627
        %v4136 = vpack.c.bf16 %v3630, %v3629
        %v4141 = vunpack.c.l.b16 %v4093
        %v4142 = vunpack.c.l.b16 %v4094
        %v4143 = vunpack.c.l.b16 %v4095
        %v4144 = vunpack.c.l.b16 %v4096
        %v4145 = vpack.c.b16 %v4142, %v4141
        %v4146 = vpack.c.b16 %v4144, %v4143
        %vm4149 = vcmask 261120
        %v4151 = vsel %vm4149, %v4121, 0
        %v4154 = vsel %vm4149, %v4122, 0
        %v4157 = vsel %vm4149, %v4123, 0
        %v4160 = vsel %vm4149, %v4124, 0
        %v4163 = vsel %vm4149, %v4125, 0
        %v4166 = vsel %vm4149, %v4126, 0
        %v4169 = vsel %vm4149, %v4127, 0
        %v4172 = vsel %vm4149, %v4128, 0
        %v4175 = vsel %vm4149, %v4129, 0
        %v4178 = vsel %vm4149, %v4130, 0
        %v4181 = vsel %vm4149, %v4131, 0
        %v4184 = vsel %vm4149, %v4132, 0
        %v4187 = vsel %vm4149, %v4133, 0
        %v4190 = vsel %vm4149, %v4134, 0
        %v4193 = vsel %vm4149, %v4135, 0
        %v4196 = vsel %vm4149, %v4136, 0
        %4198 = vmatprep.subr.bf16.mxu0 0
        %4199 = vmatpush1.bf16.msra.mxu0 %v4145
        %4200 = vmatprep.subr.bf16.mxu0 0
        %4201 = vmatpush1.bf16.msra.mxu0 %v4146
        %4202 = vmatprep.subr.bf16.mxu0 0
        %4203 = vmatpush1.bf16.msra.mxu0 0
        %4204 = vmatprep.subr.bf16.mxu0 0
        %4205 = vmatpush1.bf16.msra.mxu0 0
        %4206 = vmatprep.subr.bf16.mxu0 0
        %4207 = vmatpush1.bf16.msra.mxu0 0
        %4208 = vmatprep.subr.bf16.mxu0 0
        %4209 = vmatpush1.bf16.msra.mxu0 0
        %4210 = vmatprep.subr.bf16.mxu0 0
        %4211 = vmatpush1.bf16.msra.mxu0 0
        %4212 = vmatprep.subr.bf16.mxu0 0
        %4213 = vmatpush1.bf16.msra.mxu0 0
        %4214 = vmatprep.subr.bf16.mxu0 0
        %4215 = vmatpush1.bf16.msra.mxu0 0
        %4216 = vmatprep.subr.bf16.mxu0 0
        %4217 = vmatpush1.bf16.msra.mxu0 0
        %4218 = vmatprep.subr.bf16.mxu0 0
        %4219 = vmatpush1.bf16.msra.mxu0 0
        %4220 = vmatprep.subr.bf16.mxu0 0
        %4221 = vmatpush1.bf16.msra.mxu0 0
        %4222 = vmatprep.subr.bf16.mxu0 0
        %4223 = vmatpush1.bf16.msra.mxu0 0
        %4224 = vmatprep.subr.bf16.mxu0 0
        %4225 = vmatpush1.bf16.msra.mxu0 0
        %4226 = vmatprep.subr.bf16.mxu0 0
        %4227 = vmatpush1.bf16.msra.mxu0 0
        %4228 = vmatprep.subr.bf16.mxu0 0
        %4229 = vmatpush1.bf16.msra.mxu0 0
        %4230 = vmatprep.mubr.bf16.mxu0 0
        %4231 = vmatmul.mubr.bf16.gmra.mrb[0].mxu0 %v4151
        %v4232 = vpop.f32.mrb[0].mxu0
        %v4233 = vadd.f32 0.0, %v4232
        %v4234 = vpop.f32.mrb[0].mxu0
        %v4235 = vpop.f32.mrb[0].mxu0
        %v4236 = vadd.f32 0.0, %v4235
        %v4237 = vpop.f32.mrb[0].mxu0
        %4238 = vmatprep.mubr.bf16.mxu0 0
        %4239 = vmatmul.mubr.bf16.gmra.mrb[0].mxu0 %v4154
        %v4240 = vpop.f32.mrb[0].mxu0
        %v4241 = vadd.f32 0.0, %v4240
        %v4242 = vpop.f32.mrb[0].mxu0
        %v4243 = vpop.f32.mrb[0].mxu0
        %v4244 = vadd.f32 0.0, %v4243
        %v4245 = vpop.f32.mrb[0].mxu0
        %4246 = vmatprep.mubr.bf16.mxu0 0
        %4247 = vmatmul.mubr.bf16.gmra.mrb[0].mxu0 %v4157
        %v4248 = vpop.f32.mrb[0].mxu0
        %v4249 = vadd.f32 0.0, %v4248
        %v4250 = vpop.f32.mrb[0].mxu0
        %v4251 = vpop.f32.mrb[0].mxu0
        %v4252 = vadd.f32 0.0, %v4251
        %v4253 = vpop.f32.mrb[0].mxu0
        %4254 = vmatprep.mubr.bf16.mxu0 0
        %4255 = vmatmul.mubr.bf16.gmra.mrb[0].mxu0 %v4160
        %v4256 = vpop.f32.mrb[0].mxu0
        %v4257 = vadd.f32 0.0, %v4256
        %v4258 = vpop.f32.mrb[0].mxu0
        %v4259 = vpop.f32.mrb[0].mxu0
        %v4260 = vadd.f32 0.0, %v4259
        %v4261 = vpop.f32.mrb[0].mxu0
        %4262 = vmatprep.mubr.bf16.mxu0 0
        %4263 = vmatmul.mubr.bf16.gmra.mrb[0].mxu0 %v4163
        %v4264 = vpop.f32.mrb[0].mxu0
        %v4265 = vadd.f32 0.0, %v4264
        %v4266 = vpop.f32.mrb[0].mxu0
        %v4267 = vpop.f32.mrb[0].mxu0
        %v4268 = vadd.f32 0.0, %v4267
        %v4269 = vpop.f32.mrb[0].mxu0
        %4270 = vmatprep.mubr.bf16.mxu0 0
        %4271 = vmatmul.mubr.bf16.gmra.mrb[0].mxu0 %v4166
        %v4272 = vpop.f32.mrb[0].mxu0
        %v4273 = vadd.f32 0.0, %v4272
        %v4274 = vpop.f32.mrb[0].mxu0
        %v4275 = vpop.f32.mrb[0].mxu0
        %v4276 = vadd.f32 0.0, %v4275
        %v4277 = vpop.f32.mrb[0].mxu0
        %4278 = vmatprep.mubr.bf16.mxu0 0
        %4279 = vmatmul.mubr.bf16.gmra.mrb[0].mxu0 %v4169
        %v4280 = vpop.f32.mrb[0].mxu0
        %v4281 = vadd.f32 0.0, %v4280
        %v4282 = vpop.f32.mrb[0].mxu0
        %v4283 = vpop.f32.mrb[0].mxu0
        %v4284 = vadd.f32 0.0, %v4283
        %v4285 = vpop.f32.mrb[0].mxu0
        %4286 = vmatprep.mubr.bf16.mxu0 0
        %4287 = vmatmul.mubr.bf16.gmra.mrb[0].mxu0 %v4172
        %v4288 = vpop.f32.mrb[0].mxu0
        %v4289 = vadd.f32 0.0, %v4288
        %v4290 = vpop.f32.mrb[0].mxu0
        %v4291 = vpop.f32.mrb[0].mxu0
        %v4292 = vadd.f32 0.0, %v4291
        %v4293 = vpop.f32.mrb[0].mxu0
        %4294 = vmatprep.mubr.bf16.mxu0 0
        %4295 = vmatmul.mubr.bf16.gmra.mrb[0].mxu0 %v4175
        %v4296 = vpop.f32.mrb[0].mxu0
        %v4297 = vadd.f32 0.0, %v4296
        %v4298 = vpop.f32.mrb[0].mxu0
        %v4299 = vpop.f32.mrb[0].mxu0
        %v4300 = vadd.f32 0.0, %v4299
        %v4301 = vpop.f32.mrb[0].mxu0
        %4302 = vmatprep.mubr.bf16.mxu0 0
        %4303 = vmatmul.mubr.bf16.gmra.mrb[0].mxu0 %v4178
        %v4304 = vpop.f32.mrb[0].mxu0
        %v4305 = vadd.f32 0.0, %v4304
        %v4306 = vpop.f32.mrb[0].mxu0
        %v4307 = vpop.f32.mrb[0].mxu0
        %v4308 = vadd.f32 0.0, %v4307
        %v4309 = vpop.f32.mrb[0].mxu0
        %4310 = vmatprep.mubr.bf16.mxu0 0
        %4311 = vmatmul.mubr.bf16.gmra.mrb[0].mxu0 %v4181
        %v4312 = vpop.f32.mrb[0].mxu0
        %v4313 = vadd.f32 0.0, %v4312
        %v4314 = vpop.f32.mrb[0].mxu0
        %v4315 = vpop.f32.mrb[0].mxu0
        %v4316 = vadd.f32 0.0, %v4315
        %v4317 = vpop.f32.mrb[0].mxu0
        %4318 = vmatprep.mubr.bf16.mxu0 0
        %4319 = vmatmul.mubr.bf16.gmra.mrb[0].mxu0 %v4184
        %v4320 = vpop.f32.mrb[0].mxu0
        %v4321 = vadd.f32 0.0, %v4320
        %v4322 = vpop.f32.mrb[0].mxu0
        %v4323 = vpop.f32.mrb[0].mxu0
        %v4324 = vadd.f32 0.0, %v4323
        %v4325 = vpop.f32.mrb[0].mxu0
        %4326 = vmatprep.mubr.bf16.mxu0 0
        %4327 = vmatmul.mubr.bf16.gmra.mrb[0].mxu0 %v4187
        %v4328 = vpop.f32.mrb[0].mxu0
        %v4329 = vadd.f32 0.0, %v4328
        %v4330 = vpop.f32.mrb[0].mxu0
        %v4331 = vpop.f32.mrb[0].mxu0
        %v4332 = vadd.f32 0.0, %v4331
        %v4333 = vpop.f32.mrb[0].mxu0
        %4334 = vmatprep.mubr.bf16.mxu0 0
        %4335 = vmatmul.mubr.bf16.gmra.mrb[0].mxu0 %v4190
        %v4336 = vpop.f32.mrb[0].mxu0
        %v4337 = vadd.f32 0.0, %v4336
        %v4338 = vpop.f32.mrb[0].mxu0
        %v4339 = vpop.f32.mrb[0].mxu0
        %v4340 = vadd.f32 0.0, %v4339
        %v4341 = vpop.f32.mrb[0].mxu0
        %4342 = vmatprep.mubr.bf16.mxu0 0
        %4343 = vmatmul.mubr.bf16.gmra.mrb[0].mxu0 %v4193
        %v4344 = vpop.f32.mrb[0].mxu0
        %v4345 = vadd.f32 0.0, %v4344
        %v4346 = vpop.f32.mrb[0].mxu0
        %v4347 = vpop.f32.mrb[0].mxu0
        %v4348 = vadd.f32 0.0, %v4347
        %v4349 = vpop.f32.mrb[0].mxu0
        %4350 = vmatprep.mubr.bf16.mxu0 0
        %4351 = vmatmul.mubr.bf16.gmra.mrb[0].mxu0 %v4196
        %v4352 = vpop.f32.mrb[0].mxu0
        %v4353 = vadd.f32 0.0, %v4352
        %v4354 = vpop.f32.mrb[0].mxu0
        %v4355 = vpop.f32.mrb[0].mxu0
        %v4356 = vadd.f32 0.0, %v4355
        %v4357 = vpop.f32.mrb[0].mxu0
        %4358 = vdwg.mxu0
        %v4363 = vunpack.c.l.b16 %v4089
        %v4364 = vunpack.c.l.b16 %v4090
        %v4365 = vunpack.c.l.b16 %v4091
        %v4366 = vunpack.c.l.b16 %v4092
        %v4367 = vpack.c.b16 %v4364, %v4363
        %v4368 = vpack.c.b16 %v4366, %v4365
        %v4372 = vsel %vm4149, %v4105, 0
        %v4375 = vsel %vm4149, %v4106, 0
        %v4378 = vsel %vm4149, %v4107, 0
        %v4381 = vsel %vm4149, %v4108, 0
        %v4384 = vsel %vm4149, %v4109, 0
        %v4387 = vsel %vm4149, %v4110, 0
        %v4390 = vsel %vm4149, %v4111, 0
        %v4393 = vsel %vm4149, %v4112, 0
        %v4396 = vsel %vm4149, %v4113, 0
        %v4399 = vsel %vm4149, %v4114, 0
        %v4402 = vsel %vm4149, %v4115, 0
        %v4405 = vsel %vm4149, %v4116, 0
        %v4408 = vsel %vm4149, %v4117, 0
        %v4411 = vsel %vm4149, %v4118, 0
        %v4414 = vsel %vm4149, %v4119, 0
        %v4417 = vsel %vm4149, %v4120, 0
        %4419 = vmatprep.subr.bf16.mxu0 0
        %4420 = vmatpush1.bf16.msra.mxu0 %v4367
        %4421 = vmatprep.subr.bf16.mxu0 0
        %4422 = vmatpush1.bf16.msra.mxu0 %v4368
        %4423 = vmatprep.subr.bf16.mxu0 0
        %4424 = vmatpush1.bf16.msra.mxu0 0
        %4425 = vmatprep.subr.bf16.mxu0 0
        %4426 = vmatpush1.bf16.msra.mxu0 0
        %4427 = vmatprep.subr.bf16.mxu0 0
        %4428 = vmatpush1.bf16.msra.mxu0 0
        %4429 = vmatprep.subr.bf16.mxu0 0
        %4430 = vmatpush1.bf16.msra.mxu0 0
        %4431 = vmatprep.subr.bf16.mxu0 0
        %4432 = vmatpush1.bf16.msra.mxu0 0
        %4433 = vmatprep.subr.bf16.mxu0 0
        %4434 = vmatpush1.bf16.msra.mxu0 0
        %4435 = vmatprep.subr.bf16.mxu0 0
        %4436 = vmatpush1.bf16.msra.mxu0 0
        %4437 = vmatprep.subr.bf16.mxu0 0
        %4438 = vmatpush1.bf16.msra.mxu0 0
        %4439 = vmatprep.subr.bf16.mxu0 0
        %4440 = vmatpush1.bf16.msra.mxu0 0
        %4441 = vmatprep.subr.bf16.mxu0 0
        %4442 = vmatpush1.bf16.msra.mxu0 0
        %4443 = vmatprep.subr.bf16.mxu0 0
        %4444 = vmatpush1.bf16.msra.mxu0 0
        %4445 = vmatprep.subr.bf16.mxu0 0
        %4446 = vmatpush1.bf16.msra.mxu0 0
        %4447 = vmatprep.subr.bf16.mxu0 0
        %4448 = vmatpush1.bf16.msra.mxu0 0
        %4449 = vmatprep.subr.bf16.mxu0 0
        %4450 = vmatpush1.bf16.msra.mxu0 0
        %4451 = vmatprep.mubr.bf16.mxu0 0
        %4452 = vmatmul.mubr.bf16.gmra.mrb[0].mxu0 %v4372
        %v4453 = vpop.f32.mrb[0].mxu0
        %v4454 = vadd.f32 %v4233, %v4453
        %v4455 = vpop.f32.mrb[0].mxu0
        %v4456 = vpop.f32.mrb[0].mxu0
        %v4457 = vadd.f32 %v4236, %v4456
        %v4458 = vpop.f32.mrb[0].mxu0
        %4459 = vmatprep.mubr.bf16.mxu0 0
        %4460 = vmatmul.mubr.bf16.gmra.mrb[0].mxu0 %v4375
        %v4461 = vpop.f32.mrb[0].mxu0
        %v4462 = vadd.f32 %v4241, %v4461
        %v4463 = vpop.f32.mrb[0].mxu0
        %v4464 = vpop.f32.mrb[0].mxu0
        %v4465 = vadd.f32 %v4244, %v4464
        %v4466 = vpop.f32.mrb[0].mxu0
        %4467 = vmatprep.mubr.bf16.mxu0 0
        %4468 = vmatmul.mubr.bf16.gmra.mrb[0].mxu0 %v4378
        %v4469 = vpop.f32.mrb[0].mxu0
        %v4470 = vadd.f32 %v4249, %v4469
        %v4471 = vpop.f32.mrb[0].mxu0
        %v4472 = vpop.f32.mrb[0].mxu0
        %v4473 = vadd.f32 %v4252, %v4472
        %v4474 = vpop.f32.mrb[0].mxu0
        %4475 = vmatprep.mubr.bf16.mxu0 0
        %4476 = vmatmul.mubr.bf16.gmra.mrb[0].mxu0 %v4381
        %v4477 = vpop.f32.mrb[0].mxu0
        %v4478 = vadd.f32 %v4257, %v4477
        %v4479 = vpop.f32.mrb[0].mxu0
        %v4480 = vpop.f32.mrb[0].mxu0
        %v4481 = vadd.f32 %v4260, %v4480
        %v4482 = vpop.f32.mrb[0].mxu0
        %4483 = vmatprep.mubr.bf16.mxu0 0
        %4484 = vmatmul.mubr.bf16.gmra.mrb[0].mxu0 %v4384
        %v4485 = vpop.f32.mrb[0].mxu0
        %v4486 = vadd.f32 %v4265, %v4485
        %v4487 = vpop.f32.mrb[0].mxu0
        %v4488 = vpop.f32.mrb[0].mxu0
        %v4489 = vadd.f32 %v4268, %v4488
        %v4490 = vpop.f32.mrb[0].mxu0
        %4491 = vmatprep.mubr.bf16.mxu0 0
        %4492 = vmatmul.mubr.bf16.gmra.mrb[0].mxu0 %v4387
        %v4493 = vpop.f32.mrb[0].mxu0
        %v4494 = vadd.f32 %v4273, %v4493
        %v4495 = vpop.f32.mrb[0].mxu0
        %v4496 = vpop.f32.mrb[0].mxu0
        %v4497 = vadd.f32 %v4276, %v4496
        %v4498 = vpop.f32.mrb[0].mxu0
        %4499 = vmatprep.mubr.bf16.mxu0 0
        %4500 = vmatmul.mubr.bf16.gmra.mrb[0].mxu0 %v4390
        %v4501 = vpop.f32.mrb[0].mxu0
        %v4502 = vadd.f32 %v4281, %v4501
        %v4503 = vpop.f32.mrb[0].mxu0
        %v4504 = vpop.f32.mrb[0].mxu0
        %v4505 = vadd.f32 %v4284, %v4504
        %v4506 = vpop.f32.mrb[0].mxu0
        %4507 = vmatprep.mubr.bf16.mxu0 0
        %4508 = vmatmul.mubr.bf16.gmra.mrb[0].mxu0 %v4393
        %v4509 = vpop.f32.mrb[0].mxu0
        %v4510 = vadd.f32 %v4289, %v4509
        %v4511 = vpop.f32.mrb[0].mxu0
        %v4512 = vpop.f32.mrb[0].mxu0
        %v4513 = vadd.f32 %v4292, %v4512
        %v4514 = vpop.f32.mrb[0].mxu0
        %4515 = vmatprep.mubr.bf16.mxu0 0
        %4516 = vmatmul.mubr.bf16.gmra.mrb[0].mxu0 %v4396
        %v4517 = vpop.f32.mrb[0].mxu0
        %v4518 = vadd.f32 %v4297, %v4517
        %v4519 = vpop.f32.mrb[0].mxu0
        %v4520 = vpop.f32.mrb[0].mxu0
        %v4521 = vadd.f32 %v4300, %v4520
        %v4522 = vpop.f32.mrb[0].mxu0
        %4523 = vmatprep.mubr.bf16.mxu0 0
        %4524 = vmatmul.mubr.bf16.gmra.mrb[0].mxu0 %v4399
        %v4525 = vpop.f32.mrb[0].mxu0
        %v4526 = vadd.f32 %v4305, %v4525
        %v4527 = vpop.f32.mrb[0].mxu0
        %v4528 = vpop.f32.mrb[0].mxu0
        %v4529 = vadd.f32 %v4308, %v4528
        %v4530 = vpop.f32.mrb[0].mxu0
        %4531 = vmatprep.mubr.bf16.mxu0 0
        %4532 = vmatmul.mubr.bf16.gmra.mrb[0].mxu0 %v4402
        %v4533 = vpop.f32.mrb[0].mxu0
        %v4534 = vadd.f32 %v4313, %v4533
        %v4535 = vpop.f32.mrb[0].mxu0
        %v4536 = vpop.f32.mrb[0].mxu0
        %v4537 = vadd.f32 %v4316, %v4536
        %v4538 = vpop.f32.mrb[0].mxu0
        %4539 = vmatprep.mubr.bf16.mxu0 0
        %4540 = vmatmul.mubr.bf16.gmra.mrb[0].mxu0 %v4405
        %v4541 = vpop.f32.mrb[0].mxu0
        %v4542 = vadd.f32 %v4321, %v4541
        %v4543 = vpop.f32.mrb[0].mxu0
        %v4544 = vpop.f32.mrb[0].mxu0
        %v4545 = vadd.f32 %v4324, %v4544
        %v4546 = vpop.f32.mrb[0].mxu0
        %4547 = vmatprep.mubr.bf16.mxu0 0
        %4548 = vmatmul.mubr.bf16.gmra.mrb[0].mxu0 %v4408
        %v4549 = vpop.f32.mrb[0].mxu0
        %v4550 = vadd.f32 %v4329, %v4549
        %v4551 = vpop.f32.mrb[0].mxu0
        %v4552 = vpop.f32.mrb[0].mxu0
        %v4553 = vadd.f32 %v4332, %v4552
        %v4554 = vpop.f32.mrb[0].mxu0
        %4555 = vmatprep.mubr.bf16.mxu0 0
        %4556 = vmatmul.mubr.bf16.gmra.mrb[0].mxu0 %v4411
        %v4557 = vpop.f32.mrb[0].mxu0
        %v4558 = vadd.f32 %v4337, %v4557
        %v4559 = vpop.f32.mrb[0].mxu0
        %v4560 = vpop.f32.mrb[0].mxu0
        %v4561 = vadd.f32 %v4340, %v4560
        %v4562 = vpop.f32.mrb[0].mxu0
        %4563 = vmatprep.mubr.bf16.mxu0 0
        %4564 = vmatmul.mubr.bf16.gmra.mrb[0].mxu0 %v4414
        %v4565 = vpop.f32.mrb[0].mxu0
        %v4566 = vadd.f32 %v4345, %v4565
        %v4567 = vpop.f32.mrb[0].mxu0
        %v4568 = vpop.f32.mrb[0].mxu0
        %v4569 = vadd.f32 %v4348, %v4568
        %v4570 = vpop.f32.mrb[0].mxu0
        %4571 = vmatprep.mubr.bf16.mxu0 0
        %4572 = vmatmul.mubr.bf16.gmra.mrb[0].mxu0 %v4417
        %v4573 = vpop.f32.mrb[0].mxu0
        %v4574 = vadd.f32 %v4353, %v4573
        %v4575 = vpop.f32.mrb[0].mxu0
        %v4576 = vpop.f32.mrb[0].mxu0
        %v4577 = vadd.f32 %v4356, %v4576
        %v4578 = vpop.f32.mrb[0].mxu0
        %4579 = vdwg.mxu0
        %v4580 = vpack.c.bf16 %v4058, %v4057
        %v4581 = vpack.c.bf16 %v4060, %v4059
        %v4582 = vpack.c.bf16 %v4062, %v4061
        %v4583 = vpack.c.bf16 %v4064, %v4063
        %v4584 = vpack.c.bf16 %v4066, %v4065
        %v4585 = vpack.c.bf16 %v4068, %v4067
        %v4586 = vpack.c.bf16 %v4070, %v4069
        %v4587 = vpack.c.bf16 %v4072, %v4071
        %v4588 = vpack.c.bf16 %v4074, %v4073
        %v4589 = vpack.c.bf16 %v4076, %v4075
        %v4590 = vpack.c.bf16 %v4078, %v4077
        %v4591 = vpack.c.bf16 %v4080, %v4079
        %v4592 = vpack.c.bf16 %v4082, %v4081
        %v4593 = vpack.c.bf16 %v4084, %v4083
        %v4594 = vpack.c.bf16 %v4086, %v4085
        %v4595 = vpack.c.bf16 %v4088, %v4087
        %v4604 = vunpack.c.l.b16 %v4097
        %v4605 = vunpack.c.l.b16 %v4098
        %v4606 = vunpack.c.l.b16 %v4099
        %v4607 = vunpack.c.l.b16 %v4100
        %v4608 = vunpack.c.l.b16 %v4101
        %v4609 = vunpack.c.l.b16 %v4102
        %v4610 = vunpack.c.l.b16 %v4103
        %v4611 = vunpack.c.l.b16 %v4104
        %v4612 = vpack.c.b16 %v4605, %v4604
        %v4613 = vpack.c.b16 %v4607, %v4606
        %v4614 = vpack.c.b16 %v4609, %v4608
        %v4615 = vpack.c.b16 %v4611, %v4610
        %vm4620 = vcmask 523264
        %v4622 = vsel %vm4620, %v4580, 0
        %v4625 = vsel %vm4620, %v4581, 0
        %v4628 = vsel %vm4620, %v4582, 0
        %v4631 = vsel %vm4620, %v4583, 0
        %v4634 = vsel %vm4620, %v4584, 0
        %v4637 = vsel %vm4620, %v4585, 0
        %v4640 = vsel %vm4620, %v4586, 0
        %v4643 = vsel %vm4620, %v4587, 0
        %v4646 = vsel %vm4620, %v4588, 0
        %v4649 = vsel %vm4620, %v4589, 0
        %v4652 = vsel %vm4620, %v4590, 0
        %v4655 = vsel %vm4620, %v4591, 0
        %v4658 = vsel %vm4620, %v4592, 0
        %v4661 = vsel %vm4620, %v4593, 0
        %v4664 = vsel %vm4620, %v4594, 0
        %v4667 = vsel %vm4620, %v4595, 0
        %4669 = vmatprep.subr.bf16.mxu0 0
        %4670 = vmatpush1.bf16.msra.mxu0 %v4612
        %4671 = vmatprep.subr.bf16.mxu0 0
        %4672 = vmatpush1.bf16.msra.mxu0 %v4613
        %4673 = vmatprep.subr.bf16.mxu0 0
        %4674 = vmatpush1.bf16.msra.mxu0 %v4614
        %4675 = vmatprep.subr.bf16.mxu0 0
        %4676 = vmatpush1.bf16.msra.mxu0 %v4615
        %4677 = vmatprep.subr.bf16.mxu0 0
        %4678 = vmatpush1.bf16.msra.mxu0 0
        %4679 = vmatprep.subr.bf16.mxu0 0
        %4680 = vmatpush1.bf16.msra.mxu0 0
        %4681 = vmatprep.subr.bf16.mxu0 0
        %4682 = vmatpush1.bf16.msra.mxu0 0
        %4683 = vmatprep.subr.bf16.mxu0 0
        %4684 = vmatpush1.bf16.msra.mxu0 0
        %4685 = vmatprep.subr.bf16.mxu0 0
        %4686 = vmatpush1.bf16.msra.mxu0 0
        %4687 = vmatprep.subr.bf16.mxu0 0
        %4688 = vmatpush1.bf16.msra.mxu0 0
        %4689 = vmatprep.subr.bf16.mxu0 0
        %4690 = vmatpush1.bf16.msra.mxu0 0
        %4691 = vmatprep.subr.bf16.mxu0 0
        %4692 = vmatpush1.bf16.msra.mxu0 0
        %4693 = vmatprep.subr.bf16.mxu0 0
        %4694 = vmatpush1.bf16.msra.mxu0 0
        %4695 = vmatprep.subr.bf16.mxu0 0
        %4696 = vmatpush1.bf16.msra.mxu0 0
        %4697 = vmatprep.subr.bf16.mxu0 0
        %4698 = vmatpush1.bf16.msra.mxu0 0
        %4699 = vmatprep.subr.bf16.mxu0 0
        %4700 = vmatpush1.bf16.msra.mxu0 0
        %4701 = vmatprep.mubr.bf16.mxu0 0
        %4702 = vmatmul.mubr.bf16.gmra.mrb[0].mxu0 %v4622
        %v4703 = vpop.f32.mrb[0].mxu0
        %v4704 = vadd.f32 0.0, %v4703
        %v4705 = vpop.f32.mrb[0].mxu0
        %v4706 = vpop.f32.mrb[0].mxu0
        %v4707 = vadd.f32 0.0, %v4706
        %v4708 = vpop.f32.mrb[0].mxu0
        %4709 = vmatprep.mubr.bf16.mxu0 0
        %4710 = vmatmul.mubr.bf16.gmra.mrb[0].mxu0 %v4625
        %v4711 = vpop.f32.mrb[0].mxu0
        %v4712 = vadd.f32 0.0, %v4711
        %v4713 = vpop.f32.mrb[0].mxu0
        %v4714 = vpop.f32.mrb[0].mxu0
        %v4715 = vadd.f32 0.0, %v4714
        %v4716 = vpop.f32.mrb[0].mxu0
        %4717 = vmatprep.mubr.bf16.mxu0 0
        %4718 = vmatmul.mubr.bf16.gmra.mrb[0].mxu0 %v4628
        %v4719 = vpop.f32.mrb[0].mxu0
        %v4720 = vadd.f32 0.0, %v4719
        %v4721 = vpop.f32.mrb[0].mxu0
        %v4722 = vpop.f32.mrb[0].mxu0
        %v4723 = vadd.f32 0.0, %v4722
        %v4724 = vpop.f32.mrb[0].mxu0
        %4725 = vmatprep.mubr.bf16.mxu0 0
        %4726 = vmatmul.mubr.bf16.gmra.mrb[0].mxu0 %v4631
        %v4727 = vpop.f32.mrb[0].mxu0
        %v4728 = vadd.f32 0.0, %v4727
        %v4729 = vpop.f32.mrb[0].mxu0
        %v4730 = vpop.f32.mrb[0].mxu0
        %v4731 = vadd.f32 0.0, %v4730
        %v4732 = vpop.f32.mrb[0].mxu0
        %4733 = vmatprep.mubr.bf16.mxu0 0
        %4734 = vmatmul.mubr.bf16.gmra.mrb[0].mxu0 %v4634
        %v4735 = vpop.f32.mrb[0].mxu0
        %v4736 = vadd.f32 0.0, %v4735
        %v4737 = vpop.f32.mrb[0].mxu0
        %v4738 = vpop.f32.mrb[0].mxu0
        %v4739 = vadd.f32 0.0, %v4738
        %v4740 = vpop.f32.mrb[0].mxu0
        %4741 = vmatprep.mubr.bf16.mxu0 0
        %4742 = vmatmul.mubr.bf16.gmra.mrb[0].mxu0 %v4637
        %v4743 = vpop.f32.mrb[0].mxu0
        %v4744 = vadd.f32 0.0, %v4743
        %v4745 = vpop.f32.mrb[0].mxu0
        %v4746 = vpop.f32.mrb[0].mxu0
        %v4747 = vadd.f32 0.0, %v4746
        %v4748 = vpop.f32.mrb[0].mxu0
        %4749 = vmatprep.mubr.bf16.mxu0 0
        %4750 = vmatmul.mubr.bf16.gmra.mrb[0].mxu0 %v4640
        %v4751 = vpop.f32.mrb[0].mxu0
        %v4752 = vadd.f32 0.0, %v4751
        %v4753 = vpop.f32.mrb[0].mxu0
        %v4754 = vpop.f32.mrb[0].mxu0
        %v4755 = vadd.f32 0.0, %v4754
        %v4756 = vpop.f32.mrb[0].mxu0
        %4757 = vmatprep.mubr.bf16.mxu0 0
        %4758 = vmatmul.mubr.bf16.gmra.mrb[0].mxu0 %v4643
        %v4759 = vpop.f32.mrb[0].mxu0
        %v4760 = vadd.f32 0.0, %v4759
        %v4761 = vpop.f32.mrb[0].mxu0
        %v4762 = vpop.f32.mrb[0].mxu0
        %v4763 = vadd.f32 0.0, %v4762
        %v4764 = vpop.f32.mrb[0].mxu0
        %4765 = vmatprep.mubr.bf16.mxu0 0
        %4766 = vmatmul.mubr.bf16.gmra.mrb[0].mxu0 %v4646
        %v4767 = vpop.f32.mrb[0].mxu0
        %v4768 = vadd.f32 0.0, %v4767
        %v4769 = vpop.f32.mrb[0].mxu0
        %v4770 = vpop.f32.mrb[0].mxu0
        %v4771 = vadd.f32 0.0, %v4770
        %v4772 = vpop.f32.mrb[0].mxu0
        %4773 = vmatprep.mubr.bf16.mxu0 0
        %4774 = vmatmul.mubr.bf16.gmra.mrb[0].mxu0 %v4649
        %v4775 = vpop.f32.mrb[0].mxu0
        %v4776 = vadd.f32 0.0, %v4775
        %v4777 = vpop.f32.mrb[0].mxu0
        %v4778 = vpop.f32.mrb[0].mxu0
        %v4779 = vadd.f32 0.0, %v4778
        %v4780 = vpop.f32.mrb[0].mxu0
        %4781 = vmatprep.mubr.bf16.mxu0 0
        %4782 = vmatmul.mubr.bf16.gmra.mrb[0].mxu0 %v4652
        %v4783 = vpop.f32.mrb[0].mxu0
        %v4784 = vadd.f32 0.0, %v4783
        %v4785 = vpop.f32.mrb[0].mxu0
        %v4786 = vpop.f32.mrb[0].mxu0
        %v4787 = vadd.f32 0.0, %v4786
        %v4788 = vpop.f32.mrb[0].mxu0
        %4789 = vmatprep.mubr.bf16.mxu0 0
        %4790 = vmatmul.mubr.bf16.gmra.mrb[0].mxu0 %v4655
        %v4791 = vpop.f32.mrb[0].mxu0
        %v4792 = vadd.f32 0.0, %v4791
        %v4793 = vpop.f32.mrb[0].mxu0
        %v4794 = vpop.f32.mrb[0].mxu0
        %v4795 = vadd.f32 0.0, %v4794
        %v4796 = vpop.f32.mrb[0].mxu0
        %4797 = vmatprep.mubr.bf16.mxu0 0
        %4798 = vmatmul.mubr.bf16.gmra.mrb[0].mxu0 %v4658
        %v4799 = vpop.f32.mrb[0].mxu0
        %v4800 = vadd.f32 0.0, %v4799
        %v4801 = vpop.f32.mrb[0].mxu0
        %v4802 = vpop.f32.mrb[0].mxu0
        %v4803 = vadd.f32 0.0, %v4802
        %v4804 = vpop.f32.mrb[0].mxu0
        %4805 = vmatprep.mubr.bf16.mxu0 0
        %4806 = vmatmul.mubr.bf16.gmra.mrb[0].mxu0 %v4661
        %v4807 = vpop.f32.mrb[0].mxu0
        %v4808 = vadd.f32 0.0, %v4807
        %v4809 = vpop.f32.mrb[0].mxu0
        %v4810 = vpop.f32.mrb[0].mxu0
        %v4811 = vadd.f32 0.0, %v4810
        %v4812 = vpop.f32.mrb[0].mxu0
        %4813 = vmatprep.mubr.bf16.mxu0 0
        %4814 = vmatmul.mubr.bf16.gmra.mrb[0].mxu0 %v4664
        %v4815 = vpop.f32.mrb[0].mxu0
        %v4816 = vadd.f32 0.0, %v4815
        %v4817 = vpop.f32.mrb[0].mxu0
        %v4818 = vpop.f32.mrb[0].mxu0
        %v4819 = vadd.f32 0.0, %v4818
        %v4820 = vpop.f32.mrb[0].mxu0
        %4821 = vmatprep.mubr.bf16.mxu0 0
        %4822 = vmatmul.mubr.bf16.gmra.mrb[0].mxu0 %v4667
        %v4823 = vpop.f32.mrb[0].mxu0
        %v4824 = vadd.f32 0.0, %v4823
        %v4825 = vpop.f32.mrb[0].mxu0
        %v4826 = vpop.f32.mrb[0].mxu0
        %v4827 = vadd.f32 0.0, %v4826
        %v4828 = vpop.f32.mrb[0].mxu0
        %4829 = vdwg.mxu0
        %v4830 = vadd.f32 %v4454, %v4704
        %v4831 = vadd.f32 %v4457, %v4707
        %v4832 = vadd.f32 %v4462, %v4712
        %v4833 = vadd.f32 %v4465, %v4715
        %v4834 = vadd.f32 %v4470, %v4720
        %v4835 = vadd.f32 %v4473, %v4723
        %v4836 = vadd.f32 %v4478, %v4728
        %v4837 = vadd.f32 %v4481, %v4731
        %v4838 = vadd.f32 %v4486, %v4736
        %v4839 = vadd.f32 %v4489, %v4739
        %v4840 = vadd.f32 %v4494, %v4744
        %v4841 = vadd.f32 %v4497, %v4747
        %v4842 = vadd.f32 %v4502, %v4752
        %v4843 = vadd.f32 %v4505, %v4755
        %v4844 = vadd.f32 %v4510, %v4760
        %v4845 = vadd.f32 %v4513, %v4763
        %v4846 = vadd.f32 %v4518, %v4768
        %v4847 = vadd.f32 %v4521, %v4771
        %v4848 = vadd.f32 %v4526, %v4776
        %v4849 = vadd.f32 %v4529, %v4779
        %v4850 = vadd.f32 %v4534, %v4784
        %v4851 = vadd.f32 %v4537, %v4787
        %v4852 = vadd.f32 %v4542, %v4792
        %v4853 = vadd.f32 %v4545, %v4795
        %v4854 = vadd.f32 %v4550, %v4800
        %v4855 = vadd.f32 %v4553, %v4803
        %v4856 = vadd.f32 %v4558, %v4808
        %v4857 = vadd.f32 %v4561, %v4811
        %v4858 = vadd.f32 %v4566, %v4816
        %v4859 = vadd.f32 %v4569, %v4819
        %v4860 = vadd.f32 %v4574, %v4824
        %v4861 = vadd.f32 %v4577, %v4827
        %v4862 = vld [vmem:[%s10] sm:$0x1]
        %v4864 = vlaneseq
        %v4865 = vshrl.u32 %v4864, 7
        %v4866 = vsub.s32 0, %v4865
        %v4867 = vrot.slane %v4862, %v4866
        %v4869 = vadd.f32 %v4830, %v4867
        %v4870 = vadd.f32 %v4831, %v4867
        %v4871 = vadd.f32 %v4832, %v4867
        %v4872 = vadd.f32 %v4833, %v4867
        %v4873 = vadd.f32 %v4834, %v4867
        %v4874 = vadd.f32 %v4835, %v4867
        %v4875 = vadd.f32 %v4836, %v4867
        %v4876 = vadd.f32 %v4837, %v4867
        %v4877 = vadd.f32 %v4838, %v4867
        %v4878 = vadd.f32 %v4839, %v4867
        %v4879 = vadd.f32 %v4840, %v4867
        %v4880 = vadd.f32 %v4841, %v4867
        %v4881 = vadd.f32 %v4842, %v4867
        %v4882 = vadd.f32 %v4843, %v4867
        %v4883 = vadd.f32 %v4844, %v4867
        %v4884 = vadd.f32 %v4845, %v4867
        %v4885 = vadd.f32 %v4846, %v4867
        %v4886 = vadd.f32 %v4847, %v4867
        %v4887 = vadd.f32 %v4848, %v4867
        %v4888 = vadd.f32 %v4849, %v4867
        %v4889 = vadd.f32 %v4850, %v4867
        %v4890 = vadd.f32 %v4851, %v4867
        %v4891 = vadd.f32 %v4852, %v4867
        %v4892 = vadd.f32 %v4853, %v4867
        %v4893 = vadd.f32 %v4854, %v4867
        %v4894 = vadd.f32 %v4855, %v4867
        %v4895 = vadd.f32 %v4856, %v4867
        %v4896 = vadd.f32 %v4857, %v4867
        %v4897 = vadd.f32 %v4858, %v4867
        %v4898 = vadd.f32 %v4859, %v4867
        %v4899 = vadd.f32 %v4860, %v4867
        %v4900 = vadd.f32 %v4861, %v4867
        %vm4901 = vcmp.gt.f32.partialorder %v4869, 0.0
        %vm4902 = vcmp.gt.f32.partialorder %v4870, 0.0
        %vm4903 = vcmp.gt.f32.partialorder %v4871, 0.0
        %vm4904 = vcmp.gt.f32.partialorder %v4872, 0.0
        %vm4905 = vcmp.gt.f32.partialorder %v4873, 0.0
        %vm4906 = vcmp.gt.f32.partialorder %v4874, 0.0
        %vm4907 = vcmp.gt.f32.partialorder %v4875, 0.0
        %vm4908 = vcmp.gt.f32.partialorder %v4876, 0.0
        %vm4909 = vcmp.gt.f32.partialorder %v4877, 0.0
        %vm4910 = vcmp.gt.f32.partialorder %v4878, 0.0
        %vm4911 = vcmp.gt.f32.partialorder %v4879, 0.0
        %vm4912 = vcmp.gt.f32.partialorder %v4880, 0.0
        %vm4913 = vcmp.gt.f32.partialorder %v4881, 0.0
        %vm4914 = vcmp.gt.f32.partialorder %v4882, 0.0
        %vm4915 = vcmp.gt.f32.partialorder %v4883, 0.0
        %vm4916 = vcmp.gt.f32.partialorder %v4884, 0.0
        %vm4917 = vcmp.gt.f32.partialorder %v4885, 0.0
        %vm4918 = vcmp.gt.f32.partialorder %v4886, 0.0
        %vm4919 = vcmp.gt.f32.partialorder %v4887, 0.0
        %vm4920 = vcmp.gt.f32.partialorder %v4888, 0.0
        %vm4921 = vcmp.gt.f32.partialorder %v4889, 0.0
        %vm4922 = vcmp.gt.f32.partialorder %v4890, 0.0
        %vm4923 = vcmp.gt.f32.partialorder %v4891, 0.0
        %vm4924 = vcmp.gt.f32.partialorder %v4892, 0.0
        %vm4925 = vcmp.gt.f32.partialorder %v4893, 0.0
        %vm4926 = vcmp.gt.f32.partialorder %v4894, 0.0
        %vm4927 = vcmp.gt.f32.partialorder %v4895, 0.0
        %vm4928 = vcmp.gt.f32.partialorder %v4896, 0.0
        %vm4929 = vcmp.gt.f32.partialorder %v4897, 0.0
        %vm4930 = vcmp.gt.f32.partialorder %v4898, 0.0
        %vm4931 = vcmp.gt.f32.partialorder %v4899, 0.0
        %vm4932 = vcmp.gt.f32.partialorder %v4900, 0.0
        %v4933 = vmul.f32 %v4869, 0.01
        %v4934 = vmul.f32 %v4870, 0.01
        %v4935 = vmul.f32 %v4871, 0.01
        %v4936 = vmul.f32 %v4872, 0.01
        %v4937 = vmul.f32 %v4873, 0.01
        %v4938 = vmul.f32 %v4874, 0.01
        %v4939 = vmul.f32 %v4875, 0.01
        %v4940 = vmul.f32 %v4876, 0.01
        %v4941 = vmul.f32 %v4877, 0.01
        %v4942 = vmul.f32 %v4878, 0.01
        %v4943 = vmul.f32 %v4879, 0.01
        %v4944 = vmul.f32 %v4880, 0.01
        %v4945 = vmul.f32 %v4881, 0.01
        %v4946 = vmul.f32 %v4882, 0.01
        %v4947 = vmul.f32 %v4883, 0.01
        %v4948 = vmul.f32 %v4884, 0.01
        %v4949 = vmul.f32 %v4885, 0.01
        %v4950 = vmul.f32 %v4886, 0.01
        %v4951 = vmul.f32 %v4887, 0.01
        %v4952 = vmul.f32 %v4888, 0.01
        %v4953 = vmul.f32 %v4889, 0.01
        %v4954 = vmul.f32 %v4890, 0.01
        %v4955 = vmul.f32 %v4891, 0.01
        %v4956 = vmul.f32 %v4892, 0.01
        %v4957 = vmul.f32 %v4893, 0.01
        %v4958 = vmul.f32 %v4894, 0.01
        %v4959 = vmul.f32 %v4895, 0.01
        %v4960 = vmul.f32 %v4896, 0.01
        %v4961 = vmul.f32 %v4897, 0.01
        %v4962 = vmul.f32 %v4898, 0.01
        %v4963 = vmul.f32 %v4899, 0.01
        %v4964 = vmul.f32 %v4900, 0.01
        %v4965 = vsel %vm4901, %v4869, %v4933
        %v4966 = vsel %vm4902, %v4870, %v4934
        %v4967 = vsel %vm4903, %v4871, %v4935
        %v4968 = vsel %vm4904, %v4872, %v4936
        %v4969 = vsel %vm4905, %v4873, %v4937
        %v4970 = vsel %vm4906, %v4874, %v4938
        %v4971 = vsel %vm4907, %v4875, %v4939
        %v4972 = vsel %vm4908, %v4876, %v4940
        %v4973 = vsel %vm4909, %v4877, %v4941
        %v4974 = vsel %vm4910, %v4878, %v4942
        %v4975 = vsel %vm4911, %v4879, %v4943
        %v4976 = vsel %vm4912, %v4880, %v4944
        %v4977 = vsel %vm4913, %v4881, %v4945
        %v4978 = vsel %vm4914, %v4882, %v4946
        %v4979 = vsel %vm4915, %v4883, %v4947
        %v4980 = vsel %vm4916, %v4884, %v4948
        %v4981 = vsel %vm4917, %v4885, %v4949
        %v4982 = vsel %vm4918, %v4886, %v4950
        %v4983 = vsel %vm4919, %v4887, %v4951
        %v4984 = vsel %vm4920, %v4888, %v4952
        %v4985 = vsel %vm4921, %v4889, %v4953
        %v4986 = vsel %vm4922, %v4890, %v4954
        %v4987 = vsel %vm4923, %v4891, %v4955
        %v4988 = vsel %vm4924, %v4892, %v4956
        %v4989 = vsel %vm4925, %v4893, %v4957
        %v4990 = vsel %vm4926, %v4894, %v4958
        %v4991 = vsel %vm4927, %v4895, %v4959
        %v4992 = vsel %vm4928, %v4896, %v4960
        %v4993 = vsel %vm4929, %v4897, %v4961
        %v4994 = vsel %vm4930, %v4898, %v4962
        %v4995 = vsel %vm4931, %v4899, %v4963
        %v4996 = vsel %vm4932, %v4900, %v4964
        %v4997 = vpack.c.bf16 %v4966, %v4965
        %v4998 = vpack.c.bf16 %v4968, %v4967
        %v4999 = vpack.c.bf16 %v4970, %v4969
        %v5000 = vpack.c.bf16 %v4972, %v4971
        %v5001 = vpack.c.bf16 %v4974, %v4973
        %v5002 = vpack.c.bf16 %v4976, %v4975
        %v5003 = vpack.c.bf16 %v4978, %v4977
        %v5004 = vpack.c.bf16 %v4980, %v4979
        %v5005 = vpack.c.bf16 %v4982, %v4981
        %v5006 = vpack.c.bf16 %v4984, %v4983
        %v5007 = vpack.c.bf16 %v4986, %v4985
        %v5008 = vpack.c.bf16 %v4988, %v4987
        %v5009 = vpack.c.bf16 %v4990, %v4989
        %v5010 = vpack.c.bf16 %v4992, %v4991
        %v5011 = vpack.c.bf16 %v4994, %v4993
        %v5012 = vpack.c.bf16 %v4996, %v4995
        %v5029 = vunpack.c.l.b16 %v4997
        %v5030 = vunpack.c.h.b16 %v4997
        %v5031 = vunpack.c.l.b16 %v4998
        %v5032 = vunpack.c.h.b16 %v4998
        %v5033 = vunpack.c.l.b16 %v4999
        %v5034 = vunpack.c.h.b16 %v4999
        %v5035 = vunpack.c.l.b16 %v5000
        %v5036 = vunpack.c.h.b16 %v5000
        %v5037 = vunpack.c.l.b16 %v5001
        %v5038 = vunpack.c.h.b16 %v5001
        %v5039 = vunpack.c.l.b16 %v5002
        %v5040 = vunpack.c.h.b16 %v5002
        %v5041 = vunpack.c.l.b16 %v5003
        %v5042 = vunpack.c.h.b16 %v5003
        %v5043 = vunpack.c.l.b16 %v5004
        %v5044 = vunpack.c.h.b16 %v5004
        %v5045 = vunpack.c.l.b16 %v5005
        %v5046 = vunpack.c.h.b16 %v5005
        %v5047 = vunpack.c.l.b16 %v5006
        %v5048 = vunpack.c.h.b16 %v5006
        %v5049 = vunpack.c.l.b16 %v5007
        %v5050 = vunpack.c.h.b16 %v5007
        %v5051 = vunpack.c.l.b16 %v5008
        %v5052 = vunpack.c.h.b16 %v5008
        %v5053 = vunpack.c.l.b16 %v5009
        %v5054 = vunpack.c.h.b16 %v5009
        %v5055 = vunpack.c.l.b16 %v5010
        %v5056 = vunpack.c.h.b16 %v5010
        %v5057 = vunpack.c.l.b16 %v5011
        %v5058 = vunpack.c.h.b16 %v5011
        %v5059 = vunpack.c.l.b16 %v5012
        %v5060 = vunpack.c.h.b16 %v5012
        %v5061 = vpack.c.b16 %v5029, %v5029
        %v5062 = vpack.c.b16 %v5030, %v5030
        %v5063 = vpack.c.b16 %v5031, %v5031
        %v5064 = vpack.c.b16 %v5032, %v5032
        %v5065 = vpack.c.b16 %v5033, %v5033
        %v5066 = vpack.c.b16 %v5034, %v5034
        %v5067 = vpack.c.b16 %v5035, %v5035
        %v5068 = vpack.c.b16 %v5036, %v5036
        %v5069 = vpack.c.b16 %v5037, %v5037
        %v5070 = vpack.c.b16 %v5038, %v5038
        %v5071 = vpack.c.b16 %v5039, %v5039
        %v5072 = vpack.c.b16 %v5040, %v5040
        %v5073 = vpack.c.b16 %v5041, %v5041
        %v5074 = vpack.c.b16 %v5042, %v5042
        %v5075 = vpack.c.b16 %v5043, %v5043
        %v5076 = vpack.c.b16 %v5044, %v5044
        %v5077 = vpack.c.b16 %v5045, %v5045
        %v5078 = vpack.c.b16 %v5046, %v5046
        %v5079 = vpack.c.b16 %v5047, %v5047
        %v5080 = vpack.c.b16 %v5048, %v5048
        %v5081 = vpack.c.b16 %v5049, %v5049
        %v5082 = vpack.c.b16 %v5050, %v5050
        %v5083 = vpack.c.b16 %v5051, %v5051
        %v5084 = vpack.c.b16 %v5052, %v5052
        %v5085 = vpack.c.b16 %v5053, %v5053
        %v5086 = vpack.c.b16 %v5054, %v5054
        %v5087 = vpack.c.b16 %v5055, %v5055
        %v5088 = vpack.c.b16 %v5056, %v5056
        %v5089 = vpack.c.b16 %v5057, %v5057
        %v5090 = vpack.c.b16 %v5058, %v5058
        %v5091 = vpack.c.b16 %v5059, %v5059
        %v5092 = vpack.c.b16 %v5060, %v5060
        %5125 = vst [vmem:[%s520] sm:$0xf] %v5061
        %5126 = vst [vmem:[%s520 + $0x4] sm:$0xf] %v5062
        %5127 = vst [vmem:[%s520 + $0x8] sm:$0xf] %v5063
        %5128 = vst [vmem:[%s520 + $0xc] sm:$0xf] %v5064
        %5129 = vst [vmem:[%s520 + $0x10] sm:$0xf] %v5065
        %5130 = vst [vmem:[%s520 + $0x14] sm:$0xf] %v5066
        %5131 = vst [vmem:[%s520 + $0x18] sm:$0xf] %v5067
        %5132 = vst [vmem:[%s520 + $0x1c] sm:$0xf] %v5068
        %5133 = vst [vmem:[%s520 + $0x20] sm:$0xf] %v5069
        %5134 = vst [vmem:[%s520 + $0x24] sm:$0xf] %v5070
        %5135 = vst [vmem:[%s520 + $0x28] sm:$0xf] %v5071
        %5136 = vst [vmem:[%s520 + $0x2c] sm:$0xf] %v5072
        %5137 = vst [vmem:[%s520 + $0x30] sm:$0xf] %v5073
        %5138 = vst [vmem:[%s520 + $0x34] sm:$0xf] %v5074
        %5139 = vst [vmem:[%s520 + $0x38] sm:$0xf] %v5075
        %5140 = vst [vmem:[%s520 + $0x3c] sm:$0xf] %v5076
        %5141 = vst [vmem:[%s520 + $0x40] sm:$0xf] %v5077
        %5142 = vst [vmem:[%s520 + $0x44] sm:$0xf] %v5078
        %5143 = vst [vmem:[%s520 + $0x48] sm:$0xf] %v5079
        %5144 = vst [vmem:[%s520 + $0x4c] sm:$0xf] %v5080
        %5145 = vst [vmem:[%s520 + $0x50] sm:$0xf] %v5081
        %5146 = vst [vmem:[%s520 + $0x54] sm:$0xf] %v5082
        %5147 = vst [vmem:[%s520 + $0x58] sm:$0xf] %v5083
        %5148 = vst [vmem:[%s520 + $0x5c] sm:$0xf] %v5084
        %5149 = vst [vmem:[%s520 + $0x60] sm:$0xf] %v5085
        %5150 = vst [vmem:[%s520 + $0x64] sm:$0xf] %v5086
        %5151 = vst [vmem:[%s520 + $0x68] sm:$0xf] %v5087
        %5152 = vst [vmem:[%s520 + $0x6c] sm:$0xf] %v5088
        %5153 = vst [vmem:[%s520 + $0x70] sm:$0xf] %v5089
        %5154 = vst [vmem:[%s520 + $0x74] sm:$0xf] %v5090
        %5155 = vst [vmem:[%s520 + $0x78] sm:$0xf] %v5091
        %5156 = vst [vmem:[%s520 + $0x7c] sm:$0xf] %v5092
        %v5157 = vld [vmem:[%s11] sm:$0xf]
        %v5158 = vld [vmem:[%s11 + $0x4] sm:$0xf]
        %v5159 = vld [vmem:[%s11 + $0x8] sm:$0xf]
        %v5160 = vld [vmem:[%s11 + $0xc] sm:$0xf]
        %v5161 = vld [vmem:[%s11 + $0x10] sm:$0xf]
        %v5162 = vld [vmem:[%s11 + $0x14] sm:$0xf]
        %v5163 = vld [vmem:[%s11 + $0x18] sm:$0xf]
        %v5164 = vld [vmem:[%s11 + $0x1c] sm:$0xf]
        %v5165 = vld [vmem:[%s11 + $0x20] sm:$0xf]
        %v5166 = vld [vmem:[%s11 + $0x24] sm:$0xf]
        %v5167 = vld [vmem:[%s11 + $0x28] sm:$0xf]
        %v5168 = vld [vmem:[%s11 + $0x2c] sm:$0xf]
        %v5169 = vld [vmem:[%s11 + $0x30] sm:$0xf]
        %v5170 = vld [vmem:[%s11 + $0x34] sm:$0xf]
        %v5171 = vld [vmem:[%s11 + $0x38] sm:$0xf]
        %v5172 = vld [vmem:[%s11 + $0x3c] sm:$0xf]
        %v5189 = vunpack.c.l.b16 %v5157
        %v5190 = vunpack.c.l.b16 %v5158
        %v5191 = vunpack.c.l.b16 %v5159
        %v5192 = vunpack.c.l.b16 %v5160
        %v5193 = vunpack.c.l.b16 %v5161
        %v5194 = vunpack.c.l.b16 %v5162
        %v5195 = vunpack.c.l.b16 %v5163
        %v5196 = vunpack.c.l.b16 %v5164
        %v5197 = vunpack.c.l.b16 %v5165
        %v5198 = vunpack.c.l.b16 %v5166
        %v5199 = vunpack.c.l.b16 %v5167
        %v5200 = vunpack.c.l.b16 %v5168
        %v5201 = vunpack.c.l.b16 %v5169
        %v5202 = vunpack.c.l.b16 %v5170
        %v5203 = vunpack.c.l.b16 %v5171
        %v5204 = vunpack.c.l.b16 %v5172
        %v5205 = vpack.c.b16 %v5190, %v5189
        %v5206 = vpack.c.b16 %v5192, %v5191
        %v5207 = vpack.c.b16 %v5194, %v5193
        %v5208 = vpack.c.b16 %v5196, %v5195
        %v5209 = vpack.c.b16 %v5198, %v5197
        %v5210 = vpack.c.b16 %v5200, %v5199
        %v5211 = vpack.c.b16 %v5202, %v5201
        %v5212 = vpack.c.b16 %v5204, %v5203
        %5221 = vmatprep.subr.bf16.mxu0 0
        %5222 = vmatpush1.bf16.msra.mxu0 %v5205
        %5223 = vmatprep.subr.bf16.mxu0 0
        %5224 = vmatpush1.bf16.msra.mxu0 %v5206
        %5225 = vmatprep.subr.bf16.mxu0 0
        %5226 = vmatpush1.bf16.msra.mxu0 %v5207
        %5227 = vmatprep.subr.bf16.mxu0 0
        %5228 = vmatpush1.bf16.msra.mxu0 %v5208
        %5229 = vmatprep.subr.bf16.mxu0 0
        %5230 = vmatpush1.bf16.msra.mxu0 %v5209
        %5231 = vmatprep.subr.bf16.mxu0 0
        %5232 = vmatpush1.bf16.msra.mxu0 %v5210
        %5233 = vmatprep.subr.bf16.mxu0 0
        %5234 = vmatpush1.bf16.msra.mxu0 %v5211
        %5235 = vmatprep.subr.bf16.mxu0 0
        %5236 = vmatpush1.bf16.msra.mxu0 %v5212
        %5237 = vmatprep.subr.bf16.mxu0 0
        %5238 = vmatpush1.bf16.msra.mxu0 0
        %5239 = vmatprep.subr.bf16.mxu0 0
        %5240 = vmatpush1.bf16.msra.mxu0 0
        %5241 = vmatprep.subr.bf16.mxu0 0
        %5242 = vmatpush1.bf16.msra.mxu0 0
        %5243 = vmatprep.subr.bf16.mxu0 0
        %5244 = vmatpush1.bf16.msra.mxu0 0
        %5245 = vmatprep.subr.bf16.mxu0 0
        %5246 = vmatpush1.bf16.msra.mxu0 0
        %5247 = vmatprep.subr.bf16.mxu0 0
        %5248 = vmatpush1.bf16.msra.mxu0 0
        %5249 = vmatprep.subr.bf16.mxu0 0
        %5250 = vmatpush1.bf16.msra.mxu0 0
        %5251 = vmatprep.subr.bf16.mxu0 0
        %5252 = vmatpush1.bf16.msra.mxu0 0
        %5253 = vmatprep.mubr.bf16.mxu0 0
        %5254 = vmatmul.mubr.bf16.gmra.mrb[0].mxu0 %v4997
        %v5255 = vpop.f32.mrb[0].mxu0
        %v5256 = vadd.f32 0.0, %v5255
        %v5257 = vpop.f32.mrb[0].mxu0
        %v5258 = vpop.f32.mrb[0].mxu0
        %v5259 = vadd.f32 0.0, %v5258
        %v5260 = vpop.f32.mrb[0].mxu0
        %5261 = vmatprep.mubr.bf16.mxu0 0
        %5262 = vmatmul.mubr.bf16.gmra.mrb[0].mxu0 %v4998
        %v5263 = vpop.f32.mrb[0].mxu0
        %v5264 = vadd.f32 0.0, %v5263
        %v5265 = vpop.f32.mrb[0].mxu0
        %v5266 = vpop.f32.mrb[0].mxu0
        %v5267 = vadd.f32 0.0, %v5266
        %v5268 = vpop.f32.mrb[0].mxu0
        %5269 = vmatprep.mubr.bf16.mxu0 0
        %5270 = vmatmul.mubr.bf16.gmra.mrb[0].mxu0 %v4999
        %v5271 = vpop.f32.mrb[0].mxu0
        %v5272 = vadd.f32 0.0, %v5271
        %v5273 = vpop.f32.mrb[0].mxu0
        %v5274 = vpop.f32.mrb[0].mxu0
        %v5275 = vadd.f32 0.0, %v5274
        %v5276 = vpop.f32.mrb[0].mxu0
        %5277 = vmatprep.mubr.bf16.mxu0 0
        %5278 = vmatmul.mubr.bf16.gmra.mrb[0].mxu0 %v5000
        %v5279 = vpop.f32.mrb[0].mxu0
        %v5280 = vadd.f32 0.0, %v5279
        %v5281 = vpop.f32.mrb[0].mxu0
        %v5282 = vpop.f32.mrb[0].mxu0
        %v5283 = vadd.f32 0.0, %v5282
        %v5284 = vpop.f32.mrb[0].mxu0
        %5285 = vmatprep.mubr.bf16.mxu0 0
        %5286 = vmatmul.mubr.bf16.gmra.mrb[0].mxu0 %v5001
        %v5287 = vpop.f32.mrb[0].mxu0
        %v5288 = vadd.f32 0.0, %v5287
        %v5289 = vpop.f32.mrb[0].mxu0
        %v5290 = vpop.f32.mrb[0].mxu0
        %v5291 = vadd.f32 0.0, %v5290
        %v5292 = vpop.f32.mrb[0].mxu0
        %5293 = vmatprep.mubr.bf16.mxu0 0
        %5294 = vmatmul.mubr.bf16.gmra.mrb[0].mxu0 %v5002
        %v5295 = vpop.f32.mrb[0].mxu0
        %v5296 = vadd.f32 0.0, %v5295
        %v5297 = vpop.f32.mrb[0].mxu0
        %v5298 = vpop.f32.mrb[0].mxu0
        %v5299 = vadd.f32 0.0, %v5298
        %v5300 = vpop.f32.mrb[0].mxu0
        %5301 = vmatprep.mubr.bf16.mxu0 0
        %5302 = vmatmul.mubr.bf16.gmra.mrb[0].mxu0 %v5003
        %v5303 = vpop.f32.mrb[0].mxu0
        %v5304 = vadd.f32 0.0, %v5303
        %v5305 = vpop.f32.mrb[0].mxu0
        %v5306 = vpop.f32.mrb[0].mxu0
        %v5307 = vadd.f32 0.0, %v5306
        %v5308 = vpop.f32.mrb[0].mxu0
        %5309 = vmatprep.mubr.bf16.mxu0 0
        %5310 = vmatmul.mubr.bf16.gmra.mrb[0].mxu0 %v5004
        %v5311 = vpop.f32.mrb[0].mxu0
        %v5312 = vadd.f32 0.0, %v5311
        %v5313 = vpop.f32.mrb[0].mxu0
        %v5314 = vpop.f32.mrb[0].mxu0
        %v5315 = vadd.f32 0.0, %v5314
        %v5316 = vpop.f32.mrb[0].mxu0
        %5317 = vmatprep.mubr.bf16.mxu0 0
        %5318 = vmatmul.mubr.bf16.gmra.mrb[0].mxu0 %v5005
        %v5319 = vpop.f32.mrb[0].mxu0
        %v5320 = vadd.f32 0.0, %v5319
        %v5321 = vpop.f32.mrb[0].mxu0
        %v5322 = vpop.f32.mrb[0].mxu0
        %v5323 = vadd.f32 0.0, %v5322
        %v5324 = vpop.f32.mrb[0].mxu0
        %5325 = vmatprep.mubr.bf16.mxu0 0
        %5326 = vmatmul.mubr.bf16.gmra.mrb[0].mxu0 %v5006
        %v5327 = vpop.f32.mrb[0].mxu0
        %v5328 = vadd.f32 0.0, %v5327
        %v5329 = vpop.f32.mrb[0].mxu0
        %v5330 = vpop.f32.mrb[0].mxu0
        %v5331 = vadd.f32 0.0, %v5330
        %v5332 = vpop.f32.mrb[0].mxu0
        %5333 = vmatprep.mubr.bf16.mxu0 0
        %5334 = vmatmul.mubr.bf16.gmra.mrb[0].mxu0 %v5007
        %v5335 = vpop.f32.mrb[0].mxu0
        %v5336 = vadd.f32 0.0, %v5335
        %v5337 = vpop.f32.mrb[0].mxu0
        %v5338 = vpop.f32.mrb[0].mxu0
        %v5339 = vadd.f32 0.0, %v5338
        %v5340 = vpop.f32.mrb[0].mxu0
        %5341 = vmatprep.mubr.bf16.mxu0 0
        %5342 = vmatmul.mubr.bf16.gmra.mrb[0].mxu0 %v5008
        %v5343 = vpop.f32.mrb[0].mxu0
        %v5344 = vadd.f32 0.0, %v5343
        %v5345 = vpop.f32.mrb[0].mxu0
        %v5346 = vpop.f32.mrb[0].mxu0
        %v5347 = vadd.f32 0.0, %v5346
        %v5348 = vpop.f32.mrb[0].mxu0
        %5349 = vmatprep.mubr.bf16.mxu0 0
        %5350 = vmatmul.mubr.bf16.gmra.mrb[0].mxu0 %v5009
        %v5351 = vpop.f32.mrb[0].mxu0
        %v5352 = vadd.f32 0.0, %v5351
        %v5353 = vpop.f32.mrb[0].mxu0
        %v5354 = vpop.f32.mrb[0].mxu0
        %v5355 = vadd.f32 0.0, %v5354
        %v5356 = vpop.f32.mrb[0].mxu0
        %5357 = vmatprep.mubr.bf16.mxu0 0
        %5358 = vmatmul.mubr.bf16.gmra.mrb[0].mxu0 %v5010
        %v5359 = vpop.f32.mrb[0].mxu0
        %v5360 = vadd.f32 0.0, %v5359
        %v5361 = vpop.f32.mrb[0].mxu0
        %v5362 = vpop.f32.mrb[0].mxu0
        %v5363 = vadd.f32 0.0, %v5362
        %v5364 = vpop.f32.mrb[0].mxu0
        %5365 = vmatprep.mubr.bf16.mxu0 0
        %5366 = vmatmul.mubr.bf16.gmra.mrb[0].mxu0 %v5011
        %v5367 = vpop.f32.mrb[0].mxu0
        %v5368 = vadd.f32 0.0, %v5367
        %v5369 = vpop.f32.mrb[0].mxu0
        %v5370 = vpop.f32.mrb[0].mxu0
        %v5371 = vadd.f32 0.0, %v5370
        %v5372 = vpop.f32.mrb[0].mxu0
        %5373 = vmatprep.mubr.bf16.mxu0 0
        %5374 = vmatmul.mubr.bf16.gmra.mrb[0].mxu0 %v5012
        %v5375 = vpop.f32.mrb[0].mxu0
        %v5376 = vadd.f32 0.0, %v5375
        %v5377 = vpop.f32.mrb[0].mxu0
        %v5378 = vpop.f32.mrb[0].mxu0
        %v5379 = vadd.f32 0.0, %v5378
        %v5380 = vpop.f32.mrb[0].mxu0
        %5381 = vdwg.mxu0
        %v5382 = vpack.c.bf16 %v5259, %v5256
        %v5383 = vpack.c.bf16 %v5267, %v5264
        %v5384 = vpack.c.bf16 %v5275, %v5272
        %v5385 = vpack.c.bf16 %v5283, %v5280
        %v5386 = vpack.c.bf16 %v5291, %v5288
        %v5387 = vpack.c.bf16 %v5299, %v5296
        %v5388 = vpack.c.bf16 %v5307, %v5304
        %v5389 = vpack.c.bf16 %v5315, %v5312
        %v5390 = vpack.c.bf16 %v5323, %v5320
        %v5391 = vpack.c.bf16 %v5331, %v5328
        %v5392 = vpack.c.bf16 %v5339, %v5336
        %v5393 = vpack.c.bf16 %v5347, %v5344
        %v5394 = vpack.c.bf16 %v5355, %v5352
        %v5395 = vpack.c.bf16 %v5363, %v5360
        %v5396 = vpack.c.bf16 %v5371, %v5368
        %v5397 = vpack.c.bf16 %v5379, %v5376
        %v5414 = vunpack.c.l.b16 %v5382
        %v5415 = vunpack.c.h.b16 %v5382
        %v5416 = vunpack.c.l.b16 %v5383
        %v5417 = vunpack.c.h.b16 %v5383
        %v5418 = vunpack.c.l.b16 %v5384
        %v5419 = vunpack.c.h.b16 %v5384
        %v5420 = vunpack.c.l.b16 %v5385
        %v5421 = vunpack.c.h.b16 %v5385
        %v5422 = vunpack.c.l.b16 %v5386
        %v5423 = vunpack.c.h.b16 %v5386
        %v5424 = vunpack.c.l.b16 %v5387
        %v5425 = vunpack.c.h.b16 %v5387
        %v5426 = vunpack.c.l.b16 %v5388
        %v5427 = vunpack.c.h.b16 %v5388
        %v5428 = vunpack.c.l.b16 %v5389
        %v5429 = vunpack.c.h.b16 %v5389
        %v5430 = vunpack.c.l.b16 %v5390
        %v5431 = vunpack.c.h.b16 %v5390
        %v5432 = vunpack.c.l.b16 %v5391
        %v5433 = vunpack.c.h.b16 %v5391
        %v5434 = vunpack.c.l.b16 %v5392
        %v5435 = vunpack.c.h.b16 %v5392
        %v5436 = vunpack.c.l.b16 %v5393
        %v5437 = vunpack.c.h.b16 %v5393
        %v5438 = vunpack.c.l.b16 %v5394
        %v5439 = vunpack.c.h.b16 %v5394
        %v5440 = vunpack.c.l.b16 %v5395
        %v5441 = vunpack.c.h.b16 %v5395
        %v5442 = vunpack.c.l.b16 %v5396
        %v5443 = vunpack.c.h.b16 %v5396
        %v5444 = vunpack.c.l.b16 %v5397
        %v5445 = vunpack.c.h.b16 %v5397
        %v5446 = vpack.c.b16 %v5414, %v5414
        %v5447 = vpack.c.b16 %v5415, %v5415
        %v5448 = vpack.c.b16 %v5416, %v5416
        %v5449 = vpack.c.b16 %v5417, %v5417
        %v5450 = vpack.c.b16 %v5418, %v5418
        %v5451 = vpack.c.b16 %v5419, %v5419
        %v5452 = vpack.c.b16 %v5420, %v5420
        %v5453 = vpack.c.b16 %v5421, %v5421
        %v5454 = vpack.c.b16 %v5422, %v5422
        %v5455 = vpack.c.b16 %v5423, %v5423
        %v5456 = vpack.c.b16 %v5424, %v5424
        %v5457 = vpack.c.b16 %v5425, %v5425
        %v5458 = vpack.c.b16 %v5426, %v5426
        %v5459 = vpack.c.b16 %v5427, %v5427
        %v5460 = vpack.c.b16 %v5428, %v5428
        %v5461 = vpack.c.b16 %v5429, %v5429
        %v5462 = vpack.c.b16 %v5430, %v5430
        %v5463 = vpack.c.b16 %v5431, %v5431
        %v5464 = vpack.c.b16 %v5432, %v5432
        %v5465 = vpack.c.b16 %v5433, %v5433
        %v5466 = vpack.c.b16 %v5434, %v5434
        %v5467 = vpack.c.b16 %v5435, %v5435
        %v5468 = vpack.c.b16 %v5436, %v5436
        %v5469 = vpack.c.b16 %v5437, %v5437
        %v5470 = vpack.c.b16 %v5438, %v5438
        %v5471 = vpack.c.b16 %v5439, %v5439
        %v5472 = vpack.c.b16 %v5440, %v5440
        %v5473 = vpack.c.b16 %v5441, %v5441
        %v5474 = vpack.c.b16 %v5442, %v5442
        %v5475 = vpack.c.b16 %v5443, %v5443
        %v5476 = vpack.c.b16 %v5444, %v5444
        %v5477 = vpack.c.b16 %v5445, %v5445
        %5510 = vst [vmem:[%s527] sm:$0xf] %v5446
        %5511 = vst [vmem:[%s527 + $0x4] sm:$0xf] %v5447
        %5512 = vst [vmem:[%s527 + $0x8] sm:$0xf] %v5448
        %5513 = vst [vmem:[%s527 + $0xc] sm:$0xf] %v5449
        %5514 = vst [vmem:[%s527 + $0x10] sm:$0xf] %v5450
        %5515 = vst [vmem:[%s527 + $0x14] sm:$0xf] %v5451
        %5516 = vst [vmem:[%s527 + $0x18] sm:$0xf] %v5452
        %5517 = vst [vmem:[%s527 + $0x1c] sm:$0xf] %v5453
        %5518 = vst [vmem:[%s527 + $0x20] sm:$0xf] %v5454
        %5519 = vst [vmem:[%s527 + $0x24] sm:$0xf] %v5455
        %5520 = vst [vmem:[%s527 + $0x28] sm:$0xf] %v5456
        %5521 = vst [vmem:[%s527 + $0x2c] sm:$0xf] %v5457
        %5522 = vst [vmem:[%s527 + $0x30] sm:$0xf] %v5458
        %5523 = vst [vmem:[%s527 + $0x34] sm:$0xf] %v5459
        %5524 = vst [vmem:[%s527 + $0x38] sm:$0xf] %v5460
        %5525 = vst [vmem:[%s527 + $0x3c] sm:$0xf] %v5461
        %5526 = vst [vmem:[%s527 + $0x40] sm:$0xf] %v5462
        %5527 = vst [vmem:[%s527 + $0x44] sm:$0xf] %v5463
        %5528 = vst [vmem:[%s527 + $0x48] sm:$0xf] %v5464
        %5529 = vst [vmem:[%s527 + $0x4c] sm:$0xf] %v5465
        %5530 = vst [vmem:[%s527 + $0x50] sm:$0xf] %v5466
        %5531 = vst [vmem:[%s527 + $0x54] sm:$0xf] %v5467
        %5532 = vst [vmem:[%s527 + $0x58] sm:$0xf] %v5468
        %5533 = vst [vmem:[%s527 + $0x5c] sm:$0xf] %v5469
        %5534 = vst [vmem:[%s527 + $0x60] sm:$0xf] %v5470
        %5535 = vst [vmem:[%s527 + $0x64] sm:$0xf] %v5471
        %5536 = vst [vmem:[%s527 + $0x68] sm:$0xf] %v5472
        %5537 = vst [vmem:[%s527 + $0x6c] sm:$0xf] %v5473
        %5538 = vst [vmem:[%s527 + $0x70] sm:$0xf] %v5474
        %5539 = vst [vmem:[%s527 + $0x74] sm:$0xf] %v5475
        %5540 = vst [vmem:[%s527 + $0x78] sm:$0xf] %v5476
        %5541 = vst [vmem:[%s527 + $0x7c] sm:$0xf] %v5477
        %s5542 = scalar_lea.vmem %s11, 64
        %v5543 = vld [vmem:[%s5542] sm:$0xf]
        %v5544 = vld [vmem:[%s5542 + $0x4] sm:$0xf]
        %v5545 = vld [vmem:[%s5542 + $0x8] sm:$0xf]
        %v5546 = vld [vmem:[%s5542 + $0xc] sm:$0xf]
        %v5547 = vld [vmem:[%s5542 + $0x10] sm:$0xf]
        %v5548 = vld [vmem:[%s5542 + $0x14] sm:$0xf]
        %v5549 = vld [vmem:[%s5542 + $0x18] sm:$0xf]
        %v5550 = vld [vmem:[%s5542 + $0x1c] sm:$0xf]
        %v5551 = vld [vmem:[%s5542 + $0x20] sm:$0xf]
        %v5552 = vld [vmem:[%s5542 + $0x24] sm:$0xf]
        %v5553 = vld [vmem:[%s5542 + $0x28] sm:$0xf]
        %v5554 = vld [vmem:[%s5542 + $0x2c] sm:$0xf]
        %v5555 = vld [vmem:[%s5542 + $0x30] sm:$0xf]
        %v5556 = vld [vmem:[%s5542 + $0x34] sm:$0xf]
        %v5557 = vld [vmem:[%s5542 + $0x38] sm:$0xf]
        %v5558 = vld [vmem:[%s5542 + $0x3c] sm:$0xf]
        %v5575 = vunpack.c.l.b16 %v5543
        %v5576 = vunpack.c.l.b16 %v5544
        %v5577 = vunpack.c.l.b16 %v5545
        %v5578 = vunpack.c.l.b16 %v5546
        %v5579 = vunpack.c.l.b16 %v5547
        %v5580 = vunpack.c.l.b16 %v5548
        %v5581 = vunpack.c.l.b16 %v5549
        %v5582 = vunpack.c.l.b16 %v5550
        %v5583 = vunpack.c.l.b16 %v5551
        %v5584 = vunpack.c.l.b16 %v5552
        %v5585 = vunpack.c.l.b16 %v5553
        %v5586 = vunpack.c.l.b16 %v5554
        %v5587 = vunpack.c.l.b16 %v5555
        %v5588 = vunpack.c.l.b16 %v5556
        %v5589 = vunpack.c.l.b16 %v5557
        %v5590 = vunpack.c.l.b16 %v5558
        %v5591 = vpack.c.b16 %v5576, %v5575
        %v5592 = vpack.c.b16 %v5578, %v5577
        %v5593 = vpack.c.b16 %v5580, %v5579
        %v5594 = vpack.c.b16 %v5582, %v5581
        %v5595 = vpack.c.b16 %v5584, %v5583
        %v5596 = vpack.c.b16 %v5586, %v5585
        %v5597 = vpack.c.b16 %v5588, %v5587
        %v5598 = vpack.c.b16 %v5590, %v5589
        %5607 = vmatprep.subr.bf16.mxu0 0
        %5608 = vmatpush1.bf16.msra.mxu0 %v5591
        %5609 = vmatprep.subr.bf16.mxu0 0
        %5610 = vmatpush1.bf16.msra.mxu0 %v5592
        %5611 = vmatprep.subr.bf16.mxu0 0
        %5612 = vmatpush1.bf16.msra.mxu0 %v5593
        %5613 = vmatprep.subr.bf16.mxu0 0
        %5614 = vmatpush1.bf16.msra.mxu0 %v5594
        %5615 = vmatprep.subr.bf16.mxu0 0
        %5616 = vmatpush1.bf16.msra.mxu0 %v5595
        %5617 = vmatprep.subr.bf16.mxu0 0
        %5618 = vmatpush1.bf16.msra.mxu0 %v5596
        %5619 = vmatprep.subr.bf16.mxu0 0
        %5620 = vmatpush1.bf16.msra.mxu0 %v5597
        %5621 = vmatprep.subr.bf16.mxu0 0
        %5622 = vmatpush1.bf16.msra.mxu0 %v5598
        %5623 = vmatprep.subr.bf16.mxu0 0
        %5624 = vmatpush1.bf16.msra.mxu0 0
        %5625 = vmatprep.subr.bf16.mxu0 0
        %5626 = vmatpush1.bf16.msra.mxu0 0
        %5627 = vmatprep.subr.bf16.mxu0 0
        %5628 = vmatpush1.bf16.msra.mxu0 0
        %5629 = vmatprep.subr.bf16.mxu0 0
        %5630 = vmatpush1.bf16.msra.mxu0 0
        %5631 = vmatprep.subr.bf16.mxu0 0
        %5632 = vmatpush1.bf16.msra.mxu0 0
        %5633 = vmatprep.subr.bf16.mxu0 0
        %5634 = vmatpush1.bf16.msra.mxu0 0
        %5635 = vmatprep.subr.bf16.mxu0 0
        %5636 = vmatpush1.bf16.msra.mxu0 0
        %5637 = vmatprep.subr.bf16.mxu0 0
        %5638 = vmatpush1.bf16.msra.mxu0 0
        %5639 = vmatprep.mubr.bf16.mxu0 0
        %5640 = vmatmul.mubr.bf16.gmra.mrb[0].mxu0 %v4997
        %v5641 = vpop.f32.mrb[0].mxu0
        %v5642 = vadd.f32 0.0, %v5641
        %v5643 = vpop.f32.mrb[0].mxu0
        %v5644 = vpop.f32.mrb[0].mxu0
        %v5645 = vadd.f32 0.0, %v5644
        %v5646 = vpop.f32.mrb[0].mxu0
        %5647 = vmatprep.mubr.bf16.mxu0 0
        %5648 = vmatmul.mubr.bf16.gmra.mrb[0].mxu0 %v4998
        %v5649 = vpop.f32.mrb[0].mxu0
        %v5650 = vadd.f32 0.0, %v5649
        %v5651 = vpop.f32.mrb[0].mxu0
        %v5652 = vpop.f32.mrb[0].mxu0
        %v5653 = vadd.f32 0.0, %v5652
        %v5654 = vpop.f32.mrb[0].mxu0
        %5655 = vmatprep.mubr.bf16.mxu0 0
        %5656 = vmatmul.mubr.bf16.gmra.mrb[0].mxu0 %v4999
        %v5657 = vpop.f32.mrb[0].mxu0
        %v5658 = vadd.f32 0.0, %v5657
        %v5659 = vpop.f32.mrb[0].mxu0
        %v5660 = vpop.f32.mrb[0].mxu0
        %v5661 = vadd.f32 0.0, %v5660
        %v5662 = vpop.f32.mrb[0].mxu0
        %5663 = vmatprep.mubr.bf16.mxu0 0
        %5664 = vmatmul.mubr.bf16.gmra.mrb[0].mxu0 %v5000
        %v5665 = vpop.f32.mrb[0].mxu0
        %v5666 = vadd.f32 0.0, %v5665
        %v5667 = vpop.f32.mrb[0].mxu0
        %v5668 = vpop.f32.mrb[0].mxu0
        %v5669 = vadd.f32 0.0, %v5668
        %v5670 = vpop.f32.mrb[0].mxu0
        %5671 = vmatprep.mubr.bf16.mxu0 0
        %5672 = vmatmul.mubr.bf16.gmra.mrb[0].mxu0 %v5001
        %v5673 = vpop.f32.mrb[0].mxu0
        %v5674 = vadd.f32 0.0, %v5673
        %v5675 = vpop.f32.mrb[0].mxu0
        %v5676 = vpop.f32.mrb[0].mxu0
        %v5677 = vadd.f32 0.0, %v5676
        %v5678 = vpop.f32.mrb[0].mxu0
        %5679 = vmatprep.mubr.bf16.mxu0 0
        %5680 = vmatmul.mubr.bf16.gmra.mrb[0].mxu0 %v5002
        %v5681 = vpop.f32.mrb[0].mxu0
        %v5682 = vadd.f32 0.0, %v5681
        %v5683 = vpop.f32.mrb[0].mxu0
        %v5684 = vpop.f32.mrb[0].mxu0
        %v5685 = vadd.f32 0.0, %v5684
        %v5686 = vpop.f32.mrb[0].mxu0
        %5687 = vmatprep.mubr.bf16.mxu0 0
        %5688 = vmatmul.mubr.bf16.gmra.mrb[0].mxu0 %v5003
        %v5689 = vpop.f32.mrb[0].mxu0
        %v5690 = vadd.f32 0.0, %v5689
        %v5691 = vpop.f32.mrb[0].mxu0
        %v5692 = vpop.f32.mrb[0].mxu0
        %v5693 = vadd.f32 0.0, %v5692
        %v5694 = vpop.f32.mrb[0].mxu0
        %5695 = vmatprep.mubr.bf16.mxu0 0
        %5696 = vmatmul.mubr.bf16.gmra.mrb[0].mxu0 %v5004
        %v5697 = vpop.f32.mrb[0].mxu0
        %v5698 = vadd.f32 0.0, %v5697
        %v5699 = vpop.f32.mrb[0].mxu0
        %v5700 = vpop.f32.mrb[0].mxu0
        %v5701 = vadd.f32 0.0, %v5700
        %v5702 = vpop.f32.mrb[0].mxu0
        %5703 = vmatprep.mubr.bf16.mxu0 0
        %5704 = vmatmul.mubr.bf16.gmra.mrb[0].mxu0 %v5005
        %v5705 = vpop.f32.mrb[0].mxu0
        %v5706 = vadd.f32 0.0, %v5705
        %v5707 = vpop.f32.mrb[0].mxu0
        %v5708 = vpop.f32.mrb[0].mxu0
        %v5709 = vadd.f32 0.0, %v5708
        %v5710 = vpop.f32.mrb[0].mxu0
        %5711 = vmatprep.mubr.bf16.mxu0 0
        %5712 = vmatmul.mubr.bf16.gmra.mrb[0].mxu0 %v5006
        %v5713 = vpop.f32.mrb[0].mxu0
        %v5714 = vadd.f32 0.0, %v5713
        %v5715 = vpop.f32.mrb[0].mxu0
        %v5716 = vpop.f32.mrb[0].mxu0
        %v5717 = vadd.f32 0.0, %v5716
        %v5718 = vpop.f32.mrb[0].mxu0
        %5719 = vmatprep.mubr.bf16.mxu0 0
        %5720 = vmatmul.mubr.bf16.gmra.mrb[0].mxu0 %v5007
        %v5721 = vpop.f32.mrb[0].mxu0
        %v5722 = vadd.f32 0.0, %v5721
        %v5723 = vpop.f32.mrb[0].mxu0
        %v5724 = vpop.f32.mrb[0].mxu0
        %v5725 = vadd.f32 0.0, %v5724
        %v5726 = vpop.f32.mrb[0].mxu0
        %5727 = vmatprep.mubr.bf16.mxu0 0
        %5728 = vmatmul.mubr.bf16.gmra.mrb[0].mxu0 %v5008
        %v5729 = vpop.f32.mrb[0].mxu0
        %v5730 = vadd.f32 0.0, %v5729
        %v5731 = vpop.f32.mrb[0].mxu0
        %v5732 = vpop.f32.mrb[0].mxu0
        %v5733 = vadd.f32 0.0, %v5732
        %v5734 = vpop.f32.mrb[0].mxu0
        %5735 = vmatprep.mubr.bf16.mxu0 0
        %5736 = vmatmul.mubr.bf16.gmra.mrb[0].mxu0 %v5009
        %v5737 = vpop.f32.mrb[0].mxu0
        %v5738 = vadd.f32 0.0, %v5737
        %v5739 = vpop.f32.mrb[0].mxu0
        %v5740 = vpop.f32.mrb[0].mxu0
        %v5741 = vadd.f32 0.0, %v5740
        %v5742 = vpop.f32.mrb[0].mxu0
        %5743 = vmatprep.mubr.bf16.mxu0 0
        %5744 = vmatmul.mubr.bf16.gmra.mrb[0].mxu0 %v5010
        %v5745 = vpop.f32.mrb[0].mxu0
        %v5746 = vadd.f32 0.0, %v5745
        %v5747 = vpop.f32.mrb[0].mxu0
        %v5748 = vpop.f32.mrb[0].mxu0
        %v5749 = vadd.f32 0.0, %v5748
        %v5750 = vpop.f32.mrb[0].mxu0
        %5751 = vmatprep.mubr.bf16.mxu0 0
        %5752 = vmatmul.mubr.bf16.gmra.mrb[0].mxu0 %v5011
        %v5753 = vpop.f32.mrb[0].mxu0
        %v5754 = vadd.f32 0.0, %v5753
        %v5755 = vpop.f32.mrb[0].mxu0
        %v5756 = vpop.f32.mrb[0].mxu0
        %v5757 = vadd.f32 0.0, %v5756
        %v5758 = vpop.f32.mrb[0].mxu0
        %5759 = vmatprep.mubr.bf16.mxu0 0
        %5760 = vmatmul.mubr.bf16.gmra.mrb[0].mxu0 %v5012
        %v5761 = vpop.f32.mrb[0].mxu0
        %v5762 = vadd.f32 0.0, %v5761
        %v5763 = vpop.f32.mrb[0].mxu0
        %v5764 = vpop.f32.mrb[0].mxu0
        %v5765 = vadd.f32 0.0, %v5764
        %v5766 = vpop.f32.mrb[0].mxu0
        %5767 = vdwg.mxu0
        %v5768 = vpack.c.bf16 %v5645, %v5642
        %v5769 = vpack.c.bf16 %v5653, %v5650
        %v5770 = vpack.c.bf16 %v5661, %v5658
        %v5771 = vpack.c.bf16 %v5669, %v5666
        %v5772 = vpack.c.bf16 %v5677, %v5674
        %v5773 = vpack.c.bf16 %v5685, %v5682
        %v5774 = vpack.c.bf16 %v5693, %v5690
        %v5775 = vpack.c.bf16 %v5701, %v5698
        %v5776 = vpack.c.bf16 %v5709, %v5706
        %v5777 = vpack.c.bf16 %v5717, %v5714
        %v5778 = vpack.c.bf16 %v5725, %v5722
        %v5779 = vpack.c.bf16 %v5733, %v5730
        %v5780 = vpack.c.bf16 %v5741, %v5738
        %v5781 = vpack.c.bf16 %v5749, %v5746
        %v5782 = vpack.c.bf16 %v5757, %v5754
        %v5783 = vpack.c.bf16 %v5765, %v5762
        %v5800 = vunpack.c.l.b16 %v5768
        %v5801 = vunpack.c.h.b16 %v5768
        %v5802 = vunpack.c.l.b16 %v5769
        %v5803 = vunpack.c.h.b16 %v5769
        %v5804 = vunpack.c.l.b16 %v5770
        %v5805 = vunpack.c.h.b16 %v5770
        %v5806 = vunpack.c.l.b16 %v5771
        %v5807 = vunpack.c.h.b16 %v5771
        %v5808 = vunpack.c.l.b16 %v5772
        %v5809 = vunpack.c.h.b16 %v5772
        %v5810 = vunpack.c.l.b16 %v5773
        %v5811 = vunpack.c.h.b16 %v5773
        %v5812 = vunpack.c.l.b16 %v5774
        %v5813 = vunpack.c.h.b16 %v5774
        %v5814 = vunpack.c.l.b16 %v5775
        %v5815 = vunpack.c.h.b16 %v5775
        %v5816 = vunpack.c.l.b16 %v5776
        %v5817 = vunpack.c.h.b16 %v5776
        %v5818 = vunpack.c.l.b16 %v5777
        %v5819 = vunpack.c.h.b16 %v5777
        %v5820 = vunpack.c.l.b16 %v5778
        %v5821 = vunpack.c.h.b16 %v5778
        %v5822 = vunpack.c.l.b16 %v5779
        %v5823 = vunpack.c.h.b16 %v5779
        %v5824 = vunpack.c.l.b16 %v5780
        %v5825 = vunpack.c.h.b16 %v5780
        %v5826 = vunpack.c.l.b16 %v5781
        %v5827 = vunpack.c.h.b16 %v5781
        %v5828 = vunpack.c.l.b16 %v5782
        %v5829 = vunpack.c.h.b16 %v5782
        %v5830 = vunpack.c.l.b16 %v5783
        %v5831 = vunpack.c.h.b16 %v5783
        %v5832 = vpack.c.b16 %v5800, %v5800
        %v5833 = vpack.c.b16 %v5801, %v5801
        %v5834 = vpack.c.b16 %v5802, %v5802
        %v5835 = vpack.c.b16 %v5803, %v5803
        %v5836 = vpack.c.b16 %v5804, %v5804
        %v5837 = vpack.c.b16 %v5805, %v5805
        %v5838 = vpack.c.b16 %v5806, %v5806
        %v5839 = vpack.c.b16 %v5807, %v5807
        %v5840 = vpack.c.b16 %v5808, %v5808
        %v5841 = vpack.c.b16 %v5809, %v5809
        %v5842 = vpack.c.b16 %v5810, %v5810
        %v5843 = vpack.c.b16 %v5811, %v5811
        %v5844 = vpack.c.b16 %v5812, %v5812
        %v5845 = vpack.c.b16 %v5813, %v5813
        %v5846 = vpack.c.b16 %v5814, %v5814
        %v5847 = vpack.c.b16 %v5815, %v5815
        %v5848 = vpack.c.b16 %v5816, %v5816
        %v5849 = vpack.c.b16 %v5817, %v5817
        %v5850 = vpack.c.b16 %v5818, %v5818
        %v5851 = vpack.c.b16 %v5819, %v5819
        %v5852 = vpack.c.b16 %v5820, %v5820
        %v5853 = vpack.c.b16 %v5821, %v5821
        %v5854 = vpack.c.b16 %v5822, %v5822
        %v5855 = vpack.c.b16 %v5823, %v5823
        %v5856 = vpack.c.b16 %v5824, %v5824
        %v5857 = vpack.c.b16 %v5825, %v5825
        %v5858 = vpack.c.b16 %v5826, %v5826
        %v5859 = vpack.c.b16 %v5827, %v5827
        %v5860 = vpack.c.b16 %v5828, %v5828
        %v5861 = vpack.c.b16 %v5829, %v5829
        %v5862 = vpack.c.b16 %v5830, %v5830
        %v5863 = vpack.c.b16 %v5831, %v5831
        %s5896 = scalar_lea.vmem %s527, 128 [#allocation8]
        %5897 = vst [vmem:[%s5896] sm:$0xf] %v5832
        %5898 = vst [vmem:[%s5896 + $0x4] sm:$0xf] %v5833
        %5899 = vst [vmem:[%s5896 + $0x8] sm:$0xf] %v5834
        %5900 = vst [vmem:[%s5896 + $0xc] sm:$0xf] %v5835
        %5901 = vst [vmem:[%s5896 + $0x10] sm:$0xf] %v5836
        %5902 = vst [vmem:[%s5896 + $0x14] sm:$0xf] %v5837
        %5903 = vst [vmem:[%s5896 + $0x18] sm:$0xf] %v5838
        %5904 = vst [vmem:[%s5896 + $0x1c] sm:$0xf] %v5839
        %5905 = vst [vmem:[%s5896 + $0x20] sm:$0xf] %v5840
        %5906 = vst [vmem:[%s5896 + $0x24] sm:$0xf] %v5841
        %5907 = vst [vmem:[%s5896 + $0x28] sm:$0xf] %v5842
        %5908 = vst [vmem:[%s5896 + $0x2c] sm:$0xf] %v5843
        %5909 = vst [vmem:[%s5896 + $0x30] sm:$0xf] %v5844
        %5910 = vst [vmem:[%s5896 + $0x34] sm:$0xf] %v5845
        %5911 = vst [vmem:[%s5896 + $0x38] sm:$0xf] %v5846
        %5912 = vst [vmem:[%s5896 + $0x3c] sm:$0xf] %v5847
        %5913 = vst [vmem:[%s5896 + $0x40] sm:$0xf] %v5848
        %5914 = vst [vmem:[%s5896 + $0x44] sm:$0xf] %v5849
        %5915 = vst [vmem:[%s5896 + $0x48] sm:$0xf] %v5850
        %5916 = vst [vmem:[%s5896 + $0x4c] sm:$0xf] %v5851
        %5917 = vst [vmem:[%s5896 + $0x50] sm:$0xf] %v5852
        %5918 = vst [vmem:[%s5896 + $0x54] sm:$0xf] %v5853
        %5919 = vst [vmem:[%s5896 + $0x58] sm:$0xf] %v5854
        %5920 = vst [vmem:[%s5896 + $0x5c] sm:$0xf] %v5855
        %5921 = vst [vmem:[%s5896 + $0x60] sm:$0xf] %v5856
        %5922 = vst [vmem:[%s5896 + $0x64] sm:$0xf] %v5857
        %5923 = vst [vmem:[%s5896 + $0x68] sm:$0xf] %v5858
        %5924 = vst [vmem:[%s5896 + $0x6c] sm:$0xf] %v5859
        %5925 = vst [vmem:[%s5896 + $0x70] sm:$0xf] %v5860
        %5926 = vst [vmem:[%s5896 + $0x74] sm:$0xf] %v5861
        %5927 = vst [vmem:[%s5896 + $0x78] sm:$0xf] %v5862
        %5928 = vst [vmem:[%s5896 + $0x7c] sm:$0xf] %v5863
        %s5929 = sand.u32 %s312, 1
        %s5930 = scalar_lea.sflag [#allocation4], %s5929
        %s5931 = sand.u32 %s312, 1
        %s5932 = smul.addr %s5931, 128
        %s5933 = scalar_lea.vmem [#allocation7], %s5932
        %s5934 = sand.u32 %s338, 1
        %s5935 = scalar_lea.sflag [#allocation9], %s5934
        %s5936 = sand.u32 %s338, 1
        %s5937 = smul.addr %s5936, 256
        %s5938 = scalar_lea.vmem [#allocation8], %s5937
        // Predicated region
        $region77: #{tpu_custom_call.1} parent=67 // pred_check
          %p5939 = pneg %p322
        $region78: #{tpu_custom_call.1} parent=67 // pred_check_branch
          %5941 = sbr.rel (%p5939) target = $region80
        $region79: #{tpu_custom_call.1} parent=67 // pred_region
          %s5942 = smul.u32 32, %s37
          %s5944 = ssub.s32 2048, 2048
          %5945 = vsyncadd %s5930, %s5944
          %s5946 = smul.addr %s5942, 64
          %s5947 = scalar_lea.hbm %s12, %s5946
          %s5948 = sshll.u32 %s5933, 4
          %s5949 = int_to_ptr.vmem [resolvable:$true] %s5948
          %5954 = dma.vmem_to_hbm [thread:$0]  %s5949, 2048, %s5947, %s5930, 64, 64, 4
        $region80: #{tpu_custom_call.1} parent=67 // pred_fallthru
          _
        // Predicated region
        $region81: #{tpu_custom_call.1} parent=67 // pred_check
          %p5955 = pneg %p348
        $region82: #{tpu_custom_call.1} parent=67 // pred_check_branch
          %5957 = sbr.rel (%p5955) target = $region84
        $region83: #{tpu_custom_call.1} parent=67 // pred_region
          #allocation11 [shape = 'u32[6]{0}', space=smem, size = 0x18, scoped, tag = 'DMA stride descriptor']
          %s5958 = smul.u32 32, %s37
          %s5960 = ssub.s32 4096, 4096
          %5961 = vsyncadd %s5935, %s5960
          %s5962 = smul.addr %s5958, 64
          %s5963 = scalar_lea.hbm %s13, %s5962
          %s5965 = sshll.u32 1, 14
          %s5966 = sxor.u32 4294967295, %s5965
          %s5969 = sshll.u32 7, 18
          %s5970 = sxor.u32 4294967295, %s5969
          %s5971 = sand.u32 0, %s5970
          %s5973 = sor.u32 %s5971, 0
          %s5975 = sshll.u32 3, 24
          %s5976 = sxor.u32 4294967295, %s5975
          %s5977 = sand.u32 %s5973, %s5976
          %s5979 = sor.u32 %s5977, 0
          %s5980 = sshll.u32 %s5938, 4
          %s5981 = int_to_ptr.vmem [resolvable:$true] %s5980
          %5987 = sst [smem:[#allocation11]] 2048
          %s5988 = scalar_lea.smem [#allocation11], 1
          %5989 = sst [smem:[%s5988]] 4096
          %s5990 = scalar_lea.smem [#allocation11], 2
          %5991 = sst [smem:[%s5990]] 32
          %s5992 = scalar_lea.smem [#allocation11], 3
          %5993 = sst [smem:[%s5992]] 64
          %s5994 = scalar_lea.smem [#allocation11], 4
          %5995 = sst [smem:[%s5994]] 64
          %s5996 = scalar_lea.smem [#allocation11], 5
          %5997 = sst [smem:[%s5996]] 4
          %5999 = dma.general %s5981, 4096, %s5963, %s5935, [#allocation10], [#allocation11], %s5979, 0
        $region84: #{tpu_custom_call.1} parent=67 // pred_fallthru
          _
      $region68: #{tpu_custom_call.1} parent=5 // pred_fallthru
        _
      %p6000 = scmp.le.s32.totalorder 2, %s32
      // Predicated region
      $region85: #{tpu_custom_call.1} parent=5 // pred_check
        %p6001 = pneg %p6000
      $region86: #{tpu_custom_call.1} parent=5 // pred_check_branch
        %6003 = sbr.rel (%p6001) target = $region88
      $region87: #{tpu_custom_call.1} parent=5 // pred_region
        %s6004 = ssub.s32 %s32, 2
        // Predicated region
        $region89: #{tpu_custom_call.1} parent=87 // pred_check
          %p6005 = pneg %p328
        $region90: #{tpu_custom_call.1} parent=87 // pred_check_branch
          %6007 = sbr.rel (%p6005) target = $region92
        $region91: #{tpu_custom_call.1} parent=87 // pred_region
          %s6008 = sand.u32 %s313, 1
          %s6009 = scalar_lea.sflag [#allocation4], %s6008
          %s6010 = sand.u32 %s313, 1
          %s6011 = smul.addr %s6010, 128
          %s6012 = scalar_lea.vmem [#allocation7], %s6011
          %6013 = dma.done %s6009, 2048
        $region92: #{tpu_custom_call.1} parent=87 // pred_fallthru
          _
        // Predicated region
        $region93: #{tpu_custom_call.1} parent=87 // pred_check
          %p6014 = pneg %p354
        $region94: #{tpu_custom_call.1} parent=87 // pred_check_branch
          %6016 = sbr.rel (%p6014) target = $region96
        $region95: #{tpu_custom_call.1} parent=87 // pred_region
          %s6017 = sand.u32 %s339, 1
          %s6018 = scalar_lea.sflag [#allocation9], %s6017
          %s6019 = sand.u32 %s339, 1
          %s6020 = smul.addr %s6019, 256
          %s6021 = scalar_lea.vmem [#allocation8], %s6020
          %6022 = dma.done %s6018, 4096
        $region96: #{tpu_custom_call.1} parent=87 // pred_fallthru
          _
      $region88: #{tpu_custom_call.1} parent=5 // pred_fallthru
        _
    $region6: #{tpu_custom_call.1} parent=1 // loop_footer
      %s36 = sadd.s32 1, %s32
    $region7: #{tpu_custom_call.1} parent=1 // loop_footer_branch
      %31 = sbr.rel target = $region3
    $region8: #{tpu_custom_call.1} parent=1 // loop_exit
      _
    %6023 = vsyncpa [#allocation3], 1
    %s6024 = scalar_lea.sflag [#allocation3], 1
    %6025 = vsyncpa %s6024, 1
    %6026 = vsyncpa [#allocation6], 1
    %s6027 = scalar_lea.sflag [#allocation6], 1
    %6028 = vsyncpa %s6027, 1
    %6029 = vsyncpa [#allocation4], 1
    %s6030 = scalar_lea.sflag [#allocation4], 1
    %6031 = vsyncpa %s6030, 1
    %6032 = vsyncpa [#allocation9], 1
    %s6033 = scalar_lea.sflag [#allocation9], 1
    %6034 = vsyncpa %s6033, 1

</llo_original>
